<compile_context>
chip_gen: v7x
topology: tpu7x:2x2x1
jax: 0.10.0
libtpu: 0.0.40
codegen_flags: <defaults>
</compile_context>

<pallas_src>
import functools
import numpy as np
import jax
import jax.numpy as jnp
from jax import lax
from jax.experimental import pallas as pl
from jax.experimental.pallas import tpu as pltpu


# 3x3 taps in tap-major order (matches the host-side weight reshape below)
_TAPS = [(a, b) for a in (-1, 0, 1) for b in (-1, 0, 1)]


# ---------------------------------------------------------------------------
# Fused Pallas kernel: entire ReverseStage forward for one batch element
# ---------------------------------------------------------------------------

def _reverse_stage_kernel(*refs, H, W, S, C, has_first):
    if has_first:
        (x_ref, y_ref, m_ref, wf_ref, bf_ref,
         w0_ref, b0_ref, wc_ref, bc_ref, wy_ref, ws_ref, bs_ref, o_ref) = refs
    else:
        (x_ref, y_ref, m_ref,
         w0_ref, b0_ref, wc_ref, bc_ref, wy_ref, ws_ref, bs_ref, o_ref) = refs

    f32 = jnp.float32
    masks = [m_ref[t] for t in range(9)]            # 9 x (1, S) {0,1} validity masks

    def tap(img, t):
        """Lane p gets img[..., spatial neighbor (h+a, w+b)], zero outside the image."""
        a, b = _TAPS[t]
        off = a * W + b
        if off == 0:                                # center tap: mask is all-ones
            return img
        return pltpu.roll(img, shift=(-off) % S, axis=1) * masks[t]

    def patches(img):                               # (n_ch, S) -> (9*n_ch, S), tap-major
        return jnp.concatenate([tap(img, t) for t in range(9)], axis=0)

    def y_term(wy_s, y):                            # folded y-channel conv: 9 rank-1 FMAs
        acc = wy_s[:, 0:1] * tap(y, 0)
        for t in range(1, 9):
            acc = acc + wy_s[:, t:t + 1] * tap(y, t)
        return acc

    x = x_ref[0]                                    # (Cin0, S)
    y = 1.0 - 1.0 / (1.0 + jnp.exp(-y_ref[0]))      # (1, S): y = 1 - sigmoid(y)

    if has_first:                                   # first_conv (ratio > 0)
        x = jnp.dot(wf_ref[...], patches(x), preferred_element_type=f32) + bf_ref[...]

    # ---- stage 0 (weak GRA) conv --------------------------------------------------
    conv = jnp.dot(w0_ref[...], patches(x), preferred_element_type=f32) + b0_ref[...]
    conv = conv + y_term(wy_ref[0], y)
    x = x + jnp.maximum(conv, 0.0)                  # x1 = x0 + relu(conv0)

    # ---- stages 1..2: one matmul gives [conv_{s+1} rows | score_s row] -------------
    for s in range(2):
        x_pat = patches(x)                          # patches(x_{s+1}), shared
        m = jnp.dot(wc_ref[s], x_pat, preferred_element_type=f32) + bc_ref[s]
        y = y + m[C:C + 1, :]                       # y_{s+1} = y_s + score_s
        conv = m[0:C, :] + y_term(wy_ref[s + 1], y)
        x = x + jnp.maximum(conv, 0.0)              # x_{s+2}

    # ---- final (strong GRA) score -------------------------------------------------
    score = jnp.dot(ws_ref[...], patches(x), preferred_element_type=f32) + bs_ref[...]
    y = y + score[0:1, :]

    o_ref[0] = y.astype(o_ref.dtype)


# ---------------------------------------------------------------------------
# Host-side weight packing (OIHW -> im2col matrices, GRA interleave folding)
# ---------------------------------------------------------------------------

def _to_mat(w_oihw):
    """OIHW (O, I, 3, 3) -> (O, 9*I) im2col weight, tap-major / channel-minor."""
    o, i = w_oihw.shape[0], w_oihw.shape[1]
    return jnp.transpose(w_oihw, (0, 2, 3, 1)).reshape(o, 9 * i)


def _gra_split(w1_oihw, channel, group):
    """Fold the interleaved [xs[0], y, xs[1], y, ...] concat into (w_x, w_y).

    The y map is a single channel repeated `group` times, so its weight slices sum;
    the x slices are gathered back into natural channel order.
    """
    cs = channel // group
    x_idx = np.array([i * (cs + 1) + j for i in range(group) for j in range(cs)])
    y_idx = np.array([i * (cs + 1) + cs for i in range(group)])
    w_x = w1_oihw[:, x_idx]                                   # (C, C, 3, 3)
    w_y = jnp.sum(w1_oihw[:, y_idx], axis=1, keepdims=True)   # (C, 1, 3, 3)
    return w_x, w_y


def pack_params(params, channel, ratio):
    C = channel
    packed = {}
    if ratio > 0:
        wf, bf = params["first"]
        packed["wf"] = _to_mat(wf).astype(jnp.float32)               # (C, 9*Cin0)
        packed["bf"] = bf.reshape(C, 1).astype(jnp.float32)          # (C, 1)

    wx, wy, b, ws, bs = [], [], [], [], []
    for name in ("weak", "medium", "strong"):
        group, w1, b1, wsc, bsc = params[name]
        w_x, w_y = _gra_split(w1, C, group)
        wx.append(_to_mat(w_x).astype(jnp.float32))                  # (C, 9C)
        wy.append(_to_mat(w_y).astype(jnp.float32))                  # (C, 9)
        b.append(b1.reshape(C, 1).astype(jnp.float32))               # (C, 1)
        ws.append(_to_mat(wsc).astype(jnp.float32))                  # (1, 9C)
        bs.append(bsc.reshape(1, 1).astype(jnp.float32))             # (1, 1)

    packed["w0"] = wx[0]                                             # (C, 9C)
    packed["b0"] = b[0]                                              # (C, 1)
    packed["wy"] = jnp.stack(wy)                                     # (3, C, 9)

    # Fused [conv_{s+1} ; score_s] weight stacks, zero-padded to a sublane multiple of 8.
    pad = (-(C + 1)) % 8
    wc, bc = [], []
    for s in range(2):
        w_stack = jnp.concatenate([wx[s + 1], ws[s]], axis=0)        # (C+1, 9C)
        b_stack = jnp.concatenate([b[s + 1], bs[s]], axis=0)         # (C+1, 1)
        wc.append(jnp.pad(w_stack, ((0, pad), (0, 0))))
        bc.append(jnp.pad(b_stack, ((0, pad), (0, 0))))
    packed["wc"] = jnp.stack(wc)                                     # (2, C+1+pad, 9C)
    packed["bc"] = jnp.stack(bc)                                     # (2, C+1+pad, 1)

    packed["ws"] = jnp.pad(ws[2], ((0, 7), (0, 0)))                  # (8, 9C), rows 1..7 = 0
    packed["bs"] = jnp.pad(bs[2], ((0, 7), (0, 0)))                  # (8, 1)
    return packed


# ---------------------------------------------------------------------------
# ReverseStage forward — Pallas path (one kernel launch for the whole module)
# ---------------------------------------------------------------------------

def reverse_stage_pallas(x_nchw, y_nchw, params, channel, ratio):
    N, Cin0, H, W = x_nchw.shape
    S = H * W
    C = channel
    has_first = ratio > 0

    x = x_nchw.reshape(N, Cin0, S).astype(jnp.float32)
    y = y_nchw.reshape(N, 1, S).astype(jnp.float32)

    # Per-tap validity masks for the 3x3 zero-padded conv; shared across batch & stages.
    hh, ww = np.divmod(np.arange(S), W)
    masks = np.stack(
        [((hh + a >= 0) & (hh + a < H) & (ww + b >= 0) & (ww + b < W)) for a, b in _TAPS]
    ).astype(np.float32).reshape(9, 1, S)
    masks = jnp.asarray(masks)

    p = pack_params(params, channel, ratio)

    args = [x, y, masks]
    in_specs = [
        pl.BlockSpec((1, Cin0, S), lambda n: (n, 0, 0)),
        pl.BlockSpec((1, 1, S), lambda n: (n, 0, 0)),
        pl.BlockSpec((9, 1, S), lambda n: (0, 0, 0)),
    ]
    if has_first:
        args += [p["wf"], p["bf"]]
        in_specs += [pl.BlockSpec(p["wf"].shape, lambda n: (0, 0)),
                     pl.BlockSpec(p["bf"].shape, lambda n: (0, 0))]
    for k in ("w0", "b0"):
        args.append(p[k])
        in_specs.append(pl.BlockSpec(p[k].shape, lambda n: (0, 0)))
    for k in ("wc", "bc", "wy"):
        args.append(p[k])
        in_specs.append(pl.BlockSpec(p[k].shape, lambda n: (0, 0, 0)))
    for k in ("ws", "bs"):
        args.append(p[k])
        in_specs.append(pl.BlockSpec(p[k].shape, lambda n: (0, 0)))

    kernel = functools.partial(_reverse_stage_kernel,
                               H=H, W=W, S=S, C=C, has_first=has_first)
    out = pl.pallas_call(
        kernel,
        out_shape=jax.ShapeDtypeStruct((N, 1, S), jnp.float32),
        grid=(N,),
        in_specs=in_specs,
        out_specs=pl.BlockSpec((1, 1, S), lambda n: (n, 0, 0)),
        compiler_params=pltpu.CompilerParams(dimension_semantics=("parallel",)),
    )(*args)
    return out.reshape(N, 1, H, W)


# ---------------------------------------------------------------------------
# Parameters (deterministic synthetic init, PyTorch OIHW layout)
# ---------------------------------------------------------------------------

def build_params(key, channel, ratio):
    keys = iter(jax.random.split(key, 16))

    def conv_w(k, cout, cin):
        return 0.1 * jax.random.normal(k, (cout, cin, 3, 3), jnp.float32)

    def conv_b(k, cout):
        return 0.05 * jax.random.normal(k, (cout,), jnp.float32)

    params = {}
    if ratio > 0:
        in_ch = int(channel * (1 + ratio))
        params["first"] = (conv_w(next(keys), channel, in_ch), conv_b(next(keys), channel))
    for name, sub in (("weak", channel), ("medium", 8), ("strong", 1)):
        group = channel // sub
        w1 = conv_w(next(keys), channel, channel + group)
        b1 = conv_b(next(keys), channel)
        ws = conv_w(next(keys), 1, channel)
        bs = conv_b(next(keys), 1)
        params[name] = (group, w1, b1, ws, bs)
    return params


# ---------------------------------------------------------------------------
# Pure-JAX reference (mirrors the PyTorch module exactly, NCHW / OIHW)
# ---------------------------------------------------------------------------

def _conv_nchw(x, w, b):
    out = lax.conv_general_dilated(x, w, (1, 1), ((1, 1), (1, 1)),
                                   dimension_numbers=("NCHW", "OIHW", "NCHW"))
    return out + b[None, :, None, None]


def reverse_stage_ref(x, y, params, channel, ratio):
    y = 1.0 - jax.nn.sigmoid(y)
    if ratio > 0:
        wf, bf = params["first"]
        x = _conv_nchw(x, wf, bf)
    for name in ("weak", "medium", "strong"):
        group, w1, b1, ws, bs = params[name]
        cs = channel // group
        pieces = []
        for i in range(group):
            pieces.append(x[:, i * cs:(i + 1) * cs])
            pieces.append(y)
        x_cat = jnp.concatenate(pieces, axis=1)
        x = x + jax.nn.relu(_conv_nchw(x_cat, w1, b1))
        y = y + _conv_nchw(x, ws, bs)
    return y


# ---------------------------------------------------------------------------

if __name__ == "__main__":
    channel = 16
    ratio = 0.5
    N, H, W = 2, 16, 16
    in_ch = int(channel * (1 + ratio))   # 24

    key = jax.random.PRNGKey(0)
    kx, ky, kp = jax.random.split(key, 3)
    x = jax.random.normal(kx, (N, in_ch, H, W), jnp.float32)
    y = jax.random.normal(ky, (N, 1, H, W), jnp.float32)
    params = build_params(kp, channel, ratio)

    out = jax.block_until_ready(reverse_stage_pallas(x, y, params, channel, ratio))
    ref = jax.block_until_ready(reverse_stage_ref(x, y, params, channel, ratio))
    np.testing.assert_allclose(np.asarray(out), np.asarray(ref), rtol=2e-4, atol=2e-4)
    print("KERNEL_OK")
</pallas_src>

<mosaic_0001>
module attributes {stable_mosaic.version = 11 : i64} {
  func.func @_reverse_stage_kernel(%arg0: i32, %arg1: memref<1x24x256xf32, #tpu.memory_space<vmem>>, %arg2: memref<1x1x256xf32, #tpu.memory_space<vmem>>, %arg3: memref<9x1x256xf32, #tpu.memory_space<vmem>>, %arg4: memref<16x216xf32, #tpu.memory_space<vmem>>, %arg5: memref<16x1xf32, #tpu.memory_space<vmem>>, %arg6: memref<16x144xf32, #tpu.memory_space<vmem>>, %arg7: memref<16x1xf32, #tpu.memory_space<vmem>>, %arg8: memref<2x24x144xf32, #tpu.memory_space<vmem>>, %arg9: memref<2x24x1xf32, #tpu.memory_space<vmem>>, %arg10: memref<3x16x9xf32, #tpu.memory_space<vmem>>, %arg11: memref<8x144xf32, #tpu.memory_space<vmem>>, %arg12: memref<8x1xf32, #tpu.memory_space<vmem>>, %arg13: memref<1x1x256xf32, #tpu.memory_space<vmem>>) attributes {dimension_semantics = [#tpu.dimension_semantics<parallel>], iteration_bounds = array<i64: 2>, scalar_prefetch = 0 : i64, scratch_operands = 0 : i64, tpu.core_type = #tpu.core_type<tc>, window_params = [{transform_indices = @transform_0, window_bounds = array<i64: 1, 24, 256>}, {transform_indices = @transform_1, window_bounds = array<i64: 1, 1, 256>}, {pipeline_mode = #tpu.pipeline_mode<synchronous>, transform_indices = @transform_2, window_bounds = array<i64: 9, 1, 256>}, {pipeline_mode = #tpu.pipeline_mode<synchronous>, transform_indices = @transform_3, window_bounds = array<i64: 16, 216>}, {pipeline_mode = #tpu.pipeline_mode<synchronous>, transform_indices = @transform_4, window_bounds = array<i64: 16, 1>}, {pipeline_mode = #tpu.pipeline_mode<synchronous>, transform_indices = @transform_5, window_bounds = array<i64: 16, 144>}, {pipeline_mode = #tpu.pipeline_mode<synchronous>, transform_indices = @transform_6, window_bounds = array<i64: 16, 1>}, {pipeline_mode = #tpu.pipeline_mode<synchronous>, transform_indices = @transform_7, window_bounds = array<i64: 2, 24, 144>}, {pipeline_mode = #tpu.pipeline_mode<synchronous>, transform_indices = @transform_8, window_bounds = array<i64: 2, 24, 1>}, {pipeline_mode = #tpu.pipeline_mode<synchronous>, transform_indices = @transform_9, window_bounds = array<i64: 3, 16, 9>}, {pipeline_mode = #tpu.pipeline_mode<synchronous>, transform_indices = @transform_10, window_bounds = array<i64: 8, 144>}, {pipeline_mode = #tpu.pipeline_mode<synchronous>, transform_indices = @transform_11, window_bounds = array<i64: 8, 1>}, {transform_indices = @transform_12, window_bounds = array<i64: 1, 1, 256>}]} {
    %c0 = arith.constant 0 : index
    %c0_0 = arith.constant 0 : index
    %c0_1 = arith.constant 0 : index
    %0 = vector.load %arg3[%c0, %c0_0, %c0_1] : memref<9x1x256xf32, #tpu.memory_space<vmem>>, vector<1x1x256xf32>
    %1 = vector.shape_cast %0 : vector<1x1x256xf32> to vector<1x256xf32>
    %c1 = arith.constant 1 : index
    %c0_2 = arith.constant 0 : index
    %c0_3 = arith.constant 0 : index
    %2 = vector.load %arg3[%c1, %c0_2, %c0_3] : memref<9x1x256xf32, #tpu.memory_space<vmem>>, vector<1x1x256xf32>
    %3 = vector.shape_cast %2 : vector<1x1x256xf32> to vector<1x256xf32>
    %c2 = arith.constant 2 : index
    %c0_4 = arith.constant 0 : index
    %c0_5 = arith.constant 0 : index
    %4 = vector.load %arg3[%c2, %c0_4, %c0_5] : memref<9x1x256xf32, #tpu.memory_space<vmem>>, vector<1x1x256xf32>
    %5 = vector.shape_cast %4 : vector<1x1x256xf32> to vector<1x256xf32>
    %c3 = arith.constant 3 : index
    %c0_6 = arith.constant 0 : index
    %c0_7 = arith.constant 0 : index
    %6 = vector.load %arg3[%c3, %c0_6, %c0_7] : memref<9x1x256xf32, #tpu.memory_space<vmem>>, vector<1x1x256xf32>
    %7 = vector.shape_cast %6 : vector<1x1x256xf32> to vector<1x256xf32>
    %c5 = arith.constant 5 : index
    %c0_8 = arith.constant 0 : index
    %c0_9 = arith.constant 0 : index
    %8 = vector.load %arg3[%c5, %c0_8, %c0_9] : memref<9x1x256xf32, #tpu.memory_space<vmem>>, vector<1x1x256xf32>
    %9 = vector.shape_cast %8 : vector<1x1x256xf32> to vector<1x256xf32>
    %c6 = arith.constant 6 : index
    %c0_10 = arith.constant 0 : index
    %c0_11 = arith.constant 0 : index
    %10 = vector.load %arg3[%c6, %c0_10, %c0_11] : memref<9x1x256xf32, #tpu.memory_space<vmem>>, vector<1x1x256xf32>
    %11 = vector.shape_cast %10 : vector<1x1x256xf32> to vector<1x256xf32>
    %c7 = arith.constant 7 : index
    %c0_12 = arith.constant 0 : index
    %c0_13 = arith.constant 0 : index
    %12 = vector.load %arg3[%c7, %c0_12, %c0_13] : memref<9x1x256xf32, #tpu.memory_space<vmem>>, vector<1x1x256xf32>
    %13 = vector.shape_cast %12 : vector<1x1x256xf32> to vector<1x256xf32>
    %c8 = arith.constant 8 : index
    %c0_14 = arith.constant 0 : index
    %c0_15 = arith.constant 0 : index
    %14 = vector.load %arg3[%c8, %c0_14, %c0_15] : memref<9x1x256xf32, #tpu.memory_space<vmem>>, vector<1x1x256xf32>
    %15 = vector.shape_cast %14 : vector<1x1x256xf32> to vector<1x256xf32>
    %c0_16 = arith.constant 0 : index
    %c0_17 = arith.constant 0 : index
    %c0_18 = arith.constant 0 : index
    %16 = vector.load %arg1[%c0_16, %c0_17, %c0_18] : memref<1x24x256xf32, #tpu.memory_space<vmem>>, vector<1x24x256xf32>
    %17 = vector.shape_cast %16 : vector<1x24x256xf32> to vector<24x256xf32>
    %c0_19 = arith.constant 0 : index
    %c0_20 = arith.constant 0 : index
    %c0_21 = arith.constant 0 : index
    %18 = vector.load %arg2[%c0_19, %c0_20, %c0_21] : memref<1x1x256xf32, #tpu.memory_space<vmem>>, vector<1x1x256xf32>
    %19 = vector.shape_cast %18 : vector<1x1x256xf32> to vector<1x256xf32>
    %cst = arith.constant 0.000000e+00 : f32
    %20 = vector.broadcast %cst : f32 to vector<1x256xf32>
    %21 = arith.subf %20, %19 : vector<1x256xf32>
    %22 = math.exp %21 : vector<1x256xf32>
    %cst_22 = arith.constant 1.000000e+00 : f32
    %23 = vector.broadcast %cst_22 : f32 to vector<1x256xf32>
    %24 = arith.addf %23, %22 : vector<1x256xf32>
    %cst_23 = arith.constant 1.000000e+00 : f32
    %25 = vector.broadcast %cst_23 : f32 to vector<1x256xf32>
    %26 = arith.divf %25, %24 : vector<1x256xf32>
    %cst_24 = arith.constant 1.000000e+00 : f32
    %27 = vector.broadcast %cst_24 : f32 to vector<1x256xf32>
    %28 = arith.subf %27, %26 : vector<1x256xf32>
    %c0_25 = arith.constant 0 : index
    %c0_26 = arith.constant 0 : index
    %29 = vector.load %arg4[%c0_25, %c0_26] : memref<16x216xf32, #tpu.memory_space<vmem>>, vector<16x216xf32>
    %c17_i32 = arith.constant 17 : i32
    %30 = tpu.dynamic_rotate %17 by %c17_i32 dim 1 : vector<24x256xf32>, i32 -> vector<24x256xf32>
    %31 = vector.broadcast %1 : vector<1x256xf32> to vector<24x256xf32>
    %32 = arith.mulf %30, %31 : vector<24x256xf32>
    %c16_i32 = arith.constant 16 : i32
    %33 = tpu.dynamic_rotate %17 by %c16_i32 dim 1 : vector<24x256xf32>, i32 -> vector<24x256xf32>
    %34 = vector.broadcast %3 : vector<1x256xf32> to vector<24x256xf32>
    %35 = arith.mulf %33, %34 : vector<24x256xf32>
    %c15_i32 = arith.constant 15 : i32
    %36 = tpu.dynamic_rotate %17 by %c15_i32 dim 1 : vector<24x256xf32>, i32 -> vector<24x256xf32>
    %37 = vector.broadcast %5 : vector<1x256xf32> to vector<24x256xf32>
    %38 = arith.mulf %36, %37 : vector<24x256xf32>
    %c1_i32 = arith.constant 1 : i32
    %39 = tpu.dynamic_rotate %17 by %c1_i32 dim 1 : vector<24x256xf32>, i32 -> vector<24x256xf32>
    %40 = vector.broadcast %7 : vector<1x256xf32> to vector<24x256xf32>
    %41 = arith.mulf %39, %40 : vector<24x256xf32>
    %c255_i32 = arith.constant 255 : i32
    %42 = tpu.dynamic_rotate %17 by %c255_i32 dim 1 : vector<24x256xf32>, i32 -> vector<24x256xf32>
    %43 = vector.broadcast %9 : vector<1x256xf32> to vector<24x256xf32>
    %44 = arith.mulf %42, %43 : vector<24x256xf32>
    %c241_i32 = arith.constant 241 : i32
    %45 = tpu.dynamic_rotate %17 by %c241_i32 dim 1 : vector<24x256xf32>, i32 -> vector<24x256xf32>
    %46 = vector.broadcast %11 : vector<1x256xf32> to vector<24x256xf32>
    %47 = arith.mulf %45, %46 : vector<24x256xf32>
    %c240_i32 = arith.constant 240 : i32
    %48 = tpu.dynamic_rotate %17 by %c240_i32 dim 1 : vector<24x256xf32>, i32 -> vector<24x256xf32>
    %49 = vector.broadcast %13 : vector<1x256xf32> to vector<24x256xf32>
    %50 = arith.mulf %48, %49 : vector<24x256xf32>
    %c239_i32 = arith.constant 239 : i32
    %51 = tpu.dynamic_rotate %17 by %c239_i32 dim 1 : vector<24x256xf32>, i32 -> vector<24x256xf32>
    %52 = vector.broadcast %15 : vector<1x256xf32> to vector<24x256xf32>
    %53 = arith.mulf %51, %52 : vector<24x256xf32>
    %54 = tpu.concatenate %32, %35, %38, %41, %17, %44, %47, %50, %53 in 0 : vector<24x256xf32>, vector<24x256xf32>, vector<24x256xf32>, vector<24x256xf32>, vector<24x256xf32>, vector<24x256xf32>, vector<24x256xf32>, vector<24x256xf32>, vector<24x256xf32> -> vector<216x256xf32>
    %cst_27 = arith.constant dense<0.000000e+00> : vector<16x256xf32>
    %55 = tpu.matmul %29, %54, %cst_27 {dimension_numbers = #tpu.dot_dimension_numbers<[1], [0], [0], [1], [0, 0, 1, 1], [], []>} : vector<16x216xf32>, vector<216x256xf32>, vector<16x256xf32> -> vector<16x256xf32>
    %c0_28 = arith.constant 0 : index
    %c0_29 = arith.constant 0 : index
    %56 = vector.load %arg5[%c0_28, %c0_29] : memref<16x1xf32, #tpu.memory_space<vmem>>, vector<16x1xf32>
    %57 = vector.broadcast %56 : vector<16x1xf32> to vector<16x256xf32>
    %58 = arith.addf %55, %57 : vector<16x256xf32>
    %c0_30 = arith.constant 0 : index
    %c0_31 = arith.constant 0 : index
    %59 = vector.load %arg6[%c0_30, %c0_31] : memref<16x144xf32, #tpu.memory_space<vmem>>, vector<16x144xf32>
    %c17_i32_32 = arith.constant 17 : i32
    %60 = tpu.dynamic_rotate %58 by %c17_i32_32 dim 1 : vector<16x256xf32>, i32 -> vector<16x256xf32>
    %61 = vector.broadcast %1 : vector<1x256xf32> to vector<16x256xf32>
    %62 = arith.mulf %60, %61 : vector<16x256xf32>
    %c16_i32_33 = arith.constant 16 : i32
    %63 = tpu.dynamic_rotate %58 by %c16_i32_33 dim 1 : vector<16x256xf32>, i32 -> vector<16x256xf32>
    %64 = vector.broadcast %3 : vector<1x256xf32> to vector<16x256xf32>
    %65 = arith.mulf %63, %64 : vector<16x256xf32>
    %c15_i32_34 = arith.constant 15 : i32
    %66 = tpu.dynamic_rotate %58 by %c15_i32_34 dim 1 : vector<16x256xf32>, i32 -> vector<16x256xf32>
    %67 = vector.broadcast %5 : vector<1x256xf32> to vector<16x256xf32>
    %68 = arith.mulf %66, %67 : vector<16x256xf32>
    %c1_i32_35 = arith.constant 1 : i32
    %69 = tpu.dynamic_rotate %58 by %c1_i32_35 dim 1 : vector<16x256xf32>, i32 -> vector<16x256xf32>
    %70 = vector.broadcast %7 : vector<1x256xf32> to vector<16x256xf32>
    %71 = arith.mulf %69, %70 : vector<16x256xf32>
    %c255_i32_36 = arith.constant 255 : i32
    %72 = tpu.dynamic_rotate %58 by %c255_i32_36 dim 1 : vector<16x256xf32>, i32 -> vector<16x256xf32>
    %73 = vector.broadcast %9 : vector<1x256xf32> to vector<16x256xf32>
    %74 = arith.mulf %72, %73 : vector<16x256xf32>
    %c241_i32_37 = arith.constant 241 : i32
    %75 = tpu.dynamic_rotate %58 by %c241_i32_37 dim 1 : vector<16x256xf32>, i32 -> vector<16x256xf32>
    %76 = vector.broadcast %11 : vector<1x256xf32> to vector<16x256xf32>
    %77 = arith.mulf %75, %76 : vector<16x256xf32>
    %c240_i32_38 = arith.constant 240 : i32
    %78 = tpu.dynamic_rotate %58 by %c240_i32_38 dim 1 : vector<16x256xf32>, i32 -> vector<16x256xf32>
    %79 = vector.broadcast %13 : vector<1x256xf32> to vector<16x256xf32>
    %80 = arith.mulf %78, %79 : vector<16x256xf32>
    %c239_i32_39 = arith.constant 239 : i32
    %81 = tpu.dynamic_rotate %58 by %c239_i32_39 dim 1 : vector<16x256xf32>, i32 -> vector<16x256xf32>
    %82 = vector.broadcast %15 : vector<1x256xf32> to vector<16x256xf32>
    %83 = arith.mulf %81, %82 : vector<16x256xf32>
    %84 = tpu.concatenate %62, %65, %68, %71, %58, %74, %77, %80, %83 in 0 : vector<16x256xf32>, vector<16x256xf32>, vector<16x256xf32>, vector<16x256xf32>, vector<16x256xf32>, vector<16x256xf32>, vector<16x256xf32>, vector<16x256xf32>, vector<16x256xf32> -> vector<144x256xf32>
    %cst_40 = arith.constant dense<0.000000e+00> : vector<16x256xf32>
    %85 = tpu.matmul %59, %84, %cst_40 {dimension_numbers = #tpu.dot_dimension_numbers<[1], [0], [0], [1], [0, 0, 1, 1], [], []>} : vector<16x144xf32>, vector<144x256xf32>, vector<16x256xf32> -> vector<16x256xf32>
    %c0_41 = arith.constant 0 : index
    %c0_42 = arith.constant 0 : index
    %86 = vector.load %arg7[%c0_41, %c0_42] : memref<16x1xf32, #tpu.memory_space<vmem>>, vector<16x1xf32>
    %87 = vector.broadcast %86 : vector<16x1xf32> to vector<16x256xf32>
    %88 = arith.addf %85, %87 : vector<16x256xf32>
    %c0_43 = arith.constant 0 : index
    %c0_44 = arith.constant 0 : index
    %c0_45 = arith.constant 0 : index
    %89 = vector.load %arg10[%c0_43, %c0_44, %c0_45] : memref<3x16x9xf32, #tpu.memory_space<vmem>>, vector<1x16x9xf32>
    %90 = vector.shape_cast %89 : vector<1x16x9xf32> to vector<16x9xf32>
    %91 = vector.extract_strided_slice %90 {offsets = [0, 0], sizes = [16, 1], strides = [1, 1]} : vector<16x9xf32> to vector<16x1xf32>
    %c17_i32_46 = arith.constant 17 : i32
    %92 = tpu.dynamic_rotate %28 by %c17_i32_46 dim 1 : vector<1x256xf32>, i32 -> vector<1x256xf32>
    %93 = arith.mulf %92, %1 : vector<1x256xf32>
    %94 = vector.broadcast %91 : vector<16x1xf32> to vector<16x256xf32>
    %95 = vector.broadcast %93 : vector<1x256xf32> to vector<16x256xf32>
    %96 = arith.mulf %94, %95 : vector<16x256xf32>
    %97 = vector.extract_strided_slice %90 {offsets = [0, 1], sizes = [16, 1], strides = [1, 1]} : vector<16x9xf32> to vector<16x1xf32>
    %c16_i32_47 = arith.constant 16 : i32
    %98 = tpu.dynamic_rotate %28 by %c16_i32_47 dim 1 : vector<1x256xf32>, i32 -> vector<1x256xf32>
    %99 = arith.mulf %98, %3 : vector<1x256xf32>
    %100 = vector.broadcast %97 : vector<16x1xf32> to vector<16x256xf32>
    %101 = vector.broadcast %99 : vector<1x256xf32> to vector<16x256xf32>
    %102 = arith.mulf %100, %101 : vector<16x256xf32>
    %103 = arith.addf %96, %102 : vector<16x256xf32>
    %104 = vector.extract_strided_slice %90 {offsets = [0, 2], sizes = [16, 1], strides = [1, 1]} : vector<16x9xf32> to vector<16x1xf32>
    %c15_i32_48 = arith.constant 15 : i32
    %105 = tpu.dynamic_rotate %28 by %c15_i32_48 dim 1 : vector<1x256xf32>, i32 -> vector<1x256xf32>
    %106 = arith.mulf %105, %5 : vector<1x256xf32>
    %107 = vector.broadcast %104 : vector<16x1xf32> to vector<16x256xf32>
    %108 = vector.broadcast %106 : vector<1x256xf32> to vector<16x256xf32>
    %109 = arith.mulf %107, %108 : vector<16x256xf32>
    %110 = arith.addf %103, %109 : vector<16x256xf32>
    %111 = vector.extract_strided_slice %90 {offsets = [0, 3], sizes = [16, 1], strides = [1, 1]} : vector<16x9xf32> to vector<16x1xf32>
    %c1_i32_49 = arith.constant 1 : i32
    %112 = tpu.dynamic_rotate %28 by %c1_i32_49 dim 1 : vector<1x256xf32>, i32 -> vector<1x256xf32>
    %113 = arith.mulf %112, %7 : vector<1x256xf32>
    %114 = vector.broadcast %111 : vector<16x1xf32> to vector<16x256xf32>
    %115 = vector.broadcast %113 : vector<1x256xf32> to vector<16x256xf32>
    %116 = arith.mulf %114, %115 : vector<16x256xf32>
    %117 = arith.addf %110, %116 : vector<16x256xf32>
    %118 = vector.extract_strided_slice %90 {offsets = [0, 4], sizes = [16, 1], strides = [1, 1]} : vector<16x9xf32> to vector<16x1xf32>
    %119 = vector.broadcast %118 : vector<16x1xf32> to vector<16x256xf32>
    %120 = vector.broadcast %28 : vector<1x256xf32> to vector<16x256xf32>
    %121 = arith.mulf %119, %120 : vector<16x256xf32>
    %122 = arith.addf %117, %121 : vector<16x256xf32>
    %123 = vector.extract_strided_slice %90 {offsets = [0, 5], sizes = [16, 1], strides = [1, 1]} : vector<16x9xf32> to vector<16x1xf32>
    %c255_i32_50 = arith.constant 255 : i32
    %124 = tpu.dynamic_rotate %28 by %c255_i32_50 dim 1 : vector<1x256xf32>, i32 -> vector<1x256xf32>
    %125 = arith.mulf %124, %9 : vector<1x256xf32>
    %126 = vector.broadcast %123 : vector<16x1xf32> to vector<16x256xf32>
    %127 = vector.broadcast %125 : vector<1x256xf32> to vector<16x256xf32>
    %128 = arith.mulf %126, %127 : vector<16x256xf32>
    %129 = arith.addf %122, %128 : vector<16x256xf32>
    %130 = vector.extract_strided_slice %90 {offsets = [0, 6], sizes = [16, 1], strides = [1, 1]} : vector<16x9xf32> to vector<16x1xf32>
    %c241_i32_51 = arith.constant 241 : i32
    %131 = tpu.dynamic_rotate %28 by %c241_i32_51 dim 1 : vector<1x256xf32>, i32 -> vector<1x256xf32>
    %132 = arith.mulf %131, %11 : vector<1x256xf32>
    %133 = vector.broadcast %130 : vector<16x1xf32> to vector<16x256xf32>
    %134 = vector.broadcast %132 : vector<1x256xf32> to vector<16x256xf32>
    %135 = arith.mulf %133, %134 : vector<16x256xf32>
    %136 = arith.addf %129, %135 : vector<16x256xf32>
    %137 = vector.extract_strided_slice %90 {offsets = [0, 7], sizes = [16, 1], strides = [1, 1]} : vector<16x9xf32> to vector<16x1xf32>
    %c240_i32_52 = arith.constant 240 : i32
    %138 = tpu.dynamic_rotate %28 by %c240_i32_52 dim 1 : vector<1x256xf32>, i32 -> vector<1x256xf32>
    %139 = arith.mulf %138, %13 : vector<1x256xf32>
    %140 = vector.broadcast %137 : vector<16x1xf32> to vector<16x256xf32>
    %141 = vector.broadcast %139 : vector<1x256xf32> to vector<16x256xf32>
    %142 = arith.mulf %140, %141 : vector<16x256xf32>
    %143 = arith.addf %136, %142 : vector<16x256xf32>
    %144 = vector.extract_strided_slice %90 {offsets = [0, 8], sizes = [16, 1], strides = [1, 1]} : vector<16x9xf32> to vector<16x1xf32>
    %c239_i32_53 = arith.constant 239 : i32
    %145 = tpu.dynamic_rotate %28 by %c239_i32_53 dim 1 : vector<1x256xf32>, i32 -> vector<1x256xf32>
    %146 = arith.mulf %145, %15 : vector<1x256xf32>
    %147 = vector.broadcast %144 : vector<16x1xf32> to vector<16x256xf32>
    %148 = vector.broadcast %146 : vector<1x256xf32> to vector<16x256xf32>
    %149 = arith.mulf %147, %148 : vector<16x256xf32>
    %150 = arith.addf %143, %149 : vector<16x256xf32>
    %151 = arith.addf %88, %150 : vector<16x256xf32>
    %cst_54 = arith.constant 0.000000e+00 : f32
    %152 = vector.broadcast %cst_54 : f32 to vector<16x256xf32>
    %153 = arith.maximumf %151, %152 : vector<16x256xf32>
    %154 = arith.addf %58, %153 : vector<16x256xf32>
    %c17_i32_55 = arith.constant 17 : i32
    %155 = tpu.dynamic_rotate %154 by %c17_i32_55 dim 1 : vector<16x256xf32>, i32 -> vector<16x256xf32>
    %156 = vector.broadcast %1 : vector<1x256xf32> to vector<16x256xf32>
    %157 = arith.mulf %155, %156 : vector<16x256xf32>
    %c16_i32_56 = arith.constant 16 : i32
    %158 = tpu.dynamic_rotate %154 by %c16_i32_56 dim 1 : vector<16x256xf32>, i32 -> vector<16x256xf32>
    %159 = vector.broadcast %3 : vector<1x256xf32> to vector<16x256xf32>
    %160 = arith.mulf %158, %159 : vector<16x256xf32>
    %c15_i32_57 = arith.constant 15 : i32
    %161 = tpu.dynamic_rotate %154 by %c15_i32_57 dim 1 : vector<16x256xf32>, i32 -> vector<16x256xf32>
    %162 = vector.broadcast %5 : vector<1x256xf32> to vector<16x256xf32>
    %163 = arith.mulf %161, %162 : vector<16x256xf32>
    %c1_i32_58 = arith.constant 1 : i32
    %164 = tpu.dynamic_rotate %154 by %c1_i32_58 dim 1 : vector<16x256xf32>, i32 -> vector<16x256xf32>
    %165 = vector.broadcast %7 : vector<1x256xf32> to vector<16x256xf32>
    %166 = arith.mulf %164, %165 : vector<16x256xf32>
    %c255_i32_59 = arith.constant 255 : i32
    %167 = tpu.dynamic_rotate %154 by %c255_i32_59 dim 1 : vector<16x256xf32>, i32 -> vector<16x256xf32>
    %168 = vector.broadcast %9 : vector<1x256xf32> to vector<16x256xf32>
    %169 = arith.mulf %167, %168 : vector<16x256xf32>
    %c241_i32_60 = arith.constant 241 : i32
    %170 = tpu.dynamic_rotate %154 by %c241_i32_60 dim 1 : vector<16x256xf32>, i32 -> vector<16x256xf32>
    %171 = vector.broadcast %11 : vector<1x256xf32> to vector<16x256xf32>
    %172 = arith.mulf %170, %171 : vector<16x256xf32>
    %c240_i32_61 = arith.constant 240 : i32
    %173 = tpu.dynamic_rotate %154 by %c240_i32_61 dim 1 : vector<16x256xf32>, i32 -> vector<16x256xf32>
    %174 = vector.broadcast %13 : vector<1x256xf32> to vector<16x256xf32>
    %175 = arith.mulf %173, %174 : vector<16x256xf32>
    %c239_i32_62 = arith.constant 239 : i32
    %176 = tpu.dynamic_rotate %154 by %c239_i32_62 dim 1 : vector<16x256xf32>, i32 -> vector<16x256xf32>
    %177 = vector.broadcast %15 : vector<1x256xf32> to vector<16x256xf32>
    %178 = arith.mulf %176, %177 : vector<16x256xf32>
    %179 = tpu.concatenate %157, %160, %163, %166, %154, %169, %172, %175, %178 in 0 : vector<16x256xf32>, vector<16x256xf32>, vector<16x256xf32>, vector<16x256xf32>, vector<16x256xf32>, vector<16x256xf32>, vector<16x256xf32>, vector<16x256xf32>, vector<16x256xf32> -> vector<144x256xf32>
    %c0_63 = arith.constant 0 : index
    %c0_64 = arith.constant 0 : index
    %c0_65 = arith.constant 0 : index
    %180 = vector.load %arg8[%c0_63, %c0_64, %c0_65] : memref<2x24x144xf32, #tpu.memory_space<vmem>>, vector<1x24x144xf32>
    %181 = vector.shape_cast %180 : vector<1x24x144xf32> to vector<24x144xf32>
    %cst_66 = arith.constant dense<0.000000e+00> : vector<24x256xf32>
    %182 = tpu.matmul %181, %179, %cst_66 {dimension_numbers = #tpu.dot_dimension_numbers<[1], [0], [0], [1], [0, 0, 1, 1], [], []>} : vector<24x144xf32>, vector<144x256xf32>, vector<24x256xf32> -> vector<24x256xf32>
    %c0_67 = arith.constant 0 : index
    %c0_68 = arith.constant 0 : index
    %c0_69 = arith.constant 0 : index
    %183 = vector.load %arg9[%c0_67, %c0_68, %c0_69] : memref<2x24x1xf32, #tpu.memory_space<vmem>>, vector<1x24x1xf32>
    %184 = vector.shape_cast %183 : vector<1x24x1xf32> to vector<24x1xf32>
    %185 = vector.broadcast %184 : vector<24x1xf32> to vector<24x256xf32>
    %186 = arith.addf %182, %185 : vector<24x256xf32>
    %187 = vector.extract_strided_slice %186 {offsets = [16, 0], sizes = [1, 256], strides = [1, 1]} : vector<24x256xf32> to vector<1x256xf32>
    %188 = arith.addf %28, %187 : vector<1x256xf32>
    %189 = vector.extract_strided_slice %186 {offsets = [0, 0], sizes = [16, 256], strides = [1, 1]} : vector<24x256xf32> to vector<16x256xf32>
    %c1_70 = arith.constant 1 : index
    %c0_71 = arith.constant 0 : index
    %c0_72 = arith.constant 0 : index
    %190 = vector.load %arg10[%c1_70, %c0_71, %c0_72] : memref<3x16x9xf32, #tpu.memory_space<vmem>>, vector<1x16x9xf32>
    %191 = vector.shape_cast %190 : vector<1x16x9xf32> to vector<16x9xf32>
    %192 = vector.extract_strided_slice %191 {offsets = [0, 0], sizes = [16, 1], strides = [1, 1]} : vector<16x9xf32> to vector<16x1xf32>
    %c17_i32_73 = arith.constant 17 : i32
    %193 = tpu.dynamic_rotate %188 by %c17_i32_73 dim 1 : vector<1x256xf32>, i32 -> vector<1x256xf32>
    %194 = arith.mulf %193, %1 : vector<1x256xf32>
    %195 = vector.broadcast %192 : vector<16x1xf32> to vector<16x256xf32>
    %196 = vector.broadcast %194 : vector<1x256xf32> to vector<16x256xf32>
    %197 = arith.mulf %195, %196 : vector<16x256xf32>
    %198 = vector.extract_strided_slice %191 {offsets = [0, 1], sizes = [16, 1], strides = [1, 1]} : vector<16x9xf32> to vector<16x1xf32>
    %c16_i32_74 = arith.constant 16 : i32
    %199 = tpu.dynamic_rotate %188 by %c16_i32_74 dim 1 : vector<1x256xf32>, i32 -> vector<1x256xf32>
    %200 = arith.mulf %199, %3 : vector<1x256xf32>
    %201 = vector.broadcast %198 : vector<16x1xf32> to vector<16x256xf32>
    %202 = vector.broadcast %200 : vector<1x256xf32> to vector<16x256xf32>
    %203 = arith.mulf %201, %202 : vector<16x256xf32>
    %204 = arith.addf %197, %203 : vector<16x256xf32>
    %205 = vector.extract_strided_slice %191 {offsets = [0, 2], sizes = [16, 1], strides = [1, 1]} : vector<16x9xf32> to vector<16x1xf32>
    %c15_i32_75 = arith.constant 15 : i32
    %206 = tpu.dynamic_rotate %188 by %c15_i32_75 dim 1 : vector<1x256xf32>, i32 -> vector<1x256xf32>
    %207 = arith.mulf %206, %5 : vector<1x256xf32>
    %208 = vector.broadcast %205 : vector<16x1xf32> to vector<16x256xf32>
    %209 = vector.broadcast %207 : vector<1x256xf32> to vector<16x256xf32>
    %210 = arith.mulf %208, %209 : vector<16x256xf32>
    %211 = arith.addf %204, %210 : vector<16x256xf32>
    %212 = vector.extract_strided_slice %191 {offsets = [0, 3], sizes = [16, 1], strides = [1, 1]} : vector<16x9xf32> to vector<16x1xf32>
    %c1_i32_76 = arith.constant 1 : i32
    %213 = tpu.dynamic_rotate %188 by %c1_i32_76 dim 1 : vector<1x256xf32>, i32 -> vector<1x256xf32>
    %214 = arith.mulf %213, %7 : vector<1x256xf32>
    %215 = vector.broadcast %212 : vector<16x1xf32> to vector<16x256xf32>
    %216 = vector.broadcast %214 : vector<1x256xf32> to vector<16x256xf32>
    %217 = arith.mulf %215, %216 : vector<16x256xf32>
    %218 = arith.addf %211, %217 : vector<16x256xf32>
    %219 = vector.extract_strided_slice %191 {offsets = [0, 4], sizes = [16, 1], strides = [1, 1]} : vector<16x9xf32> to vector<16x1xf32>
    %220 = vector.broadcast %219 : vector<16x1xf32> to vector<16x256xf32>
    %221 = vector.broadcast %188 : vector<1x256xf32> to vector<16x256xf32>
    %222 = arith.mulf %220, %221 : vector<16x256xf32>
    %223 = arith.addf %218, %222 : vector<16x256xf32>
    %224 = vector.extract_strided_slice %191 {offsets = [0, 5], sizes = [16, 1], strides = [1, 1]} : vector<16x9xf32> to vector<16x1xf32>
    %c255_i32_77 = arith.constant 255 : i32
    %225 = tpu.dynamic_rotate %188 by %c255_i32_77 dim 1 : vector<1x256xf32>, i32 -> vector<1x256xf32>
    %226 = arith.mulf %225, %9 : vector<1x256xf32>
    %227 = vector.broadcast %224 : vector<16x1xf32> to vector<16x256xf32>
    %228 = vector.broadcast %226 : vector<1x256xf32> to vector<16x256xf32>
    %229 = arith.mulf %227, %228 : vector<16x256xf32>
    %230 = arith.addf %223, %229 : vector<16x256xf32>
    %231 = vector.extract_strided_slice %191 {offsets = [0, 6], sizes = [16, 1], strides = [1, 1]} : vector<16x9xf32> to vector<16x1xf32>
    %c241_i32_78 = arith.constant 241 : i32
    %232 = tpu.dynamic_rotate %188 by %c241_i32_78 dim 1 : vector<1x256xf32>, i32 -> vector<1x256xf32>
    %233 = arith.mulf %232, %11 : vector<1x256xf32>
    %234 = vector.broadcast %231 : vector<16x1xf32> to vector<16x256xf32>
    %235 = vector.broadcast %233 : vector<1x256xf32> to vector<16x256xf32>
    %236 = arith.mulf %234, %235 : vector<16x256xf32>
    %237 = arith.addf %230, %236 : vector<16x256xf32>
    %238 = vector.extract_strided_slice %191 {offsets = [0, 7], sizes = [16, 1], strides = [1, 1]} : vector<16x9xf32> to vector<16x1xf32>
    %c240_i32_79 = arith.constant 240 : i32
    %239 = tpu.dynamic_rotate %188 by %c240_i32_79 dim 1 : vector<1x256xf32>, i32 -> vector<1x256xf32>
    %240 = arith.mulf %239, %13 : vector<1x256xf32>
    %241 = vector.broadcast %238 : vector<16x1xf32> to vector<16x256xf32>
    %242 = vector.broadcast %240 : vector<1x256xf32> to vector<16x256xf32>
    %243 = arith.mulf %241, %242 : vector<16x256xf32>
    %244 = arith.addf %237, %243 : vector<16x256xf32>
    %245 = vector.extract_strided_slice %191 {offsets = [0, 8], sizes = [16, 1], strides = [1, 1]} : vector<16x9xf32> to vector<16x1xf32>
    %c239_i32_80 = arith.constant 239 : i32
    %246 = tpu.dynamic_rotate %188 by %c239_i32_80 dim 1 : vector<1x256xf32>, i32 -> vector<1x256xf32>
    %247 = arith.mulf %246, %15 : vector<1x256xf32>
    %248 = vector.broadcast %245 : vector<16x1xf32> to vector<16x256xf32>
    %249 = vector.broadcast %247 : vector<1x256xf32> to vector<16x256xf32>
    %250 = arith.mulf %248, %249 : vector<16x256xf32>
    %251 = arith.addf %244, %250 : vector<16x256xf32>
    %252 = arith.addf %189, %251 : vector<16x256xf32>
    %cst_81 = arith.constant 0.000000e+00 : f32
    %253 = vector.broadcast %cst_81 : f32 to vector<16x256xf32>
    %254 = arith.maximumf %252, %253 : vector<16x256xf32>
    %255 = arith.addf %154, %254 : vector<16x256xf32>
    %c17_i32_82 = arith.constant 17 : i32
    %256 = tpu.dynamic_rotate %255 by %c17_i32_82 dim 1 : vector<16x256xf32>, i32 -> vector<16x256xf32>
    %257 = vector.broadcast %1 : vector<1x256xf32> to vector<16x256xf32>
    %258 = arith.mulf %256, %257 : vector<16x256xf32>
    %c16_i32_83 = arith.constant 16 : i32
    %259 = tpu.dynamic_rotate %255 by %c16_i32_83 dim 1 : vector<16x256xf32>, i32 -> vector<16x256xf32>
    %260 = vector.broadcast %3 : vector<1x256xf32> to vector<16x256xf32>
    %261 = arith.mulf %259, %260 : vector<16x256xf32>
    %c15_i32_84 = arith.constant 15 : i32
    %262 = tpu.dynamic_rotate %255 by %c15_i32_84 dim 1 : vector<16x256xf32>, i32 -> vector<16x256xf32>
    %263 = vector.broadcast %5 : vector<1x256xf32> to vector<16x256xf32>
    %264 = arith.mulf %262, %263 : vector<16x256xf32>
    %c1_i32_85 = arith.constant 1 : i32
    %265 = tpu.dynamic_rotate %255 by %c1_i32_85 dim 1 : vector<16x256xf32>, i32 -> vector<16x256xf32>
    %266 = vector.broadcast %7 : vector<1x256xf32> to vector<16x256xf32>
    %267 = arith.mulf %265, %266 : vector<16x256xf32>
    %c255_i32_86 = arith.constant 255 : i32
    %268 = tpu.dynamic_rotate %255 by %c255_i32_86 dim 1 : vector<16x256xf32>, i32 -> vector<16x256xf32>
    %269 = vector.broadcast %9 : vector<1x256xf32> to vector<16x256xf32>
    %270 = arith.mulf %268, %269 : vector<16x256xf32>
    %c241_i32_87 = arith.constant 241 : i32
    %271 = tpu.dynamic_rotate %255 by %c241_i32_87 dim 1 : vector<16x256xf32>, i32 -> vector<16x256xf32>
    %272 = vector.broadcast %11 : vector<1x256xf32> to vector<16x256xf32>
    %273 = arith.mulf %271, %272 : vector<16x256xf32>
    %c240_i32_88 = arith.constant 240 : i32
    %274 = tpu.dynamic_rotate %255 by %c240_i32_88 dim 1 : vector<16x256xf32>, i32 -> vector<16x256xf32>
    %275 = vector.broadcast %13 : vector<1x256xf32> to vector<16x256xf32>
    %276 = arith.mulf %274, %275 : vector<16x256xf32>
    %c239_i32_89 = arith.constant 239 : i32
    %277 = tpu.dynamic_rotate %255 by %c239_i32_89 dim 1 : vector<16x256xf32>, i32 -> vector<16x256xf32>
    %278 = vector.broadcast %15 : vector<1x256xf32> to vector<16x256xf32>
    %279 = arith.mulf %277, %278 : vector<16x256xf32>
    %280 = tpu.concatenate %258, %261, %264, %267, %255, %270, %273, %276, %279 in 0 : vector<16x256xf32>, vector<16x256xf32>, vector<16x256xf32>, vector<16x256xf32>, vector<16x256xf32>, vector<16x256xf32>, vector<16x256xf32>, vector<16x256xf32>, vector<16x256xf32> -> vector<144x256xf32>
    %c1_90 = arith.constant 1 : index
    %c0_91 = arith.constant 0 : index
    %c0_92 = arith.constant 0 : index
    %281 = vector.load %arg8[%c1_90, %c0_91, %c0_92] : memref<2x24x144xf32, #tpu.memory_space<vmem>>, vector<1x24x144xf32>
    %282 = vector.shape_cast %281 : vector<1x24x144xf32> to vector<24x144xf32>
    %cst_93 = arith.constant dense<0.000000e+00> : vector<24x256xf32>
    %283 = tpu.matmul %282, %280, %cst_93 {dimension_numbers = #tpu.dot_dimension_numbers<[1], [0], [0], [1], [0, 0, 1, 1], [], []>} : vector<24x144xf32>, vector<144x256xf32>, vector<24x256xf32> -> vector<24x256xf32>
    %c1_94 = arith.constant 1 : index
    %c0_95 = arith.constant 0 : index
    %c0_96 = arith.constant 0 : index
    %284 = vector.load %arg9[%c1_94, %c0_95, %c0_96] : memref<2x24x1xf32, #tpu.memory_space<vmem>>, vector<1x24x1xf32>
    %285 = vector.shape_cast %284 : vector<1x24x1xf32> to vector<24x1xf32>
    %286 = vector.broadcast %285 : vector<24x1xf32> to vector<24x256xf32>
    %287 = arith.addf %283, %286 : vector<24x256xf32>
    %288 = vector.extract_strided_slice %287 {offsets = [16, 0], sizes = [1, 256], strides = [1, 1]} : vector<24x256xf32> to vector<1x256xf32>
    %289 = arith.addf %188, %288 : vector<1x256xf32>
    %290 = vector.extract_strided_slice %287 {offsets = [0, 0], sizes = [16, 256], strides = [1, 1]} : vector<24x256xf32> to vector<16x256xf32>
    %c2_97 = arith.constant 2 : index
    %c0_98 = arith.constant 0 : index
    %c0_99 = arith.constant 0 : index
    %291 = vector.load %arg10[%c2_97, %c0_98, %c0_99] : memref<3x16x9xf32, #tpu.memory_space<vmem>>, vector<1x16x9xf32>
    %292 = vector.shape_cast %291 : vector<1x16x9xf32> to vector<16x9xf32>
    %293 = vector.extract_strided_slice %292 {offsets = [0, 0], sizes = [16, 1], strides = [1, 1]} : vector<16x9xf32> to vector<16x1xf32>
    %c17_i32_100 = arith.constant 17 : i32
    %294 = tpu.dynamic_rotate %289 by %c17_i32_100 dim 1 : vector<1x256xf32>, i32 -> vector<1x256xf32>
    %295 = arith.mulf %294, %1 : vector<1x256xf32>
    %296 = vector.broadcast %293 : vector<16x1xf32> to vector<16x256xf32>
    %297 = vector.broadcast %295 : vector<1x256xf32> to vector<16x256xf32>
    %298 = arith.mulf %296, %297 : vector<16x256xf32>
    %299 = vector.extract_strided_slice %292 {offsets = [0, 1], sizes = [16, 1], strides = [1, 1]} : vector<16x9xf32> to vector<16x1xf32>
    %c16_i32_101 = arith.constant 16 : i32
    %300 = tpu.dynamic_rotate %289 by %c16_i32_101 dim 1 : vector<1x256xf32>, i32 -> vector<1x256xf32>
    %301 = arith.mulf %300, %3 : vector<1x256xf32>
    %302 = vector.broadcast %299 : vector<16x1xf32> to vector<16x256xf32>
    %303 = vector.broadcast %301 : vector<1x256xf32> to vector<16x256xf32>
    %304 = arith.mulf %302, %303 : vector<16x256xf32>
    %305 = arith.addf %298, %304 : vector<16x256xf32>
    %306 = vector.extract_strided_slice %292 {offsets = [0, 2], sizes = [16, 1], strides = [1, 1]} : vector<16x9xf32> to vector<16x1xf32>
    %c15_i32_102 = arith.constant 15 : i32
    %307 = tpu.dynamic_rotate %289 by %c15_i32_102 dim 1 : vector<1x256xf32>, i32 -> vector<1x256xf32>
    %308 = arith.mulf %307, %5 : vector<1x256xf32>
    %309 = vector.broadcast %306 : vector<16x1xf32> to vector<16x256xf32>
    %310 = vector.broadcast %308 : vector<1x256xf32> to vector<16x256xf32>
    %311 = arith.mulf %309, %310 : vector<16x256xf32>
    %312 = arith.addf %305, %311 : vector<16x256xf32>
    %313 = vector.extract_strided_slice %292 {offsets = [0, 3], sizes = [16, 1], strides = [1, 1]} : vector<16x9xf32> to vector<16x1xf32>
    %c1_i32_103 = arith.constant 1 : i32
    %314 = tpu.dynamic_rotate %289 by %c1_i32_103 dim 1 : vector<1x256xf32>, i32 -> vector<1x256xf32>
    %315 = arith.mulf %314, %7 : vector<1x256xf32>
    %316 = vector.broadcast %313 : vector<16x1xf32> to vector<16x256xf32>
    %317 = vector.broadcast %315 : vector<1x256xf32> to vector<16x256xf32>
    %318 = arith.mulf %316, %317 : vector<16x256xf32>
    %319 = arith.addf %312, %318 : vector<16x256xf32>
    %320 = vector.extract_strided_slice %292 {offsets = [0, 4], sizes = [16, 1], strides = [1, 1]} : vector<16x9xf32> to vector<16x1xf32>
    %321 = vector.broadcast %320 : vector<16x1xf32> to vector<16x256xf32>
    %322 = vector.broadcast %289 : vector<1x256xf32> to vector<16x256xf32>
    %323 = arith.mulf %321, %322 : vector<16x256xf32>
    %324 = arith.addf %319, %323 : vector<16x256xf32>
    %325 = vector.extract_strided_slice %292 {offsets = [0, 5], sizes = [16, 1], strides = [1, 1]} : vector<16x9xf32> to vector<16x1xf32>
    %c255_i32_104 = arith.constant 255 : i32
    %326 = tpu.dynamic_rotate %289 by %c255_i32_104 dim 1 : vector<1x256xf32>, i32 -> vector<1x256xf32>
    %327 = arith.mulf %326, %9 : vector<1x256xf32>
    %328 = vector.broadcast %325 : vector<16x1xf32> to vector<16x256xf32>
    %329 = vector.broadcast %327 : vector<1x256xf32> to vector<16x256xf32>
    %330 = arith.mulf %328, %329 : vector<16x256xf32>
    %331 = arith.addf %324, %330 : vector<16x256xf32>
    %332 = vector.extract_strided_slice %292 {offsets = [0, 6], sizes = [16, 1], strides = [1, 1]} : vector<16x9xf32> to vector<16x1xf32>
    %c241_i32_105 = arith.constant 241 : i32
    %333 = tpu.dynamic_rotate %289 by %c241_i32_105 dim 1 : vector<1x256xf32>, i32 -> vector<1x256xf32>
    %334 = arith.mulf %333, %11 : vector<1x256xf32>
    %335 = vector.broadcast %332 : vector<16x1xf32> to vector<16x256xf32>
    %336 = vector.broadcast %334 : vector<1x256xf32> to vector<16x256xf32>
    %337 = arith.mulf %335, %336 : vector<16x256xf32>
    %338 = arith.addf %331, %337 : vector<16x256xf32>
    %339 = vector.extract_strided_slice %292 {offsets = [0, 7], sizes = [16, 1], strides = [1, 1]} : vector<16x9xf32> to vector<16x1xf32>
    %c240_i32_106 = arith.constant 240 : i32
    %340 = tpu.dynamic_rotate %289 by %c240_i32_106 dim 1 : vector<1x256xf32>, i32 -> vector<1x256xf32>
    %341 = arith.mulf %340, %13 : vector<1x256xf32>
    %342 = vector.broadcast %339 : vector<16x1xf32> to vector<16x256xf32>
    %343 = vector.broadcast %341 : vector<1x256xf32> to vector<16x256xf32>
    %344 = arith.mulf %342, %343 : vector<16x256xf32>
    %345 = arith.addf %338, %344 : vector<16x256xf32>
    %346 = vector.extract_strided_slice %292 {offsets = [0, 8], sizes = [16, 1], strides = [1, 1]} : vector<16x9xf32> to vector<16x1xf32>
    %c239_i32_107 = arith.constant 239 : i32
    %347 = tpu.dynamic_rotate %289 by %c239_i32_107 dim 1 : vector<1x256xf32>, i32 -> vector<1x256xf32>
    %348 = arith.mulf %347, %15 : vector<1x256xf32>
    %349 = vector.broadcast %346 : vector<16x1xf32> to vector<16x256xf32>
    %350 = vector.broadcast %348 : vector<1x256xf32> to vector<16x256xf32>
    %351 = arith.mulf %349, %350 : vector<16x256xf32>
    %352 = arith.addf %345, %351 : vector<16x256xf32>
    %353 = arith.addf %290, %352 : vector<16x256xf32>
    %cst_108 = arith.constant 0.000000e+00 : f32
    %354 = vector.broadcast %cst_108 : f32 to vector<16x256xf32>
    %355 = arith.maximumf %353, %354 : vector<16x256xf32>
    %356 = arith.addf %255, %355 : vector<16x256xf32>
    %c0_109 = arith.constant 0 : index
    %c0_110 = arith.constant 0 : index
    %357 = vector.load %arg11[%c0_109, %c0_110] : memref<8x144xf32, #tpu.memory_space<vmem>>, vector<8x144xf32>
    %c17_i32_111 = arith.constant 17 : i32
    %358 = tpu.dynamic_rotate %356 by %c17_i32_111 dim 1 : vector<16x256xf32>, i32 -> vector<16x256xf32>
    %359 = vector.broadcast %1 : vector<1x256xf32> to vector<16x256xf32>
    %360 = arith.mulf %358, %359 : vector<16x256xf32>
    %c16_i32_112 = arith.constant 16 : i32
    %361 = tpu.dynamic_rotate %356 by %c16_i32_112 dim 1 : vector<16x256xf32>, i32 -> vector<16x256xf32>
    %362 = vector.broadcast %3 : vector<1x256xf32> to vector<16x256xf32>
    %363 = arith.mulf %361, %362 : vector<16x256xf32>
    %c15_i32_113 = arith.constant 15 : i32
    %364 = tpu.dynamic_rotate %356 by %c15_i32_113 dim 1 : vector<16x256xf32>, i32 -> vector<16x256xf32>
    %365 = vector.broadcast %5 : vector<1x256xf32> to vector<16x256xf32>
    %366 = arith.mulf %364, %365 : vector<16x256xf32>
    %c1_i32_114 = arith.constant 1 : i32
    %367 = tpu.dynamic_rotate %356 by %c1_i32_114 dim 1 : vector<16x256xf32>, i32 -> vector<16x256xf32>
    %368 = vector.broadcast %7 : vector<1x256xf32> to vector<16x256xf32>
    %369 = arith.mulf %367, %368 : vector<16x256xf32>
    %c255_i32_115 = arith.constant 255 : i32
    %370 = tpu.dynamic_rotate %356 by %c255_i32_115 dim 1 : vector<16x256xf32>, i32 -> vector<16x256xf32>
    %371 = vector.broadcast %9 : vector<1x256xf32> to vector<16x256xf32>
    %372 = arith.mulf %370, %371 : vector<16x256xf32>
    %c241_i32_116 = arith.constant 241 : i32
    %373 = tpu.dynamic_rotate %356 by %c241_i32_116 dim 1 : vector<16x256xf32>, i32 -> vector<16x256xf32>
    %374 = vector.broadcast %11 : vector<1x256xf32> to vector<16x256xf32>
    %375 = arith.mulf %373, %374 : vector<16x256xf32>
    %c240_i32_117 = arith.constant 240 : i32
    %376 = tpu.dynamic_rotate %356 by %c240_i32_117 dim 1 : vector<16x256xf32>, i32 -> vector<16x256xf32>
    %377 = vector.broadcast %13 : vector<1x256xf32> to vector<16x256xf32>
    %378 = arith.mulf %376, %377 : vector<16x256xf32>
    %c239_i32_118 = arith.constant 239 : i32
    %379 = tpu.dynamic_rotate %356 by %c239_i32_118 dim 1 : vector<16x256xf32>, i32 -> vector<16x256xf32>
    %380 = vector.broadcast %15 : vector<1x256xf32> to vector<16x256xf32>
    %381 = arith.mulf %379, %380 : vector<16x256xf32>
    %382 = tpu.concatenate %360, %363, %366, %369, %356, %372, %375, %378, %381 in 0 : vector<16x256xf32>, vector<16x256xf32>, vector<16x256xf32>, vector<16x256xf32>, vector<16x256xf32>, vector<16x256xf32>, vector<16x256xf32>, vector<16x256xf32>, vector<16x256xf32> -> vector<144x256xf32>
    %cst_119 = arith.constant dense<0.000000e+00> : vector<8x256xf32>
    %383 = tpu.matmul %357, %382, %cst_119 {dimension_numbers = #tpu.dot_dimension_numbers<[1], [0], [0], [1], [0, 0, 1, 1], [], []>} : vector<8x144xf32>, vector<144x256xf32>, vector<8x256xf32> -> vector<8x256xf32>
    %c0_120 = arith.constant 0 : index
    %c0_121 = arith.constant 0 : index
    %384 = vector.load %arg12[%c0_120, %c0_121] : memref<8x1xf32, #tpu.memory_space<vmem>>, vector<8x1xf32>
    %385 = vector.broadcast %384 : vector<8x1xf32> to vector<8x256xf32>
    %386 = arith.addf %383, %385 : vector<8x256xf32>
    %387 = vector.extract_strided_slice %386 {offsets = [0, 0], sizes = [1, 256], strides = [1, 1]} : vector<8x256xf32> to vector<1x256xf32>
    %388 = arith.addf %289, %387 : vector<1x256xf32>
    %c0_122 = arith.constant 0 : index
    %c0_123 = arith.constant 0 : index
    %c0_124 = arith.constant 0 : index
    %389 = vector.load %arg13[%c0_122, %c0_123, %c0_124] : memref<1x1x256xf32, #tpu.memory_space<vmem>>, vector<1x1x256xf32>
    %390 = vector.shape_cast %389 : vector<1x1x256xf32> to vector<1x256xf32>
    %391 = vector.shape_cast %388 : vector<1x256xf32> to vector<1x1x256xf32>
    tpu.vector_store %arg13[%c0_122, %c0_123, %c0_124], %391 {strides = array<i32>} : memref<1x1x256xf32, #tpu.memory_space<vmem>>, vector<1x1x256xf32>,
    return
  }
  func.func @transform_0(%arg0: i32) -> (i32, i32, i32) {
    %c0_i32 = arith.constant 0 : i32
    %c0_i32_0 = arith.constant 0 : i32
    %c0_i32_1 = arith.constant 0 : i32
    return %arg0, %c0_i32, %c0_i32_0 : i32, i32, i32
  }
  func.func @transform_1(%arg0: i32) -> (i32, i32, i32) {
    %c0_i32 = arith.constant 0 : i32
    %c0_i32_0 = arith.constant 0 : i32
    %c0_i32_1 = arith.constant 0 : i32
    return %arg0, %c0_i32, %c0_i32_0 : i32, i32, i32
  }
  func.func @transform_2(%arg0: i32) -> (i32, i32, i32) {
    %c0_i32 = arith.constant 0 : i32
    %c0_i32_0 = arith.constant 0 : i32
    %c0_i32_1 = arith.constant 0 : i32
    %c0_i32_2 = arith.constant 0 : i32
    return %c0_i32, %c0_i32_0, %c0_i32_1 : i32, i32, i32
  }
  func.func @transform_3(%arg0: i32) -> (i32, i32) {
    %c0_i32 = arith.constant 0 : i32
    %c0_i32_0 = arith.constant 0 : i32
    %c0_i32_1 = arith.constant 0 : i32
    return %c0_i32, %c0_i32_0 : i32, i32
  }
  func.func @transform_4(%arg0: i32) -> (i32, i32) {
    %c0_i32 = arith.constant 0 : i32
    %c0_i32_0 = arith.constant 0 : i32
    %c0_i32_1 = arith.constant 0 : i32
    return %c0_i32, %c0_i32_0 : i32, i32
  }
  func.func @transform_5(%arg0: i32) -> (i32, i32) {
    %c0_i32 = arith.constant 0 : i32
    %c0_i32_0 = arith.constant 0 : i32
    %c0_i32_1 = arith.constant 0 : i32
    return %c0_i32, %c0_i32_0 : i32, i32
  }
  func.func @transform_6(%arg0: i32) -> (i32, i32) {
    %c0_i32 = arith.constant 0 : i32
    %c0_i32_0 = arith.constant 0 : i32
    %c0_i32_1 = arith.constant 0 : i32
    return %c0_i32, %c0_i32_0 : i32, i32
  }
  func.func @transform_7(%arg0: i32) -> (i32, i32, i32) {
    %c0_i32 = arith.constant 0 : i32
    %c0_i32_0 = arith.constant 0 : i32
    %c0_i32_1 = arith.constant 0 : i32
    %c0_i32_2 = arith.constant 0 : i32
    return %c0_i32, %c0_i32_0, %c0_i32_1 : i32, i32, i32
  }
  func.func @transform_8(%arg0: i32) -> (i32, i32, i32) {
    %c0_i32 = arith.constant 0 : i32
    %c0_i32_0 = arith.constant 0 : i32
    %c0_i32_1 = arith.constant 0 : i32
    %c0_i32_2 = arith.constant 0 : i32
    return %c0_i32, %c0_i32_0, %c0_i32_1 : i32, i32, i32
  }
  func.func @transform_9(%arg0: i32) -> (i32, i32, i32) {
    %c0_i32 = arith.constant 0 : i32
    %c0_i32_0 = arith.constant 0 : i32
    %c0_i32_1 = arith.constant 0 : i32
    %c0_i32_2 = arith.constant 0 : i32
    return %c0_i32, %c0_i32_0, %c0_i32_1 : i32, i32, i32
  }
  func.func @transform_10(%arg0: i32) -> (i32, i32) {
    %c0_i32 = arith.constant 0 : i32
    %c0_i32_0 = arith.constant 0 : i32
    %c0_i32_1 = arith.constant 0 : i32
    return %c0_i32, %c0_i32_0 : i32, i32
  }
  func.func @transform_11(%arg0: i32) -> (i32, i32) {
    %c0_i32 = arith.constant 0 : i32
    %c0_i32_0 = arith.constant 0 : i32
    %c0_i32_1 = arith.constant 0 : i32
    return %c0_i32, %c0_i32_0 : i32, i32
  }
  func.func @transform_12(%arg0: i32) -> (i32, i32, i32) {
    %c0_i32 = arith.constant 0 : i32
    %c0_i32_0 = arith.constant 0 : i32
    %c0_i32_1 = arith.constant 0 : i32
    return %arg0, %c0_i32, %c0_i32_0 : i32, i32, i32
  }
}

</mosaic_0001>

<llo_original>
// kernel: tpu_custom_call.1
$region0: #{tpu_custom_call.1}
  #allocation0 [shape = 'u32[]', space=smem, size = 0x4, offset = 0x4, fixed_abs, tag = 'smem constant byte address 0x4 - core index']
  #allocation1 [shape = 'u32[144,128]{1,0:T(1,128)}', space=vmem, size = 0x12000, scoped, tag = 'internal scratch']
  %s0 = inlined_call_operand.vmem [shape: f32[2,24,256], index: 0, kind: input, shape index: {}]
  %s1 = inlined_call_operand.hbm [shape: f32[2,1,256], index: 1, kind: input, shape index: {}]
  %s2 = inlined_call_operand.hbm [shape: f32[9,1,256], index: 2, kind: input, shape index: {}]
  %s3 = inlined_call_operand.hbm [shape: f32[16,216], index: 3, kind: input, shape index: {}]
  %s4 = inlined_call_operand.vmem [shape: f32[16,1], index: 4, kind: input, shape index: {}]
  %s5 = inlined_call_operand.hbm [shape: f32[16,144], index: 5, kind: input, shape index: {}]
  %s6 = inlined_call_operand.vmem [shape: f32[16,1], index: 6, kind: input, shape index: {}]
  %s7 = inlined_call_operand.vmem [shape: f32[2,24,144], index: 7, kind: input, shape index: {}]
  %s8 = inlined_call_operand.vmem [shape: f32[2,24,1], index: 8, kind: input, shape index: {}]
  %s9 = inlined_call_operand.vmem [shape: f32[3,16,9], index: 9, kind: input, shape index: {}]
  %s10 = inlined_call_operand.vmem [shape: f32[8,144], index: 10, kind: input, shape index: {}]
  %s11 = inlined_call_operand.vmem [shape: f32[8,1], index: 11, kind: input, shape index: {}]
  %s12 = inlined_call_operand.hbm [shape: f32[2,1,256], index: 12, kind: output, shape index: {}]
  %s13 = sld [smem:[#allocation0]]
  $region97: #{tpu_custom_call.1} parent=0
    _
  %s15 = ssub.s32 1, %s13
  %s16 = scalar_select 0, %s15, %s13
  $region1: #{tpu_custom_call.1} parent=0
    #allocation2 [shape = 'u8[2048]{0}', space=vmem, size = 0x800, scoped, tag = 'input window, operand 1']
    #allocation3 [shape = 's32[2]{0}', space=sflag, size = 0x8, scoped, tag = 'scoped memory for tpu_custom_call.1']
    #allocation4 [shape = 's32[2]{0}', space=sflag, size = 0x8, scoped, tag = 'scoped memory for tpu_custom_call.1']
    #allocation5 [shape = 'u8[9216]{0}', space=vmem, size = 0x2400, scoped, tag = 'input window, operand 2, single buffered']
    #allocation6 [shape = 's32[1]{0}', space=sflag, size = 0x4, scoped, tag = 'scoped memory for tpu_custom_call.1']
    #allocation7 [shape = 'u8[16384]{0}', space=vmem, size = 0x4000, scoped, tag = 'input window, operand 3, single buffered']
    #allocation8 [shape = 'u8[16384]{0}', space=vmem, size = 0x4000, scoped, tag = 'input window, operand 5, single buffered']
    #allocation9 [shape = 's32[1]{0}', space=sflag, size = 0x4, scoped, tag = 'scoped memory for tpu_custom_call.1']
    #allocation10 [shape = 'u8[2048]{0}', space=vmem, size = 0x800, scoped, tag = 'output window, operand 0']
    %17 = vsyncpa [#allocation3], 0
    %s18 = scalar_lea.sflag [#allocation3], 1
    %19 = vsyncpa %s18, 0
    %20 = vsyncpa [#allocation6], 0
    %21 = vsyncpa [#allocation9], 0
    %22 = vsyncpa [#allocation4], 0
    %s23 = scalar_lea.sflag [#allocation4], 1
    %24 = vsyncpa %s23, 0
    loop: start=0, step=1, limit=4
    $region2: #{tpu_custom_call.1} parent=1 // loop_pre_header
      _
    $region3: #{tpu_custom_call.1} parent=1 // loop_header
      %s26 = sphi 0, %s30
      %p27 = scmp.ge.s32.totalorder %s26, 4
      %s36 = sphi 0, %s38
      %s39 = sphi 0, %s36
      %s40 = sphi 0, %s39
      %s56 = sphi 0, %s40
      %s62 = sphi 0, %s64
      %s65 = sphi 0, %s62
      %s66 = sphi 0, %s65
      %s82 = sphi 0, %s66
      %s86 = sphi 0, %s86
      %s88 = sphi 0, %s86
      %s89 = sphi 0, %s88
      %s103 = sphi 0, %s89
      %s107 = sphi 0, %s107
      %s109 = sphi 0, %s107
      %s110 = sphi 0, %s109
      %s124 = sphi 0, %s110
      %s128 = sphi 0, %s128
      %s130 = sphi 0, %s128
      %s131 = sphi 0, %s130
      %s145 = sphi 0, %s131
      %s149 = sphi 0, %s149
      %s151 = sphi 0, %s149
      %s152 = sphi 0, %s151
      %s166 = sphi 0, %s152
      %s170 = sphi 0, %s170
      %s172 = sphi 0, %s170
      %s173 = sphi 0, %s172
      %s187 = sphi 0, %s173
      %s191 = sphi 0, %s191
      %s193 = sphi 0, %s191
      %s194 = sphi 0, %s193
      %s208 = sphi 0, %s194
      %s212 = sphi 0, %s212
      %s214 = sphi 0, %s212
      %s215 = sphi 0, %s214
      %s229 = sphi 0, %s215
      %s233 = sphi 0, %s233
      %s235 = sphi 0, %s233
      %s236 = sphi 0, %s235
      %s250 = sphi 0, %s236
      %s254 = sphi 0, %s254
      %s256 = sphi 0, %s254
      %s257 = sphi 0, %s256
      %s271 = sphi 0, %s257
      %s275 = sphi 0, %s275
      %s277 = sphi 0, %s275
      %s278 = sphi 0, %s277
      %s292 = sphi 0, %s278
      %s298 = sphi 0, %s300
      %s301 = sphi 0, %s298
      %s302 = sphi 0, %s301
      %s318 = sphi 0, %s302
    $region4: #{tpu_custom_call.1} parent=1 // loop_header_branch
      %29 = sbr.rel (%p27) target = $region8
    $region5: #{tpu_custom_call.1} parent=1 // loop_body
      %s31 = ssub.s32 %s26, 1
      %s32 = ssub.s32 %s26, 2
      %s33 = sadd.s32 %s26, 1
      %s34 = ssub.s32 %s26, %s33
      %p35 = scmp.eq.s32.totalorder %s34, 0
      %s37 = sadd.s32 %s36, 1
      %s38 = scalar_select %p35, %s36, %s37
      %p41 = pneg %p35
      %p42 = scmp.eq.s32.totalorder %s26, 1
      %p43 = por %p41, %p42
      %p44 = scmp.ne.s32.totalorder %s36, %s39
      %p45 = scmp.eq.s32.totalorder %s26, 0
      %p46 = por %p44, %p45
      %p47 = scmp.ne.s32.totalorder %s36, %s39
      %p48 = scmp.eq.s32.totalorder %s31, 1
      %p49 = por %p47, %p48
      %p50 = scmp.ne.s32.totalorder %s39, %s40
      %p51 = scmp.eq.s32.totalorder %s31, 0
      %p52 = por %p50, %p51
      %p53 = scmp.ne.s32.totalorder %s39, %s40
      %p54 = scmp.eq.s32.totalorder %s32, 1
      %p55 = por %p53, %p54
      %p57 = scmp.ne.s32.totalorder %s40, %s56
      %p58 = scmp.eq.s32.totalorder %s32, 0
      %p59 = por %p57, %p58
      %s60 = ssub.s32 %s26, %s33
      %p61 = scmp.eq.s32.totalorder %s60, 0
      %s63 = sadd.s32 %s62, 1
      %s64 = scalar_select %p61, %s62, %s63
      %p67 = pneg %p61
      %p68 = scmp.eq.s32.totalorder %s26, 1
      %p69 = por %p67, %p68
      %p70 = scmp.ne.s32.totalorder %s62, %s65
      %p71 = scmp.eq.s32.totalorder %s26, 0
      %p72 = por %p70, %p71
      %p73 = scmp.ne.s32.totalorder %s62, %s65
      %p74 = scmp.eq.s32.totalorder %s31, 1
      %p75 = por %p73, %p74
      %p76 = scmp.ne.s32.totalorder %s65, %s66
      %p77 = scmp.eq.s32.totalorder %s31, 0
      %p78 = por %p76, %p77
      %p79 = scmp.ne.s32.totalorder %s65, %s66
      %p80 = scmp.eq.s32.totalorder %s32, 1
      %p81 = por %p79, %p80
      %p83 = scmp.ne.s32.totalorder %s66, %s82
      %p84 = scmp.eq.s32.totalorder %s32, 0
      %p85 = por %p83, %p84
      %s87 = sadd.s32 %s86, 1
      %p90 = scmp.eq.s32.totalorder %s26, 1
      %p91 = scmp.ne.s32.totalorder %s86, %s88
      %p92 = scmp.eq.s32.totalorder %s26, 0
      %p93 = por %p91, %p92
      %p94 = scmp.ne.s32.totalorder %s86, %s88
      %p95 = scmp.eq.s32.totalorder %s31, 1
      %p96 = por %p94, %p95
      %p97 = scmp.ne.s32.totalorder %s88, %s89
      %p98 = scmp.eq.s32.totalorder %s31, 0
      %p99 = por %p97, %p98
      %p100 = scmp.ne.s32.totalorder %s88, %s89
      %p101 = scmp.eq.s32.totalorder %s32, 1
      %p102 = por %p100, %p101
      %p104 = scmp.ne.s32.totalorder %s89, %s103
      %p105 = scmp.eq.s32.totalorder %s32, 0
      %p106 = por %p104, %p105
      %s108 = sadd.s32 %s107, 1
      %p111 = scmp.eq.s32.totalorder %s26, 1
      %p112 = scmp.ne.s32.totalorder %s107, %s109
      %p113 = scmp.eq.s32.totalorder %s26, 0
      %p114 = por %p112, %p113
      %p115 = scmp.ne.s32.totalorder %s107, %s109
      %p116 = scmp.eq.s32.totalorder %s31, 1
      %p117 = por %p115, %p116
      %p118 = scmp.ne.s32.totalorder %s109, %s110
      %p119 = scmp.eq.s32.totalorder %s31, 0
      %p120 = por %p118, %p119
      %p121 = scmp.ne.s32.totalorder %s109, %s110
      %p122 = scmp.eq.s32.totalorder %s32, 1
      %p123 = por %p121, %p122
      %p125 = scmp.ne.s32.totalorder %s110, %s124
      %p126 = scmp.eq.s32.totalorder %s32, 0
      %p127 = por %p125, %p126
      %s129 = sadd.s32 %s128, 1
      %p132 = scmp.eq.s32.totalorder %s26, 1
      %p133 = scmp.ne.s32.totalorder %s128, %s130
      %p134 = scmp.eq.s32.totalorder %s26, 0
      %p135 = por %p133, %p134
      %p136 = scmp.ne.s32.totalorder %s128, %s130
      %p137 = scmp.eq.s32.totalorder %s31, 1
      %p138 = por %p136, %p137
      %p139 = scmp.ne.s32.totalorder %s130, %s131
      %p140 = scmp.eq.s32.totalorder %s31, 0
      %p141 = por %p139, %p140
      %p142 = scmp.ne.s32.totalorder %s130, %s131
      %p143 = scmp.eq.s32.totalorder %s32, 1
      %p144 = por %p142, %p143
      %p146 = scmp.ne.s32.totalorder %s131, %s145
      %p147 = scmp.eq.s32.totalorder %s32, 0
      %p148 = por %p146, %p147
      %s150 = sadd.s32 %s149, 1
      %p153 = scmp.eq.s32.totalorder %s26, 1
      %p154 = scmp.ne.s32.totalorder %s149, %s151
      %p155 = scmp.eq.s32.totalorder %s26, 0
      %p156 = por %p154, %p155
      %p157 = scmp.ne.s32.totalorder %s149, %s151
      %p158 = scmp.eq.s32.totalorder %s31, 1
      %p159 = por %p157, %p158
      %p160 = scmp.ne.s32.totalorder %s151, %s152
      %p161 = scmp.eq.s32.totalorder %s31, 0
      %p162 = por %p160, %p161
      %p163 = scmp.ne.s32.totalorder %s151, %s152
      %p164 = scmp.eq.s32.totalorder %s32, 1
      %p165 = por %p163, %p164
      %p167 = scmp.ne.s32.totalorder %s152, %s166
      %p168 = scmp.eq.s32.totalorder %s32, 0
      %p169 = por %p167, %p168
      %s171 = sadd.s32 %s170, 1
      %p174 = scmp.eq.s32.totalorder %s26, 1
      %p175 = scmp.ne.s32.totalorder %s170, %s172
      %p176 = scmp.eq.s32.totalorder %s26, 0
      %p177 = por %p175, %p176
      %p178 = scmp.ne.s32.totalorder %s170, %s172
      %p179 = scmp.eq.s32.totalorder %s31, 1
      %p180 = por %p178, %p179
      %p181 = scmp.ne.s32.totalorder %s172, %s173
      %p182 = scmp.eq.s32.totalorder %s31, 0
      %p183 = por %p181, %p182
      %p184 = scmp.ne.s32.totalorder %s172, %s173
      %p185 = scmp.eq.s32.totalorder %s32, 1
      %p186 = por %p184, %p185
      %p188 = scmp.ne.s32.totalorder %s173, %s187
      %p189 = scmp.eq.s32.totalorder %s32, 0
      %p190 = por %p188, %p189
      %s192 = sadd.s32 %s191, 1
      %p195 = scmp.eq.s32.totalorder %s26, 1
      %p196 = scmp.ne.s32.totalorder %s191, %s193
      %p197 = scmp.eq.s32.totalorder %s26, 0
      %p198 = por %p196, %p197
      %p199 = scmp.ne.s32.totalorder %s191, %s193
      %p200 = scmp.eq.s32.totalorder %s31, 1
      %p201 = por %p199, %p200
      %p202 = scmp.ne.s32.totalorder %s193, %s194
      %p203 = scmp.eq.s32.totalorder %s31, 0
      %p204 = por %p202, %p203
      %p205 = scmp.ne.s32.totalorder %s193, %s194
      %p206 = scmp.eq.s32.totalorder %s32, 1
      %p207 = por %p205, %p206
      %p209 = scmp.ne.s32.totalorder %s194, %s208
      %p210 = scmp.eq.s32.totalorder %s32, 0
      %p211 = por %p209, %p210
      %s213 = sadd.s32 %s212, 1
      %p216 = scmp.eq.s32.totalorder %s26, 1
      %p217 = scmp.ne.s32.totalorder %s212, %s214
      %p218 = scmp.eq.s32.totalorder %s26, 0
      %p219 = por %p217, %p218
      %p220 = scmp.ne.s32.totalorder %s212, %s214
      %p221 = scmp.eq.s32.totalorder %s31, 1
      %p222 = por %p220, %p221
      %p223 = scmp.ne.s32.totalorder %s214, %s215
      %p224 = scmp.eq.s32.totalorder %s31, 0
      %p225 = por %p223, %p224
      %p226 = scmp.ne.s32.totalorder %s214, %s215
      %p227 = scmp.eq.s32.totalorder %s32, 1
      %p228 = por %p226, %p227
      %p230 = scmp.ne.s32.totalorder %s215, %s229
      %p231 = scmp.eq.s32.totalorder %s32, 0
      %p232 = por %p230, %p231
      %s234 = sadd.s32 %s233, 1
      %p237 = scmp.eq.s32.totalorder %s26, 1
      %p238 = scmp.ne.s32.totalorder %s233, %s235
      %p239 = scmp.eq.s32.totalorder %s26, 0
      %p240 = por %p238, %p239
      %p241 = scmp.ne.s32.totalorder %s233, %s235
      %p242 = scmp.eq.s32.totalorder %s31, 1
      %p243 = por %p241, %p242
      %p244 = scmp.ne.s32.totalorder %s235, %s236
      %p245 = scmp.eq.s32.totalorder %s31, 0
      %p246 = por %p244, %p245
      %p247 = scmp.ne.s32.totalorder %s235, %s236
      %p248 = scmp.eq.s32.totalorder %s32, 1
      %p249 = por %p247, %p248
      %p251 = scmp.ne.s32.totalorder %s236, %s250
      %p252 = scmp.eq.s32.totalorder %s32, 0
      %p253 = por %p251, %p252
      %s255 = sadd.s32 %s254, 1
      %p258 = scmp.eq.s32.totalorder %s26, 1
      %p259 = scmp.ne.s32.totalorder %s254, %s256
      %p260 = scmp.eq.s32.totalorder %s26, 0
      %p261 = por %p259, %p260
      %p262 = scmp.ne.s32.totalorder %s254, %s256
      %p263 = scmp.eq.s32.totalorder %s31, 1
      %p264 = por %p262, %p263
      %p265 = scmp.ne.s32.totalorder %s256, %s257
      %p266 = scmp.eq.s32.totalorder %s31, 0
      %p267 = por %p265, %p266
      %p268 = scmp.ne.s32.totalorder %s256, %s257
      %p269 = scmp.eq.s32.totalorder %s32, 1
      %p270 = por %p268, %p269
      %p272 = scmp.ne.s32.totalorder %s257, %s271
      %p273 = scmp.eq.s32.totalorder %s32, 0
      %p274 = por %p272, %p273
      %s276 = sadd.s32 %s275, 1
      %p279 = scmp.eq.s32.totalorder %s26, 1
      %p280 = scmp.ne.s32.totalorder %s275, %s277
      %p281 = scmp.eq.s32.totalorder %s26, 0
      %p282 = por %p280, %p281
      %p283 = scmp.ne.s32.totalorder %s275, %s277
      %p284 = scmp.eq.s32.totalorder %s31, 1
      %p285 = por %p283, %p284
      %p286 = scmp.ne.s32.totalorder %s277, %s278
      %p287 = scmp.eq.s32.totalorder %s31, 0
      %p288 = por %p286, %p287
      %p289 = scmp.ne.s32.totalorder %s277, %s278
      %p290 = scmp.eq.s32.totalorder %s32, 1
      %p291 = por %p289, %p290
      %p293 = scmp.ne.s32.totalorder %s278, %s292
      %p294 = scmp.eq.s32.totalorder %s32, 0
      %p295 = por %p293, %p294
      %s296 = ssub.s32 %s26, %s33
      %p297 = scmp.eq.s32.totalorder %s296, 0
      %s299 = sadd.s32 %s298, 1
      %s300 = scalar_select %p297, %s298, %s299
      %p303 = pneg %p297
      %p304 = scmp.eq.s32.totalorder %s26, 1
      %p305 = por %p303, %p304
      %p306 = scmp.ne.s32.totalorder %s298, %s301
      %p307 = scmp.eq.s32.totalorder %s26, 0
      %p308 = por %p306, %p307
      %p309 = scmp.ne.s32.totalorder %s298, %s301
      %p310 = scmp.eq.s32.totalorder %s31, 1
      %p311 = por %p309, %p310
      %p312 = scmp.ne.s32.totalorder %s301, %s302
      %p313 = scmp.eq.s32.totalorder %s31, 0
      %p314 = por %p312, %p313
      %p315 = scmp.ne.s32.totalorder %s301, %s302
      %p316 = scmp.eq.s32.totalorder %s32, 1
      %p317 = por %p315, %p316
      %p319 = scmp.ne.s32.totalorder %s302, %s318
      %p320 = scmp.eq.s32.totalorder %s32, 0
      %p321 = por %p319, %p320
      %p322 = scmp.le.s32.totalorder 1, %s26
      %p323 = scmp.lt.s32.totalorder %s26, 3
      %p324 = pnand %p322, %p323
      %p325 = pneg %p324
      // Predicated region
      $region9: #{tpu_custom_call.1} parent=5 // pred_check
        _
      $region10: #{tpu_custom_call.1} parent=5 // pred_check_branch
        %327 = sbr.rel (%p324) target = $region12
      $region11: #{tpu_custom_call.1} parent=5 // pred_region
        %s328 = ssub.s32 %s26, 1
        // Predicated region
        $region13: #{tpu_custom_call.1} parent=11 // pred_check
          %p329 = pneg %p99
        $region14: #{tpu_custom_call.1} parent=11 // pred_check_branch
          %331 = sbr.rel (%p329) target = $region16
        $region15: #{tpu_custom_call.1} parent=11 // pred_region
          %s333 = ssub.s32 288, 288
          %334 = vsyncadd [#allocation6], %s333
          %s335 = sshll.u32 [#allocation5], 4
          %s336 = int_to_ptr.vmem [resolvable:$true] %s335
          %341 = dma.hbm_to_vmem [thread:$0]  %s2, 288, %s336, [#allocation6], 32, 32, 2
        $region16: #{tpu_custom_call.1} parent=11 // pred_fallthru
          _
        // Predicated region
        $region17: #{tpu_custom_call.1} parent=11 // pred_check
          %p342 = pneg %p120
        $region18: #{tpu_custom_call.1} parent=11 // pred_check_branch
          %344 = sbr.rel (%p342) target = $region20
        $region19: #{tpu_custom_call.1} parent=11 // pred_region
          %s346 = ssub.s32 512, 512
          %347 = vsyncadd [#allocation6], %s346
          %s348 = sshll.u32 [#allocation7], 4
          %s349 = int_to_ptr.vmem [resolvable:$true] %s348
          %354 = dma.hbm_to_vmem [thread:$0]  %s3, 512, %s349, [#allocation6], 256, 256, 16
        $region20: #{tpu_custom_call.1} parent=11 // pred_fallthru
          _
        // Predicated region
        $region21: #{tpu_custom_call.1} parent=11 // pred_check
          %p355 = pneg %p141
        $region22: #{tpu_custom_call.1} parent=11 // pred_check_branch
          %357 = sbr.rel (%p355) target = $region24
        $region23: #{tpu_custom_call.1} parent=11 // pred_region
          _
        $region24: #{tpu_custom_call.1} parent=11 // pred_fallthru
          _
        // Predicated region
        $region25: #{tpu_custom_call.1} parent=11 // pred_check
          %p358 = pneg %p162
        $region26: #{tpu_custom_call.1} parent=11 // pred_check_branch
          %360 = sbr.rel (%p358) target = $region28
        $region27: #{tpu_custom_call.1} parent=11 // pred_region
          %s362 = ssub.s32 512, 512
          %363 = vsyncadd [#allocation9], %s362
          %s364 = sshll.u32 [#allocation8], 4
          %s365 = int_to_ptr.vmem [resolvable:$true] %s364
          %370 = dma.hbm_to_vmem [thread:$0]  %s5, 512, %s365, [#allocation9], 256, 256, 16
        $region28: #{tpu_custom_call.1} parent=11 // pred_fallthru
          _
        // Predicated region
        $region29: #{tpu_custom_call.1} parent=11 // pred_check
          %p371 = pneg %p183
        $region30: #{tpu_custom_call.1} parent=11 // pred_check_branch
          %373 = sbr.rel (%p371) target = $region32
        $region31: #{tpu_custom_call.1} parent=11 // pred_region
          _
        $region32: #{tpu_custom_call.1} parent=11 // pred_fallthru
          _
        // Predicated region
        $region33: #{tpu_custom_call.1} parent=11 // pred_check
          %p374 = pneg %p204
        $region34: #{tpu_custom_call.1} parent=11 // pred_check_branch
          %376 = sbr.rel (%p374) target = $region36
        $region35: #{tpu_custom_call.1} parent=11 // pred_region
          _
        $region36: #{tpu_custom_call.1} parent=11 // pred_fallthru
          _
        // Predicated region
        $region37: #{tpu_custom_call.1} parent=11 // pred_check
          %p377 = pneg %p225
        $region38: #{tpu_custom_call.1} parent=11 // pred_check_branch
          %379 = sbr.rel (%p377) target = $region40
        $region39: #{tpu_custom_call.1} parent=11 // pred_region
          _
        $region40: #{tpu_custom_call.1} parent=11 // pred_fallthru
          _
        // Predicated region
        $region41: #{tpu_custom_call.1} parent=11 // pred_check
          %p380 = pneg %p246
        $region42: #{tpu_custom_call.1} parent=11 // pred_check_branch
          %382 = sbr.rel (%p380) target = $region44
        $region43: #{tpu_custom_call.1} parent=11 // pred_region
          _
        $region44: #{tpu_custom_call.1} parent=11 // pred_fallthru
          _
        // Predicated region
        $region45: #{tpu_custom_call.1} parent=11 // pred_check
          %p383 = pneg %p267
        $region46: #{tpu_custom_call.1} parent=11 // pred_check_branch
          %385 = sbr.rel (%p383) target = $region48
        $region47: #{tpu_custom_call.1} parent=11 // pred_region
          _
        $region48: #{tpu_custom_call.1} parent=11 // pred_fallthru
          _
        // Predicated region
        $region49: #{tpu_custom_call.1} parent=11 // pred_check
          %p386 = pneg %p288
        $region50: #{tpu_custom_call.1} parent=11 // pred_check_branch
          %388 = sbr.rel (%p386) target = $region52
        $region51: #{tpu_custom_call.1} parent=11 // pred_region
          _
        $region52: #{tpu_custom_call.1} parent=11 // pred_fallthru
          _
      $region12: #{tpu_custom_call.1} parent=5 // pred_fallthru
        _
      %p389 = scmp.lt.s32.totalorder %s26, 2
      // Predicated region
      $region53: #{tpu_custom_call.1} parent=5 // pred_check
        %p390 = pneg %p389
      $region54: #{tpu_custom_call.1} parent=5 // pred_check_branch
        %392 = sbr.rel (%p390) target = $region56
      $region55: #{tpu_custom_call.1} parent=5 // pred_region
        // Predicated region
        $region57: #{tpu_custom_call.1} parent=55 // pred_check
          %p393 = pneg %p46
        $region58: #{tpu_custom_call.1} parent=55 // pred_check_branch
          %395 = sbr.rel (%p393) target = $region60
        $region59: #{tpu_custom_call.1} parent=55 // pred_region
          %p396 = scmp.lt.s32.totalorder %s26, 1
          %s397 = scalar_select %p396, %s26, 1
          %s398 = smul.addr %s397, 6
          %s399 = smul.addr %s398, 8
          %s400 = scalar_lea.vmem %s0, %s399
        $region60: #{tpu_custom_call.1} parent=55 // pred_fallthru
          _
        // Predicated region
        $region61: #{tpu_custom_call.1} parent=55 // pred_check
          %p401 = pneg %p72
        $region62: #{tpu_custom_call.1} parent=55 // pred_check_branch
          %403 = sbr.rel (%p401) target = $region64
        $region63: #{tpu_custom_call.1} parent=55 // pred_region
          %s404 = sand.u32 %s62, 1
          %s405 = scalar_lea.sflag [#allocation3], %s404
          %s406 = sand.u32 %s62, 1
          %s407 = smul.addr %s406, 2
          %s408 = scalar_lea.vmem [#allocation2], %s407
          %s410 = ssub.s32 32, 32
          %411 = vsyncadd %s405, %s410
          %s412 = smul.addr %s26, 2
          %s413 = smul.addr %s412, 16
          %s414 = scalar_lea.hbm %s1, %s413
          %s416 = sshll.u32 %s408, 4
          %s417 = int_to_ptr.vmem [resolvable:$true] %s416
          %419 = dma.hbm_to_vmem [thread:$0]  %s414, 32, %s417, %s405
        $region64: #{tpu_custom_call.1} parent=55 // pred_fallthru
          _
      $region56: #{tpu_custom_call.1} parent=5 // pred_fallthru
        _
      %p420 = scmp.le.s32.totalorder 1, %s26
      %p421 = scmp.lt.s32.totalorder %s26, 3
      %p422 = pnand %p420, %p421
      %p423 = pneg %p422
      // Predicated region
      $region65: #{tpu_custom_call.1} parent=5 // pred_check
        _
      $region66: #{tpu_custom_call.1} parent=5 // pred_check_branch
        %425 = sbr.rel (%p422) target = $region68
      $region67: #{tpu_custom_call.1} parent=5 // pred_region
        %s426 = ssub.s32 %s26, 1
        %s427 = sand.u32 %s65, 1
        %s428 = scalar_lea.sflag [#allocation3], %s427
        %s429 = sand.u32 %s65, 1
        %s430 = smul.addr %s429, 2
        %s431 = scalar_lea.vmem [#allocation2], %s430
        // Predicated region
        $region69: #{tpu_custom_call.1} parent=67 // pred_check
          %p432 = pneg %p78
        $region70: #{tpu_custom_call.1} parent=67 // pred_check_branch
          %434 = sbr.rel (%p432) target = $region72
        $region71: #{tpu_custom_call.1} parent=67 // pred_region
          %435 = dma.done %s428, 32
        $region72: #{tpu_custom_call.1} parent=67 // pred_fallthru
          _
        // Predicated region
        $region73: #{tpu_custom_call.1} parent=67 // pred_check
          %p436 = pneg %p99
        $region74: #{tpu_custom_call.1} parent=67 // pred_check_branch
          %438 = sbr.rel (%p436) target = $region76
        $region75: #{tpu_custom_call.1} parent=67 // pred_region
          %439 = dma.done [#allocation6], 288
        $region76: #{tpu_custom_call.1} parent=67 // pred_fallthru
          _
        // Predicated region
        $region77: #{tpu_custom_call.1} parent=67 // pred_check
          %p440 = pneg %p120
        $region78: #{tpu_custom_call.1} parent=67 // pred_check_branch
          %442 = sbr.rel (%p440) target = $region80
        $region79: #{tpu_custom_call.1} parent=67 // pred_region
          %443 = dma.done [#allocation6], 512
        $region80: #{tpu_custom_call.1} parent=67 // pred_fallthru
          _
        // Predicated region
        $region81: #{tpu_custom_call.1} parent=67 // pred_check
          %p444 = pneg %p162
        $region82: #{tpu_custom_call.1} parent=67 // pred_check_branch
          %446 = sbr.rel (%p444) target = $region84
        $region83: #{tpu_custom_call.1} parent=67 // pred_region
          %447 = dma.done [#allocation9], 512
        $region84: #{tpu_custom_call.1} parent=67 // pred_fallthru
          _
        %p448 = scmp.lt.s32.totalorder %s31, 1
        %s449 = scalar_select %p448, %s31, 1
        %s450 = smul.addr %s449, 6
        %s451 = smul.addr %s450, 8
        %s452 = scalar_lea.vmem %s0, %s451
        %p453 = pneg %p52
        %p454 = pneg %p49
        %s455 = sand.u32 %s65, 1
        %s456 = scalar_lea.sflag [#allocation3], %s455
        %s457 = sand.u32 %s65, 1
        %s458 = smul.addr %s457, 2
        %s459 = scalar_lea.vmem [#allocation2], %s458
        %p460 = pneg %p78
        %p461 = pneg %p75
        %p462 = pneg %p99
        %p463 = pneg %p96
        %p464 = pneg %p120
        %p465 = pneg %p117
        %p466 = pneg %p141
        %p467 = pneg %p138
        %p468 = pneg %p162
        %p469 = pneg %p159
        %p470 = pneg %p183
        %p471 = pneg %p180
        %p472 = pneg %p204
        %p473 = pneg %p201
        %p474 = pneg %p225
        %p475 = pneg %p222
        %p476 = pneg %p246
        %p477 = pneg %p243
        %p478 = pneg %p267
        %p479 = pneg %p264
        %p480 = pneg %p288
        %p481 = pneg %p285
        %p482 = pneg %p314
        %p483 = pneg %p311
        %s484 = sand.u32 %s301, 1
        %s485 = scalar_lea.sflag [#allocation4], %s484
        %s486 = sand.u32 %s301, 1
        %s487 = smul.addr %s486, 2
        %s488 = scalar_lea.vmem [#allocation10], %s487
        %p489 = scmp.lt.s32.totalorder %s31, 1
        %s490 = scalar_select %p489, %s31, 1
        %s491 = smul.addr %s490, 6
        %s492 = smul.addr %s491, 8
        %s493 = scalar_lea.vmem %s0, %s492
        %v494 = vld [vmem:[#allocation5] sm:$0x3]
        %s495 = scalar_lea.vmem [#allocation5], 2
        %v496 = vld [vmem:[%s495] sm:$0x3]
        %s497 = scalar_lea.vmem [#allocation5], 4
        %v498 = vld [vmem:[%s497] sm:$0x3]
        %s499 = scalar_lea.vmem [#allocation5], 6
        %v500 = vld [vmem:[%s499] sm:$0x3]
        %s501 = scalar_lea.vmem [#allocation5], 10
        %v502 = vld [vmem:[%s501] sm:$0x3]
        %s503 = scalar_lea.vmem [#allocation5], 12
        %v504 = vld [vmem:[%s503] sm:$0x3]
        %s505 = scalar_lea.vmem [#allocation5], 14
        %v506 = vld [vmem:[%s505] sm:$0x3]
        %s507 = scalar_lea.vmem [#allocation5], 16
        %v508 = vld [vmem:[%s507] sm:$0x3]
        %v509 = vld [vmem:[%s493] sm:$0xff]
        %v510 = vld [vmem:[%s493 + $0x8] sm:$0xff]
        %v511 = vld [vmem:[%s493 + $0x10] sm:$0xff]
        %v512 = vld [vmem:[%s493 + $0x18] sm:$0xff]
        %v513 = vld [vmem:[%s493 + $0x20] sm:$0xff]
        %v514 = vld [vmem:[%s493 + $0x28] sm:$0xff]
        %v515 = vld [vmem:[%s431] sm:$0x3]
        %v516 = vsub.f32 0.0, %v515
        %v517 = vmul.f32 %v516, 1.442695
        %v518 = vpow.pop %v517
        %v519 = vadd.f32 %v518, 1.0
        %v520 = vrcp.pop %v519
        %v521 = vmul.f32 1.0, %v520
        %v522 = vsub.f32 1.0, %v521
        %v523 = vld [vmem:[#allocation7] sm:$0xff]
        %v524 = vld [vmem:[#allocation7 + $0x8] sm:$0xff]
        %v525 = vld [vmem:[#allocation7 + $0x10] sm:$0xff]
        %v526 = vld [vmem:[#allocation7 + $0x18] sm:$0xff]
        %527 = vrot.lane.b32.xlu0 %v509, 17
        %v528 = vpop.permute.xlu0 %527
        %529 = vrot.lane.b32.xlu0 %v511, 17
        %v530 = vpop.permute.xlu0 %529
        %531 = vrot.lane.b32.xlu0 %v513, 17
        %v532 = vpop.permute.xlu0 %531
        %533 = vrot.lane.b32.xlu0 %v510, 17
        %v534 = vpop.permute.xlu0 %533
        %535 = vrot.lane.b32.xlu0 %v512, 17
        %v536 = vpop.permute.xlu0 %535
        %537 = vrot.lane.b32.xlu0 %v514, 17
        %v538 = vpop.permute.xlu0 %537
        %v539 = vlaneseq
        %v540 = vand.u32 %v539, 127
        %vm541 = vcmp.lt.s32.totalorder %v540, 17
        %v542 = vsel %vm541, %v528, %v534
        %v543 = vsel %vm541, %v530, %v536
        %v544 = vsel %vm541, %v532, %v538
        %v545 = vsel %vm541, %v534, %v528
        %v546 = vsel %vm541, %v536, %v530
        %v547 = vsel %vm541, %v538, %v532
        %v549 = vlaneseq
        %v550 = vshrl.u32 %v549, 7
        %v551 = vsub.s32 0, %v550
        %v552 = vrot.slane %v494, %v551
        %v553 = vlaneseq
        %v554 = vshrl.u32 %v553, 7
        %v555 = vsub.s32 1, %v554
        %v556 = vrot.slane %v494, %v555
        %v559 = vmul.f32 %v545, %v552
        %v560 = vmul.f32 %v542, %v556
        %v561 = vmul.f32 %v546, %v552
        %v562 = vmul.f32 %v543, %v556
        %v563 = vmul.f32 %v547, %v552
        %v564 = vmul.f32 %v544, %v556
        %565 = vrot.lane.b32.xlu0 %v509, 16
        %v566 = vpop.permute.xlu0 %565
        %567 = vrot.lane.b32.xlu0 %v511, 16
        %v568 = vpop.permute.xlu0 %567
        %569 = vrot.lane.b32.xlu0 %v513, 16
        %v570 = vpop.permute.xlu0 %569
        %571 = vrot.lane.b32.xlu0 %v510, 16
        %v572 = vpop.permute.xlu0 %571
        %573 = vrot.lane.b32.xlu0 %v512, 16
        %v574 = vpop.permute.xlu0 %573
        %575 = vrot.lane.b32.xlu0 %v514, 16
        %v576 = vpop.permute.xlu0 %575
        %vm577 = vcmp.lt.s32.totalorder %v540, 16
        %v578 = vsel %vm577, %v566, %v572
        %v579 = vsel %vm577, %v568, %v574
        %v580 = vsel %vm577, %v570, %v576
        %v581 = vsel %vm577, %v572, %v566
        %v582 = vsel %vm577, %v574, %v568
        %v583 = vsel %vm577, %v576, %v570
        %v585 = vlaneseq
        %v586 = vshrl.u32 %v585, 7
        %v587 = vsub.s32 0, %v586
        %v588 = vrot.slane %v496, %v587
        %v589 = vlaneseq
        %v590 = vshrl.u32 %v589, 7
        %v591 = vsub.s32 1, %v590
        %v592 = vrot.slane %v496, %v591
        %v595 = vmul.f32 %v581, %v588
        %v596 = vmul.f32 %v578, %v592
        %v597 = vmul.f32 %v582, %v588
        %v598 = vmul.f32 %v579, %v592
        %v599 = vmul.f32 %v583, %v588
        %v600 = vmul.f32 %v580, %v592
        %601 = vrot.lane.b32.xlu0 %v509, 15
        %v602 = vpop.permute.xlu0 %601
        %603 = vrot.lane.b32.xlu0 %v511, 15
        %v604 = vpop.permute.xlu0 %603
        %605 = vrot.lane.b32.xlu0 %v513, 15
        %v606 = vpop.permute.xlu0 %605
        %607 = vrot.lane.b32.xlu0 %v510, 15
        %v608 = vpop.permute.xlu0 %607
        %609 = vrot.lane.b32.xlu0 %v512, 15
        %v610 = vpop.permute.xlu0 %609
        %611 = vrot.lane.b32.xlu0 %v514, 15
        %v612 = vpop.permute.xlu0 %611
        %vm613 = vcmp.lt.s32.totalorder %v540, 15
        %v614 = vsel %vm613, %v602, %v608
        %v615 = vsel %vm613, %v604, %v610
        %v616 = vsel %vm613, %v606, %v612
        %v617 = vsel %vm613, %v608, %v602
        %v618 = vsel %vm613, %v610, %v604
        %v619 = vsel %vm613, %v612, %v606
        %v621 = vlaneseq
        %v622 = vshrl.u32 %v621, 7
        %v623 = vsub.s32 0, %v622
        %v624 = vrot.slane %v498, %v623
        %v625 = vlaneseq
        %v626 = vshrl.u32 %v625, 7
        %v627 = vsub.s32 1, %v626
        %v628 = vrot.slane %v498, %v627
        %v631 = vmul.f32 %v617, %v624
        %v632 = vmul.f32 %v614, %v628
        %v633 = vmul.f32 %v618, %v624
        %v634 = vmul.f32 %v615, %v628
        %v635 = vmul.f32 %v619, %v624
        %v636 = vmul.f32 %v616, %v628
        %637 = vrot.lane.b32.xlu0 %v509, 1
        %v638 = vpop.permute.xlu0 %637
        %639 = vrot.lane.b32.xlu0 %v511, 1
        %v640 = vpop.permute.xlu0 %639
        %641 = vrot.lane.b32.xlu0 %v513, 1
        %v642 = vpop.permute.xlu0 %641
        %643 = vrot.lane.b32.xlu0 %v510, 1
        %v644 = vpop.permute.xlu0 %643
        %645 = vrot.lane.b32.xlu0 %v512, 1
        %v646 = vpop.permute.xlu0 %645
        %647 = vrot.lane.b32.xlu0 %v514, 1
        %v648 = vpop.permute.xlu0 %647
        %vm649 = vcmp.lt.s32.totalorder %v540, 1
        %v650 = vsel %vm649, %v638, %v644
        %v651 = vsel %vm649, %v640, %v646
        %v652 = vsel %vm649, %v642, %v648
        %v653 = vsel %vm649, %v644, %v638
        %v654 = vsel %vm649, %v646, %v640
        %v655 = vsel %vm649, %v648, %v642
        %v657 = vlaneseq
        %v658 = vshrl.u32 %v657, 7
        %v659 = vsub.s32 0, %v658
        %v660 = vrot.slane %v500, %v659
        %v661 = vlaneseq
        %v662 = vshrl.u32 %v661, 7
        %v663 = vsub.s32 1, %v662
        %v664 = vrot.slane %v500, %v663
        %v667 = vmul.f32 %v653, %v660
        %v668 = vmul.f32 %v650, %v664
        %v669 = vmul.f32 %v654, %v660
        %v670 = vmul.f32 %v651, %v664
        %v671 = vmul.f32 %v655, %v660
        %v672 = vmul.f32 %v652, %v664
        %673 = vrot.lane.b32.xlu0 %v509, 127
        %v674 = vpop.permute.xlu0 %673
        %675 = vrot.lane.b32.xlu0 %v511, 127
        %v676 = vpop.permute.xlu0 %675
        %677 = vrot.lane.b32.xlu0 %v513, 127
        %v678 = vpop.permute.xlu0 %677
        %679 = vrot.lane.b32.xlu0 %v510, 127
        %v680 = vpop.permute.xlu0 %679
        %681 = vrot.lane.b32.xlu0 %v512, 127
        %v682 = vpop.permute.xlu0 %681
        %683 = vrot.lane.b32.xlu0 %v514, 127
        %v684 = vpop.permute.xlu0 %683
        %vm685 = vcmp.lt.s32.totalorder %v540, 127
        %v686 = vsel %vm685, %v674, %v680
        %v687 = vsel %vm685, %v676, %v682
        %v688 = vsel %vm685, %v678, %v684
        %v689 = vsel %vm685, %v680, %v674
        %v690 = vsel %vm685, %v682, %v676
        %v691 = vsel %vm685, %v684, %v678
        %v693 = vlaneseq
        %v694 = vshrl.u32 %v693, 7
        %v695 = vsub.s32 0, %v694
        %v696 = vrot.slane %v502, %v695
        %v697 = vlaneseq
        %v698 = vshrl.u32 %v697, 7
        %v699 = vsub.s32 1, %v698
        %v700 = vrot.slane %v502, %v699
        %v703 = vmul.f32 %v686, %v696
        %v704 = vmul.f32 %v689, %v700
        %v705 = vmul.f32 %v687, %v696
        %v706 = vmul.f32 %v690, %v700
        %v707 = vmul.f32 %v688, %v696
        %v708 = vmul.f32 %v691, %v700
        %709 = vrot.lane.b32.xlu0 %v509, 113
        %v710 = vpop.permute.xlu0 %709
        %711 = vrot.lane.b32.xlu0 %v511, 113
        %v712 = vpop.permute.xlu0 %711
        %713 = vrot.lane.b32.xlu0 %v513, 113
        %v714 = vpop.permute.xlu0 %713
        %715 = vrot.lane.b32.xlu0 %v510, 113
        %v716 = vpop.permute.xlu0 %715
        %717 = vrot.lane.b32.xlu0 %v512, 113
        %v718 = vpop.permute.xlu0 %717
        %719 = vrot.lane.b32.xlu0 %v514, 113
        %v720 = vpop.permute.xlu0 %719
        %vm721 = vcmp.lt.s32.totalorder %v540, 113
        %v722 = vsel %vm721, %v710, %v716
        %v723 = vsel %vm721, %v712, %v718
        %v724 = vsel %vm721, %v714, %v720
        %v725 = vsel %vm721, %v716, %v710
        %v726 = vsel %vm721, %v718, %v712
        %v727 = vsel %vm721, %v720, %v714
        %v729 = vlaneseq
        %v730 = vshrl.u32 %v729, 7
        %v731 = vsub.s32 0, %v730
        %v732 = vrot.slane %v504, %v731
        %v733 = vlaneseq
        %v734 = vshrl.u32 %v733, 7
        %v735 = vsub.s32 1, %v734
        %v736 = vrot.slane %v504, %v735
        %v739 = vmul.f32 %v722, %v732
        %v740 = vmul.f32 %v725, %v736
        %v741 = vmul.f32 %v723, %v732
        %v742 = vmul.f32 %v726, %v736
        %v743 = vmul.f32 %v724, %v732
        %v744 = vmul.f32 %v727, %v736
        %745 = vrot.lane.b32.xlu0 %v509, 112
        %v746 = vpop.permute.xlu0 %745
        %747 = vrot.lane.b32.xlu0 %v511, 112
        %v748 = vpop.permute.xlu0 %747
        %749 = vrot.lane.b32.xlu0 %v513, 112
        %v750 = vpop.permute.xlu0 %749
        %751 = vrot.lane.b32.xlu0 %v510, 112
        %v752 = vpop.permute.xlu0 %751
        %753 = vrot.lane.b32.xlu0 %v512, 112
        %v754 = vpop.permute.xlu0 %753
        %755 = vrot.lane.b32.xlu0 %v514, 112
        %v756 = vpop.permute.xlu0 %755
        %vm757 = vcmp.lt.s32.totalorder %v540, 112
        %v758 = vsel %vm757, %v746, %v752
        %v759 = vsel %vm757, %v748, %v754
        %v760 = vsel %vm757, %v750, %v756
        %v761 = vsel %vm757, %v752, %v746
        %v762 = vsel %vm757, %v754, %v748
        %v763 = vsel %vm757, %v756, %v750
        %v765 = vlaneseq
        %v766 = vshrl.u32 %v765, 7
        %v767 = vsub.s32 0, %v766
        %v768 = vrot.slane %v506, %v767
        %v769 = vlaneseq
        %v770 = vshrl.u32 %v769, 7
        %v771 = vsub.s32 1, %v770
        %v772 = vrot.slane %v506, %v771
        %v775 = vmul.f32 %v758, %v768
        %v776 = vmul.f32 %v761, %v772
        %v777 = vmul.f32 %v759, %v768
        %v778 = vmul.f32 %v762, %v772
        %v779 = vmul.f32 %v760, %v768
        %v780 = vmul.f32 %v763, %v772
        %781 = vrot.lane.b32.xlu0 %v509, 111
        %v782 = vpop.permute.xlu0 %781
        %783 = vrot.lane.b32.xlu0 %v511, 111
        %v784 = vpop.permute.xlu0 %783
        %785 = vrot.lane.b32.xlu0 %v513, 111
        %v786 = vpop.permute.xlu0 %785
        %787 = vrot.lane.b32.xlu0 %v510, 111
        %v788 = vpop.permute.xlu0 %787
        %789 = vrot.lane.b32.xlu0 %v512, 111
        %v790 = vpop.permute.xlu0 %789
        %791 = vrot.lane.b32.xlu0 %v514, 111
        %v792 = vpop.permute.xlu0 %791
        %vm793 = vcmp.lt.s32.totalorder %v540, 111
        %v794 = vsel %vm793, %v782, %v788
        %v795 = vsel %vm793, %v784, %v790
        %v796 = vsel %vm793, %v786, %v792
        %v797 = vsel %vm793, %v788, %v782
        %v798 = vsel %vm793, %v790, %v784
        %v799 = vsel %vm793, %v792, %v786
        %v801 = vlaneseq
        %v802 = vshrl.u32 %v801, 7
        %v803 = vsub.s32 0, %v802
        %v804 = vrot.slane %v508, %v803
        %v805 = vlaneseq
        %v806 = vshrl.u32 %v805, 7
        %v807 = vsub.s32 1, %v806
        %v808 = vrot.slane %v508, %v807
        %v811 = vmul.f32 %v794, %v804
        %v812 = vmul.f32 %v797, %v808
        %v813 = vmul.f32 %v795, %v804
        %v814 = vmul.f32 %v798, %v808
        %v815 = vmul.f32 %v796, %v804
        %v816 = vmul.f32 %v799, %v808
        %v817 = vld [vmem:[%s4] sm:$0xff]
        %v818 = vld [vmem:[%s4 + $0x8] sm:$0xff]
        %820 = vset.pattern.permute.xlu0 0
        %821 = vperm.xlu0 %820, %v817
        %v822 = vpop.permute.xlu0 %821
        %825 = vset.pattern.permute.xlu0 0
        %826 = vperm.xlu0 %825, %v818
        %v827 = vpop.permute.xlu0 %826
        %vm829 = vcmask 719872
        %v831 = vsel %vm829, %v524, 0
        %v834 = vsel %vm829, %v526, 0
        %836 = vmatprep.subr.mxu0 %v560
        %837 = vmatpush1.msra.mxu0 %v559
        %838 = vmatprep.subr.mxu0 %v562
        %839 = vmatpush1.msra.mxu0 %v561
        %840 = vmatprep.subr.mxu0 %v564
        %841 = vmatpush1.msra.mxu0 %v563
        %842 = vmatprep.subr.mxu0 %v596
        %843 = vmatpush1.msra.mxu0 %v595
        %844 = vmatprep.subr.mxu0 %v598
        %845 = vmatpush1.msra.mxu0 %v597
        %846 = vmatprep.subr.mxu0 %v600
        %847 = vmatpush1.msra.mxu0 %v599
        %848 = vmatprep.subr.mxu0 %v632
        %849 = vmatpush1.msra.mxu0 %v631
        %850 = vmatprep.subr.mxu0 %v634
        %851 = vmatpush1.msra.mxu0 %v633
        %852 = vmatprep.subr.mxu0 %v636
        %853 = vmatpush1.msra.mxu0 %v635
        %854 = vmatprep.subr.mxu0 %v668
        %855 = vmatpush1.msra.mxu0 %v667
        %856 = vmatprep.subr.mxu0 %v670
        %857 = vmatpush1.msra.mxu0 %v669
        %858 = vmatprep.subr.mxu0 %v672
        %859 = vmatpush1.msra.mxu0 %v671
        %860 = vmatprep.subr.mxu0 %v510
        %861 = vmatpush1.msra.mxu0 %v509
        %862 = vmatprep.subr.mxu0 %v512
        %863 = vmatpush1.msra.mxu0 %v511
        %864 = vmatprep.subr.mxu0 %v514
        %865 = vmatpush1.msra.mxu0 %v513
        %866 = vmatprep.subr.mxu0 %v704
        %867 = vmatpush1.msra.mxu0 %v703
        %868 = vmatprep.subr.mxu0 %v706
        %869 = vmatpush1.msra.mxu0 %v705
        %870 = vmatprep.subr.mxu0 %v708
        %871 = vmatpush1.msra.mxu0 %v707
        %872 = vmatprep.subr.mxu0 %v740
        %873 = vmatpush1.msra.mxu0 %v739
        %874 = vmatprep.subr.mxu0 %v742
        %875 = vmatpush1.msra.mxu0 %v741
        %876 = vmatprep.subr.mxu0 %v744
        %877 = vmatpush1.msra.mxu0 %v743
        %878 = vmatprep.subr.mxu0 %v776
        %879 = vmatpush1.msra.mxu0 %v775
        %880 = vmatprep.subr.mxu0 %v778
        %881 = vmatpush1.msra.mxu0 %v777
        %882 = vmatprep.subr.mxu0 %v780
        %883 = vmatpush1.msra.mxu0 %v779
        %884 = vmatprep.subr.mxu0 %v812
        %885 = vmatpush1.msra.mxu0 %v811
        %886 = vmatprep.subr.mxu0 %v814
        %887 = vmatpush1.msra.mxu0 %v813
        %888 = vmatprep.subr.mxu0 %v816
        %889 = vmatpush1.msra.mxu0 %v815
        %890 = vmatprep.subr.mxu0 0.0
        %891 = vmatpush1.msra.mxu0 0.0
        %892 = vmatprep.subr.mxu0 0.0
        %893 = vmatpush1.msra.mxu0 0.0
        %894 = vmatprep.subr.mxu0 0.0
        %895 = vmatpush1.msra.mxu0 0.0
        %896 = vmatprep.subr.mxu0 0.0
        %897 = vmatpush1.msra.mxu0 0.0
        %898 = vmatprep.subr.mxu0 0.0
        %899 = vmatpush1.msra.mxu0 0.0
        %900 = vmatprep.mubr.f32.mxu0 %v831
        %901 = vmatmul.mubr.f32.gmra.mrb[0].mxu0 %v523
        %v902 = vpop.f32.mrb[0].mxu0
        %v903 = vadd.f32 %v822, %v902
        %v904 = vpop.f32.mrb[0].mxu0
        %v905 = vadd.f32 %v822, %v904
        %906 = vmatprep.mubr.f32.mxu0 %v834
        %907 = vmatmul.mubr.f32.gmra.mrb[0].mxu0 %v525
        %v908 = vpop.f32.mrb[0].mxu0
        %v909 = vadd.f32 %v827, %v908
        %v910 = vpop.f32.mrb[0].mxu0
        %v911 = vadd.f32 %v827, %v910
        %912 = vdwg.mxu0
        %v913 = vld [vmem:[#allocation8] sm:$0xff]
        %v914 = vld [vmem:[#allocation8 + $0x8] sm:$0xff]
        %v915 = vld [vmem:[#allocation8 + $0x10] sm:$0xff]
        %v916 = vld [vmem:[#allocation8 + $0x18] sm:$0xff]
        %917 = vrot.lane.b32.xlu0 %v903, 17
        %v918 = vpop.permute.xlu0 %917
        %919 = vrot.lane.b32.xlu0 %v909, 17
        %v920 = vpop.permute.xlu0 %919
        %921 = vrot.lane.b32.xlu0 %v905, 17
        %v922 = vpop.permute.xlu0 %921
        %923 = vrot.lane.b32.xlu0 %v911, 17
        %v924 = vpop.permute.xlu0 %923
        %v925 = vsel %vm541, %v918, %v922
        %v926 = vsel %vm541, %v920, %v924
        %v927 = vsel %vm541, %v922, %v918
        %v928 = vsel %vm541, %v924, %v920
        %v929 = vmul.f32 %v927, %v552
        %v930 = vmul.f32 %v925, %v556
        %v931 = vmul.f32 %v928, %v552
        %v932 = vmul.f32 %v926, %v556
        %933 = vrot.lane.b32.xlu0 %v903, 16
        %v934 = vpop.permute.xlu0 %933
        %935 = vrot.lane.b32.xlu0 %v909, 16
        %v936 = vpop.permute.xlu0 %935
        %937 = vrot.lane.b32.xlu0 %v905, 16
        %v938 = vpop.permute.xlu0 %937
        %939 = vrot.lane.b32.xlu0 %v911, 16
        %v940 = vpop.permute.xlu0 %939
        %v941 = vsel %vm577, %v934, %v938
        %v942 = vsel %vm577, %v936, %v940
        %v943 = vsel %vm577, %v938, %v934
        %v944 = vsel %vm577, %v940, %v936
        %v945 = vmul.f32 %v943, %v588
        %v946 = vmul.f32 %v941, %v592
        %v947 = vmul.f32 %v944, %v588
        %v948 = vmul.f32 %v942, %v592
        %949 = vrot.lane.b32.xlu0 %v903, 15
        %v950 = vpop.permute.xlu0 %949
        %951 = vrot.lane.b32.xlu0 %v909, 15
        %v952 = vpop.permute.xlu0 %951
        %953 = vrot.lane.b32.xlu0 %v905, 15
        %v954 = vpop.permute.xlu0 %953
        %955 = vrot.lane.b32.xlu0 %v911, 15
        %v956 = vpop.permute.xlu0 %955
        %v957 = vsel %vm613, %v950, %v954
        %v958 = vsel %vm613, %v952, %v956
        %v959 = vsel %vm613, %v954, %v950
        %v960 = vsel %vm613, %v956, %v952
        %v961 = vmul.f32 %v959, %v624
        %v962 = vmul.f32 %v957, %v628
        %v963 = vmul.f32 %v960, %v624
        %v964 = vmul.f32 %v958, %v628
        %965 = vrot.lane.b32.xlu0 %v903, 1
        %v966 = vpop.permute.xlu0 %965
        %967 = vrot.lane.b32.xlu0 %v909, 1
        %v968 = vpop.permute.xlu0 %967
        %969 = vrot.lane.b32.xlu0 %v905, 1
        %v970 = vpop.permute.xlu0 %969
        %971 = vrot.lane.b32.xlu0 %v911, 1
        %v972 = vpop.permute.xlu0 %971
        %v973 = vsel %vm649, %v966, %v970
        %v974 = vsel %vm649, %v968, %v972
        %v975 = vsel %vm649, %v970, %v966
        %v976 = vsel %vm649, %v972, %v968
        %v977 = vmul.f32 %v975, %v660
        %v978 = vmul.f32 %v973, %v664
        %v979 = vmul.f32 %v976, %v660
        %v980 = vmul.f32 %v974, %v664
        %981 = vrot.lane.b32.xlu0 %v903, 127
        %v982 = vpop.permute.xlu0 %981
        %983 = vrot.lane.b32.xlu0 %v909, 127
        %v984 = vpop.permute.xlu0 %983
        %985 = vrot.lane.b32.xlu0 %v905, 127
        %v986 = vpop.permute.xlu0 %985
        %987 = vrot.lane.b32.xlu0 %v911, 127
        %v988 = vpop.permute.xlu0 %987
        %v989 = vsel %vm685, %v982, %v986
        %v990 = vsel %vm685, %v984, %v988
        %v991 = vsel %vm685, %v986, %v982
        %v992 = vsel %vm685, %v988, %v984
        %v993 = vmul.f32 %v989, %v696
        %v994 = vmul.f32 %v991, %v700
        %v995 = vmul.f32 %v990, %v696
        %v996 = vmul.f32 %v992, %v700
        %997 = vrot.lane.b32.xlu0 %v903, 113
        %v998 = vpop.permute.xlu0 %997
        %999 = vrot.lane.b32.xlu0 %v909, 113
        %v1000 = vpop.permute.xlu0 %999
        %1001 = vrot.lane.b32.xlu0 %v905, 113
        %v1002 = vpop.permute.xlu0 %1001
        %1003 = vrot.lane.b32.xlu0 %v911, 113
        %v1004 = vpop.permute.xlu0 %1003
        %v1005 = vsel %vm721, %v998, %v1002
        %v1006 = vsel %vm721, %v1000, %v1004
        %v1007 = vsel %vm721, %v1002, %v998
        %v1008 = vsel %vm721, %v1004, %v1000
        %v1009 = vmul.f32 %v1005, %v732
        %v1010 = vmul.f32 %v1007, %v736
        %v1011 = vmul.f32 %v1006, %v732
        %v1012 = vmul.f32 %v1008, %v736
        %1013 = vrot.lane.b32.xlu0 %v903, 112
        %v1014 = vpop.permute.xlu0 %1013
        %1015 = vrot.lane.b32.xlu0 %v909, 112
        %v1016 = vpop.permute.xlu0 %1015
        %1017 = vrot.lane.b32.xlu0 %v905, 112
        %v1018 = vpop.permute.xlu0 %1017
        %1019 = vrot.lane.b32.xlu0 %v911, 112
        %v1020 = vpop.permute.xlu0 %1019
        %v1021 = vsel %vm757, %v1014, %v1018
        %v1022 = vsel %vm757, %v1016, %v1020
        %v1023 = vsel %vm757, %v1018, %v1014
        %v1024 = vsel %vm757, %v1020, %v1016
        %v1025 = vmul.f32 %v1021, %v768
        %v1026 = vmul.f32 %v1023, %v772
        %v1027 = vmul.f32 %v1022, %v768
        %v1028 = vmul.f32 %v1024, %v772
        %1029 = vrot.lane.b32.xlu0 %v903, 111
        %v1030 = vpop.permute.xlu0 %1029
        %1031 = vrot.lane.b32.xlu0 %v909, 111
        %v1032 = vpop.permute.xlu0 %1031
        %1033 = vrot.lane.b32.xlu0 %v905, 111
        %v1034 = vpop.permute.xlu0 %1033
        %1035 = vrot.lane.b32.xlu0 %v911, 111
        %v1036 = vpop.permute.xlu0 %1035
        %v1037 = vsel %vm793, %v1030, %v1034
        %v1038 = vsel %vm793, %v1032, %v1036
        %v1039 = vsel %vm793, %v1034, %v1030
        %v1040 = vsel %vm793, %v1036, %v1032
        %v1041 = vmul.f32 %v1037, %v804
        %v1042 = vmul.f32 %v1039, %v808
        %v1043 = vmul.f32 %v1038, %v804
        %v1044 = vmul.f32 %v1040, %v808
        %v1045 = vld [vmem:[%s6] sm:$0xff]
        %v1046 = vld [vmem:[%s6 + $0x8] sm:$0xff]
        %1048 = vset.pattern.permute.xlu0 0
        %1049 = vperm.xlu0 %1048, %v1045
        %v1050 = vpop.permute.xlu0 %1049
        %1053 = vset.pattern.permute.xlu0 0
        %1054 = vperm.xlu0 %1053, %v1046
        %v1055 = vpop.permute.xlu0 %1054
        %vm1057 = vcmask 130048
        %v1059 = vsel %vm1057, %v914, 0
        %v1062 = vsel %vm1057, %v916, 0
        %1064 = vmatprep.subr.mxu0 %v930
        %1065 = vmatpush1.msra.mxu0 %v929
        %1066 = vmatprep.subr.mxu0 %v932
        %1067 = vmatpush1.msra.mxu0 %v931
        %1068 = vmatprep.subr.mxu0 %v946
        %1069 = vmatpush1.msra.mxu0 %v945
        %1070 = vmatprep.subr.mxu0 %v948
        %1071 = vmatpush1.msra.mxu0 %v947
        %1072 = vmatprep.subr.mxu0 %v962
        %1073 = vmatpush1.msra.mxu0 %v961
        %1074 = vmatprep.subr.mxu0 %v964
        %1075 = vmatpush1.msra.mxu0 %v963
        %1076 = vmatprep.subr.mxu0 %v978
        %1077 = vmatpush1.msra.mxu0 %v977
        %1078 = vmatprep.subr.mxu0 %v980
        %1079 = vmatpush1.msra.mxu0 %v979
        %1080 = vmatprep.subr.mxu0 %v905
        %1081 = vmatpush1.msra.mxu0 %v903
        %1082 = vmatprep.subr.mxu0 %v911
        %1083 = vmatpush1.msra.mxu0 %v909
        %1084 = vmatprep.subr.mxu0 %v994
        %1085 = vmatpush1.msra.mxu0 %v993
        %1086 = vmatprep.subr.mxu0 %v996
        %1087 = vmatpush1.msra.mxu0 %v995
        %1088 = vmatprep.subr.mxu0 %v1010
        %1089 = vmatpush1.msra.mxu0 %v1009
        %1090 = vmatprep.subr.mxu0 %v1012
        %1091 = vmatpush1.msra.mxu0 %v1011
        %1092 = vmatprep.subr.mxu0 %v1026
        %1093 = vmatpush1.msra.mxu0 %v1025
        %1094 = vmatprep.subr.mxu0 %v1028
        %1095 = vmatpush1.msra.mxu0 %v1027
        %1096 = vmatprep.subr.mxu0 %v1042
        %1097 = vmatpush1.msra.mxu0 %v1041
        %1098 = vmatprep.subr.mxu0 %v1044
        %1099 = vmatpush1.msra.mxu0 %v1043
        %1100 = vmatprep.subr.mxu0 0.0
        %1101 = vmatpush1.msra.mxu0 0.0
        %1102 = vmatprep.subr.mxu0 0.0
        %1103 = vmatpush1.msra.mxu0 0.0
        %1104 = vmatprep.subr.mxu0 0.0
        %1105 = vmatpush1.msra.mxu0 0.0
        %1106 = vmatprep.subr.mxu0 0.0
        %1107 = vmatpush1.msra.mxu0 0.0
        %1108 = vmatprep.subr.mxu0 0.0
        %1109 = vmatpush1.msra.mxu0 0.0
        %1110 = vmatprep.subr.mxu0 0.0
        %1111 = vmatpush1.msra.mxu0 0.0
        %1112 = vmatprep.subr.mxu0 0.0
        %1113 = vmatpush1.msra.mxu0 0.0
        %1114 = vmatprep.subr.mxu0 0.0
        %1115 = vmatpush1.msra.mxu0 0.0
        %1116 = vmatprep.subr.mxu0 0.0
        %1117 = vmatpush1.msra.mxu0 0.0
        %1118 = vmatprep.subr.mxu0 0.0
        %1119 = vmatpush1.msra.mxu0 0.0
        %1120 = vmatprep.subr.mxu0 0.0
        %1121 = vmatpush1.msra.mxu0 0.0
        %1122 = vmatprep.subr.mxu0 0.0
        %1123 = vmatpush1.msra.mxu0 0.0
        %1124 = vmatprep.subr.mxu0 0.0
        %1125 = vmatpush1.msra.mxu0 0.0
        %1126 = vmatprep.subr.mxu0 0.0
        %1127 = vmatpush1.msra.mxu0 0.0
        %1128 = vmatprep.mubr.f32.mxu0 %v1059
        %1129 = vmatmul.mubr.f32.gmra.mrb[0].mxu0 %v913
        %v1130 = vpop.f32.mrb[0].mxu0
        %v1131 = vadd.f32 %v1050, %v1130
        %v1132 = vpop.f32.mrb[0].mxu0
        %v1133 = vadd.f32 %v1050, %v1132
        %1134 = vmatprep.mubr.f32.mxu0 %v1062
        %1135 = vmatmul.mubr.f32.gmra.mrb[0].mxu0 %v915
        %v1136 = vpop.f32.mrb[0].mxu0
        %v1137 = vadd.f32 %v1055, %v1136
        %v1138 = vpop.f32.mrb[0].mxu0
        %v1139 = vadd.f32 %v1055, %v1138
        %1140 = vdwg.mxu0
        %v1141 = vld [vmem:[%s9] sm:$0xff]
        %v1142 = vld [vmem:[%s9 + $0x8] sm:$0xff]
        %v1144 = vlaneseq
        %v1145 = vshrl.u32 %v1144, 7
        %v1146 = vsub.s32 0, %v1145
        %v1147 = vrot.slane %v522, %v1146
        %v1148 = vlaneseq
        %v1149 = vshrl.u32 %v1148, 7
        %v1150 = vsub.s32 1, %v1149
        %v1151 = vrot.slane %v522, %v1150
        %1154 = vrot.lane.b32.xlu0 %v1147, 17
        %v1155 = vpop.permute.xlu0 %1154
        %1156 = vrot.lane.b32.xlu0 %v1151, 17
        %v1157 = vpop.permute.xlu0 %1156
        %v1158 = vsel %vm541, %v1155, %v1157
        %v1159 = vsel %vm541, %v1157, %v1155
        %v1160 = vmul.f32 %v1159, %v552
        %v1161 = vmul.f32 %v1158, %v556
        %1163 = vset.pattern.permute.xlu0 0
        %1164 = vperm.xlu0 %1163, %v1141
        %v1165 = vpop.permute.xlu0 %1164
        %1168 = vset.pattern.permute.xlu0 0
        %1169 = vperm.xlu0 %1168, %v1142
        %v1170 = vpop.permute.xlu0 %1169
        %v1172 = vlaneseq
        %v1173 = vshrl.u32 %v1172, 7
        %v1174 = vsub.s32 0, %v1173
        %v1175 = vrot.slane %v1160, %v1174
        %v1176 = vlaneseq
        %v1177 = vshrl.u32 %v1176, 7
        %v1178 = vsub.s32 0, %v1177
        %v1179 = vrot.slane %v1161, %v1178
        %v1180 = vmul.f32 %v1165, %v1175
        %v1181 = vmul.f32 %v1165, %v1179
        %v1182 = vmul.f32 %v1170, %v1175
        %v1183 = vmul.f32 %v1170, %v1179
        %1184 = vrot.lane.b32.xlu0 %v1147, 16
        %v1185 = vpop.permute.xlu0 %1184
        %1186 = vrot.lane.b32.xlu0 %v1151, 16
        %v1187 = vpop.permute.xlu0 %1186
        %v1188 = vsel %vm577, %v1185, %v1187
        %v1189 = vsel %vm577, %v1187, %v1185
        %v1190 = vmul.f32 %v1189, %v588
        %v1191 = vmul.f32 %v1188, %v592
        %1192 = vset.pattern.permute.xlu0 1
        %1193 = vperm.xlu0 %1192, %v1141
        %v1194 = vpop.permute.xlu0 %1193
        %1196 = vset.pattern.permute.xlu0 1
        %1197 = vperm.xlu0 %1196, %v1142
        %v1198 = vpop.permute.xlu0 %1197
        %v1200 = vlaneseq
        %v1201 = vshrl.u32 %v1200, 7
        %v1202 = vsub.s32 0, %v1201
        %v1203 = vrot.slane %v1190, %v1202
        %v1204 = vlaneseq
        %v1205 = vshrl.u32 %v1204, 7
        %v1206 = vsub.s32 0, %v1205
        %v1207 = vrot.slane %v1191, %v1206
        %v1208 = vmul.f32 %v1194, %v1203
        %v1209 = vmul.f32 %v1194, %v1207
        %v1210 = vmul.f32 %v1198, %v1203
        %v1211 = vmul.f32 %v1198, %v1207
        %v1212 = vadd.f32 %v1180, %v1208
        %v1213 = vadd.f32 %v1181, %v1209
        %v1214 = vadd.f32 %v1182, %v1210
        %v1215 = vadd.f32 %v1183, %v1211
        %1216 = vrot.lane.b32.xlu0 %v1147, 15
        %v1217 = vpop.permute.xlu0 %1216
        %1218 = vrot.lane.b32.xlu0 %v1151, 15
        %v1219 = vpop.permute.xlu0 %1218
        %v1220 = vsel %vm613, %v1217, %v1219
        %v1221 = vsel %vm613, %v1219, %v1217
        %v1222 = vmul.f32 %v1221, %v624
        %v1223 = vmul.f32 %v1220, %v628
        %1224 = vset.pattern.permute.xlu0 2
        %1225 = vperm.xlu0 %1224, %v1141
        %v1226 = vpop.permute.xlu0 %1225
        %1228 = vset.pattern.permute.xlu0 2
        %1229 = vperm.xlu0 %1228, %v1142
        %v1230 = vpop.permute.xlu0 %1229
        %v1232 = vlaneseq
        %v1233 = vshrl.u32 %v1232, 7
        %v1234 = vsub.s32 0, %v1233
        %v1235 = vrot.slane %v1222, %v1234
        %v1236 = vlaneseq
        %v1237 = vshrl.u32 %v1236, 7
        %v1238 = vsub.s32 0, %v1237
        %v1239 = vrot.slane %v1223, %v1238
        %v1240 = vmul.f32 %v1226, %v1235
        %v1241 = vmul.f32 %v1226, %v1239
        %v1242 = vmul.f32 %v1230, %v1235
        %v1243 = vmul.f32 %v1230, %v1239
        %v1244 = vadd.f32 %v1212, %v1240
        %v1245 = vadd.f32 %v1213, %v1241
        %v1246 = vadd.f32 %v1214, %v1242
        %v1247 = vadd.f32 %v1215, %v1243
        %1248 = vrot.lane.b32.xlu0 %v1147, 1
        %v1249 = vpop.permute.xlu0 %1248
        %1250 = vrot.lane.b32.xlu0 %v1151, 1
        %v1251 = vpop.permute.xlu0 %1250
        %v1252 = vsel %vm649, %v1249, %v1251
        %v1253 = vsel %vm649, %v1251, %v1249
        %v1254 = vmul.f32 %v1253, %v660
        %v1255 = vmul.f32 %v1252, %v664
        %1256 = vset.pattern.permute.xlu0 3
        %1257 = vperm.xlu0 %1256, %v1141
        %v1258 = vpop.permute.xlu0 %1257
        %1260 = vset.pattern.permute.xlu0 3
        %1261 = vperm.xlu0 %1260, %v1142
        %v1262 = vpop.permute.xlu0 %1261
        %v1264 = vlaneseq
        %v1265 = vshrl.u32 %v1264, 7
        %v1266 = vsub.s32 0, %v1265
        %v1267 = vrot.slane %v1254, %v1266
        %v1268 = vlaneseq
        %v1269 = vshrl.u32 %v1268, 7
        %v1270 = vsub.s32 0, %v1269
        %v1271 = vrot.slane %v1255, %v1270
        %v1272 = vmul.f32 %v1258, %v1267
        %v1273 = vmul.f32 %v1258, %v1271
        %v1274 = vmul.f32 %v1262, %v1267
        %v1275 = vmul.f32 %v1262, %v1271
        %v1276 = vadd.f32 %v1244, %v1272
        %v1277 = vadd.f32 %v1245, %v1273
        %v1278 = vadd.f32 %v1246, %v1274
        %v1279 = vadd.f32 %v1247, %v1275
        %1280 = vset.pattern.permute.xlu0 4
        %1281 = vperm.xlu0 %1280, %v1141
        %v1282 = vpop.permute.xlu0 %1281
        %1284 = vset.pattern.permute.xlu0 4
        %1285 = vperm.xlu0 %1284, %v1142
        %v1286 = vpop.permute.xlu0 %1285
        %v1288 = vmul.f32 %v1282, %v1147
        %v1289 = vmul.f32 %v1282, %v1151
        %v1290 = vmul.f32 %v1286, %v1147
        %v1291 = vmul.f32 %v1286, %v1151
        %v1292 = vadd.f32 %v1276, %v1288
        %v1293 = vadd.f32 %v1277, %v1289
        %v1294 = vadd.f32 %v1278, %v1290
        %v1295 = vadd.f32 %v1279, %v1291
        %1296 = vrot.lane.b32.xlu0 %v1147, 127
        %v1297 = vpop.permute.xlu0 %1296
        %1298 = vrot.lane.b32.xlu0 %v1151, 127
        %v1299 = vpop.permute.xlu0 %1298
        %v1300 = vsel %vm685, %v1297, %v1299
        %v1301 = vsel %vm685, %v1299, %v1297
        %v1302 = vmul.f32 %v1300, %v696
        %v1303 = vmul.f32 %v1301, %v700
        %1304 = vset.pattern.permute.xlu0 5
        %1305 = vperm.xlu0 %1304, %v1141
        %v1306 = vpop.permute.xlu0 %1305
        %1308 = vset.pattern.permute.xlu0 5
        %1309 = vperm.xlu0 %1308, %v1142
        %v1310 = vpop.permute.xlu0 %1309
        %v1312 = vlaneseq
        %v1313 = vshrl.u32 %v1312, 7
        %v1314 = vsub.s32 0, %v1313
        %v1315 = vrot.slane %v1302, %v1314
        %v1316 = vlaneseq
        %v1317 = vshrl.u32 %v1316, 7
        %v1318 = vsub.s32 0, %v1317
        %v1319 = vrot.slane %v1303, %v1318
        %v1320 = vmul.f32 %v1306, %v1315
        %v1321 = vmul.f32 %v1306, %v1319
        %v1322 = vmul.f32 %v1310, %v1315
        %v1323 = vmul.f32 %v1310, %v1319
        %v1324 = vadd.f32 %v1292, %v1320
        %v1325 = vadd.f32 %v1293, %v1321
        %v1326 = vadd.f32 %v1294, %v1322
        %v1327 = vadd.f32 %v1295, %v1323
        %1328 = vrot.lane.b32.xlu0 %v1147, 113
        %v1329 = vpop.permute.xlu0 %1328
        %1330 = vrot.lane.b32.xlu0 %v1151, 113
        %v1331 = vpop.permute.xlu0 %1330
        %v1332 = vsel %vm721, %v1329, %v1331
        %v1333 = vsel %vm721, %v1331, %v1329
        %v1334 = vmul.f32 %v1332, %v732
        %v1335 = vmul.f32 %v1333, %v736
        %1336 = vset.pattern.permute.xlu0 6
        %1337 = vperm.xlu0 %1336, %v1141
        %v1338 = vpop.permute.xlu0 %1337
        %1340 = vset.pattern.permute.xlu0 6
        %1341 = vperm.xlu0 %1340, %v1142
        %v1342 = vpop.permute.xlu0 %1341
        %v1344 = vlaneseq
        %v1345 = vshrl.u32 %v1344, 7
        %v1346 = vsub.s32 0, %v1345
        %v1347 = vrot.slane %v1334, %v1346
        %v1348 = vlaneseq
        %v1349 = vshrl.u32 %v1348, 7
        %v1350 = vsub.s32 0, %v1349
        %v1351 = vrot.slane %v1335, %v1350
        %v1352 = vmul.f32 %v1338, %v1347
        %v1353 = vmul.f32 %v1338, %v1351
        %v1354 = vmul.f32 %v1342, %v1347
        %v1355 = vmul.f32 %v1342, %v1351
        %v1356 = vadd.f32 %v1324, %v1352
        %v1357 = vadd.f32 %v1325, %v1353
        %v1358 = vadd.f32 %v1326, %v1354
        %v1359 = vadd.f32 %v1327, %v1355
        %1360 = vrot.lane.b32.xlu0 %v1147, 112
        %v1361 = vpop.permute.xlu0 %1360
        %1362 = vrot.lane.b32.xlu0 %v1151, 112
        %v1363 = vpop.permute.xlu0 %1362
        %v1364 = vsel %vm757, %v1361, %v1363
        %v1365 = vsel %vm757, %v1363, %v1361
        %v1366 = vmul.f32 %v1364, %v768
        %v1367 = vmul.f32 %v1365, %v772
        %1368 = vset.pattern.permute.xlu0 7
        %1369 = vperm.xlu0 %1368, %v1141
        %v1370 = vpop.permute.xlu0 %1369
        %1372 = vset.pattern.permute.xlu0 7
        %1373 = vperm.xlu0 %1372, %v1142
        %v1374 = vpop.permute.xlu0 %1373
        %v1376 = vlaneseq
        %v1377 = vshrl.u32 %v1376, 7
        %v1378 = vsub.s32 0, %v1377
        %v1379 = vrot.slane %v1366, %v1378
        %v1380 = vlaneseq
        %v1381 = vshrl.u32 %v1380, 7
        %v1382 = vsub.s32 0, %v1381
        %v1383 = vrot.slane %v1367, %v1382
        %v1384 = vmul.f32 %v1370, %v1379
        %v1385 = vmul.f32 %v1370, %v1383
        %v1386 = vmul.f32 %v1374, %v1379
        %v1387 = vmul.f32 %v1374, %v1383
        %v1388 = vadd.f32 %v1356, %v1384
        %v1389 = vadd.f32 %v1357, %v1385
        %v1390 = vadd.f32 %v1358, %v1386
        %v1391 = vadd.f32 %v1359, %v1387
        %1392 = vrot.lane.b32.xlu0 %v1147, 111
        %v1393 = vpop.permute.xlu0 %1392
        %1394 = vrot.lane.b32.xlu0 %v1151, 111
        %v1395 = vpop.permute.xlu0 %1394
        %v1396 = vsel %vm793, %v1393, %v1395
        %v1397 = vsel %vm793, %v1395, %v1393
        %v1398 = vmul.f32 %v1396, %v804
        %v1399 = vmul.f32 %v1397, %v808
        %1400 = vset.pattern.permute.xlu0 8
        %1401 = vperm.xlu0 %1400, %v1141
        %v1402 = vpop.permute.xlu0 %1401
        %1404 = vset.pattern.permute.xlu0 8
        %1405 = vperm.xlu0 %1404, %v1142
        %v1406 = vpop.permute.xlu0 %1405
        %v1408 = vlaneseq
        %v1409 = vshrl.u32 %v1408, 7
        %v1410 = vsub.s32 0, %v1409
        %v1411 = vrot.slane %v1398, %v1410
        %v1412 = vlaneseq
        %v1413 = vshrl.u32 %v1412, 7
        %v1414 = vsub.s32 0, %v1413
        %v1415 = vrot.slane %v1399, %v1414
        %v1416 = vmul.f32 %v1402, %v1411
        %v1417 = vmul.f32 %v1402, %v1415
        %v1418 = vmul.f32 %v1406, %v1411
        %v1419 = vmul.f32 %v1406, %v1415
        %v1420 = vadd.f32 %v1388, %v1416
        %v1421 = vadd.f32 %v1389, %v1417
        %v1422 = vadd.f32 %v1390, %v1418
        %v1423 = vadd.f32 %v1391, %v1419
        %v1424 = vadd.f32 %v1131, %v1420
        %v1425 = vadd.f32 %v1133, %v1421
        %v1426 = vadd.f32 %v1137, %v1422
        %v1427 = vadd.f32 %v1139, %v1423
        %v1428 = vmax.f32 %v1424, 0.0
        %v1429 = vmax.f32 %v1425, 0.0
        %v1430 = vmax.f32 %v1426, 0.0
        %v1431 = vmax.f32 %v1427, 0.0
        %v1432 = vadd.f32 %v903, %v1428
        %v1433 = vadd.f32 %v905, %v1429
        %v1434 = vadd.f32 %v909, %v1430
        %v1435 = vadd.f32 %v911, %v1431
        %1436 = vrot.lane.b32.xlu0 %v1432, 17
        %v1437 = vpop.permute.xlu0 %1436
        %1438 = vrot.lane.b32.xlu0 %v1434, 17
        %v1439 = vpop.permute.xlu0 %1438
        %1440 = vrot.lane.b32.xlu0 %v1433, 17
        %v1441 = vpop.permute.xlu0 %1440
        %1442 = vrot.lane.b32.xlu0 %v1435, 17
        %v1443 = vpop.permute.xlu0 %1442
        %v1444 = vsel %vm541, %v1437, %v1441
        %v1445 = vsel %vm541, %v1439, %v1443
        %v1446 = vsel %vm541, %v1441, %v1437
        %v1447 = vsel %vm541, %v1443, %v1439
        %v1448 = vmul.f32 %v1446, %v552
        %v1449 = vmul.f32 %v1444, %v556
        %v1450 = vmul.f32 %v1447, %v552
        %v1451 = vmul.f32 %v1445, %v556
        %1452 = vrot.lane.b32.xlu0 %v1432, 16
        %v1453 = vpop.permute.xlu0 %1452
        %1454 = vrot.lane.b32.xlu0 %v1434, 16
        %v1455 = vpop.permute.xlu0 %1454
        %1456 = vrot.lane.b32.xlu0 %v1433, 16
        %v1457 = vpop.permute.xlu0 %1456
        %1458 = vrot.lane.b32.xlu0 %v1435, 16
        %v1459 = vpop.permute.xlu0 %1458
        %v1460 = vsel %vm577, %v1453, %v1457
        %v1461 = vsel %vm577, %v1455, %v1459
        %v1462 = vsel %vm577, %v1457, %v1453
        %v1463 = vsel %vm577, %v1459, %v1455
        %v1464 = vmul.f32 %v1462, %v588
        %v1465 = vmul.f32 %v1460, %v592
        %v1466 = vmul.f32 %v1463, %v588
        %v1467 = vmul.f32 %v1461, %v592
        %1468 = vrot.lane.b32.xlu0 %v1432, 15
        %v1469 = vpop.permute.xlu0 %1468
        %1470 = vrot.lane.b32.xlu0 %v1434, 15
        %v1471 = vpop.permute.xlu0 %1470
        %1472 = vrot.lane.b32.xlu0 %v1433, 15
        %v1473 = vpop.permute.xlu0 %1472
        %1474 = vrot.lane.b32.xlu0 %v1435, 15
        %v1475 = vpop.permute.xlu0 %1474
        %v1476 = vsel %vm613, %v1469, %v1473
        %v1477 = vsel %vm613, %v1471, %v1475
        %v1478 = vsel %vm613, %v1473, %v1469
        %v1479 = vsel %vm613, %v1475, %v1471
        %v1480 = vmul.f32 %v1478, %v624
        %v1481 = vmul.f32 %v1476, %v628
        %v1482 = vmul.f32 %v1479, %v624
        %v1483 = vmul.f32 %v1477, %v628
        %1484 = vrot.lane.b32.xlu0 %v1432, 1
        %v1485 = vpop.permute.xlu0 %1484
        %1486 = vrot.lane.b32.xlu0 %v1434, 1
        %v1487 = vpop.permute.xlu0 %1486
        %1488 = vrot.lane.b32.xlu0 %v1433, 1
        %v1489 = vpop.permute.xlu0 %1488
        %1490 = vrot.lane.b32.xlu0 %v1435, 1
        %v1491 = vpop.permute.xlu0 %1490
        %v1492 = vsel %vm649, %v1485, %v1489
        %v1493 = vsel %vm649, %v1487, %v1491
        %v1494 = vsel %vm649, %v1489, %v1485
        %v1495 = vsel %vm649, %v1491, %v1487
        %v1496 = vmul.f32 %v1494, %v660
        %v1497 = vmul.f32 %v1492, %v664
        %v1498 = vmul.f32 %v1495, %v660
        %v1499 = vmul.f32 %v1493, %v664
        %1500 = vrot.lane.b32.xlu0 %v1432, 127
        %v1501 = vpop.permute.xlu0 %1500
        %1502 = vrot.lane.b32.xlu0 %v1434, 127
        %v1503 = vpop.permute.xlu0 %1502
        %1504 = vrot.lane.b32.xlu0 %v1433, 127
        %v1505 = vpop.permute.xlu0 %1504
        %1506 = vrot.lane.b32.xlu0 %v1435, 127
        %v1507 = vpop.permute.xlu0 %1506
        %v1508 = vsel %vm685, %v1501, %v1505
        %v1509 = vsel %vm685, %v1503, %v1507
        %v1510 = vsel %vm685, %v1505, %v1501
        %v1511 = vsel %vm685, %v1507, %v1503
        %v1512 = vmul.f32 %v1508, %v696
        %v1513 = vmul.f32 %v1510, %v700
        %v1514 = vmul.f32 %v1509, %v696
        %v1515 = vmul.f32 %v1511, %v700
        %1516 = vrot.lane.b32.xlu0 %v1432, 113
        %v1517 = vpop.permute.xlu0 %1516
        %1518 = vrot.lane.b32.xlu0 %v1434, 113
        %v1519 = vpop.permute.xlu0 %1518
        %1520 = vrot.lane.b32.xlu0 %v1433, 113
        %v1521 = vpop.permute.xlu0 %1520
        %1522 = vrot.lane.b32.xlu0 %v1435, 113
        %v1523 = vpop.permute.xlu0 %1522
        %v1524 = vsel %vm721, %v1517, %v1521
        %v1525 = vsel %vm721, %v1519, %v1523
        %v1526 = vsel %vm721, %v1521, %v1517
        %v1527 = vsel %vm721, %v1523, %v1519
        %v1528 = vmul.f32 %v1524, %v732
        %v1529 = vmul.f32 %v1526, %v736
        %v1530 = vmul.f32 %v1525, %v732
        %v1531 = vmul.f32 %v1527, %v736
        %1532 = vrot.lane.b32.xlu0 %v1432, 112
        %v1533 = vpop.permute.xlu0 %1532
        %1534 = vrot.lane.b32.xlu0 %v1434, 112
        %v1535 = vpop.permute.xlu0 %1534
        %1536 = vrot.lane.b32.xlu0 %v1433, 112
        %v1537 = vpop.permute.xlu0 %1536
        %1538 = vrot.lane.b32.xlu0 %v1435, 112
        %v1539 = vpop.permute.xlu0 %1538
        %v1540 = vsel %vm757, %v1533, %v1537
        %v1541 = vsel %vm757, %v1535, %v1539
        %v1542 = vsel %vm757, %v1537, %v1533
        %v1543 = vsel %vm757, %v1539, %v1535
        %v1544 = vmul.f32 %v1540, %v768
        %v1545 = vmul.f32 %v1542, %v772
        %v1546 = vmul.f32 %v1541, %v768
        %v1547 = vmul.f32 %v1543, %v772
        %1548 = vrot.lane.b32.xlu0 %v1432, 111
        %v1549 = vpop.permute.xlu0 %1548
        %1550 = vrot.lane.b32.xlu0 %v1434, 111
        %v1551 = vpop.permute.xlu0 %1550
        %1552 = vrot.lane.b32.xlu0 %v1433, 111
        %v1553 = vpop.permute.xlu0 %1552
        %1554 = vrot.lane.b32.xlu0 %v1435, 111
        %v1555 = vpop.permute.xlu0 %1554
        %v1556 = vsel %vm793, %v1549, %v1553
        %v1557 = vsel %vm793, %v1551, %v1555
        %v1558 = vsel %vm793, %v1553, %v1549
        %v1559 = vsel %vm793, %v1555, %v1551
        %v1560 = vmul.f32 %v1556, %v804
        %v1561 = vmul.f32 %v1558, %v808
        %v1562 = vmul.f32 %v1557, %v804
        %v1563 = vmul.f32 %v1559, %v808
        %v1564 = vld [vmem:[%s7] sm:$0xff]
        %v1565 = vld [vmem:[%s7 + $0x8] sm:$0xff]
        %v1566 = vld [vmem:[%s7 + $0x10] sm:$0xff]
        %v1567 = vld [vmem:[%s7 + $0x18] sm:$0xff]
        %v1568 = vld [vmem:[%s7 + $0x20] sm:$0xff]
        %v1569 = vld [vmem:[%s7 + $0x28] sm:$0xff]
        %v1570 = vld [vmem:[%s8] sm:$0xff]
        %v1571 = vld [vmem:[%s8 + $0x8] sm:$0xff]
        %v1572 = vld [vmem:[%s8 + $0x10] sm:$0xff]
        %1574 = vset.pattern.permute.xlu0 0
        %1575 = vperm.xlu0 %1574, %v1570
        %v1576 = vpop.permute.xlu0 %1575
        %1579 = vset.pattern.permute.xlu0 0
        %1580 = vperm.xlu0 %1579, %v1571
        %v1581 = vpop.permute.xlu0 %1580
        %1584 = vset.pattern.permute.xlu0 0
        %1585 = vperm.xlu0 %1584, %v1572
        %v1586 = vpop.permute.xlu0 %1585
        %v1589 = vsel %vm1057, %v1565, 0
        %v1592 = vsel %vm1057, %v1567, 0
        %v1595 = vsel %vm1057, %v1569, 0
        %1597 = vmatprep.subr.mxu0 %v1449
        %1598 = vmatpush1.msra.mxu0 %v1448
        %1599 = vmatprep.subr.mxu0 %v1451
        %1600 = vmatpush1.msra.mxu0 %v1450
        %1601 = vmatprep.subr.mxu0 %v1465
        %1602 = vmatpush1.msra.mxu0 %v1464
        %1603 = vmatprep.subr.mxu0 %v1467
        %1604 = vmatpush1.msra.mxu0 %v1466
        %1605 = vmatprep.subr.mxu0 %v1481
        %1606 = vmatpush1.msra.mxu0 %v1480
        %1607 = vmatprep.subr.mxu0 %v1483
        %1608 = vmatpush1.msra.mxu0 %v1482
        %1609 = vmatprep.subr.mxu0 %v1497
        %1610 = vmatpush1.msra.mxu0 %v1496
        %1611 = vmatprep.subr.mxu0 %v1499
        %1612 = vmatpush1.msra.mxu0 %v1498
        %1613 = vmatprep.subr.mxu0 %v1433
        %1614 = vmatpush1.msra.mxu0 %v1432
        %1615 = vmatprep.subr.mxu0 %v1435
        %1616 = vmatpush1.msra.mxu0 %v1434
        %1617 = vmatprep.subr.mxu0 %v1513
        %1618 = vmatpush1.msra.mxu0 %v1512
        %1619 = vmatprep.subr.mxu0 %v1515
        %1620 = vmatpush1.msra.mxu0 %v1514
        %1621 = vmatprep.subr.mxu0 %v1529
        %1622 = vmatpush1.msra.mxu0 %v1528
        %1623 = vmatprep.subr.mxu0 %v1531
        %1624 = vmatpush1.msra.mxu0 %v1530
        %1625 = vmatprep.subr.mxu0 %v1545
        %1626 = vmatpush1.msra.mxu0 %v1544
        %1627 = vmatprep.subr.mxu0 %v1547
        %1628 = vmatpush1.msra.mxu0 %v1546
        %1629 = vmatprep.subr.mxu0 %v1561
        %1630 = vmatpush1.msra.mxu0 %v1560
        %1631 = vmatprep.subr.mxu0 %v1563
        %1632 = vmatpush1.msra.mxu0 %v1562
        %1633 = vmatprep.subr.mxu0 0.0
        %1634 = vmatpush1.msra.mxu0 0.0
        %1635 = vmatprep.subr.mxu0 0.0
        %1636 = vmatpush1.msra.mxu0 0.0
        %1637 = vmatprep.subr.mxu0 0.0
        %1638 = vmatpush1.msra.mxu0 0.0
        %1639 = vmatprep.subr.mxu0 0.0
        %1640 = vmatpush1.msra.mxu0 0.0
        %1641 = vmatprep.subr.mxu0 0.0
        %1642 = vmatpush1.msra.mxu0 0.0
        %1643 = vmatprep.subr.mxu0 0.0
        %1644 = vmatpush1.msra.mxu0 0.0
        %1645 = vmatprep.subr.mxu0 0.0
        %1646 = vmatpush1.msra.mxu0 0.0
        %1647 = vmatprep.subr.mxu0 0.0
        %1648 = vmatpush1.msra.mxu0 0.0
        %1649 = vmatprep.subr.mxu0 0.0
        %1650 = vmatpush1.msra.mxu0 0.0
        %1651 = vmatprep.subr.mxu0 0.0
        %1652 = vmatpush1.msra.mxu0 0.0
        %1653 = vmatprep.subr.mxu0 0.0
        %1654 = vmatpush1.msra.mxu0 0.0
        %1655 = vmatprep.subr.mxu0 0.0
        %1656 = vmatpush1.msra.mxu0 0.0
        %1657 = vmatprep.subr.mxu0 0.0
        %1658 = vmatpush1.msra.mxu0 0.0
        %1659 = vmatprep.subr.mxu0 0.0
        %1660 = vmatpush1.msra.mxu0 0.0
        %1661 = vmatprep.mubr.f32.mxu0 %v1589
        %1662 = vmatmul.mubr.f32.gmra.mrb[0].mxu0 %v1564
        %v1663 = vpop.f32.mrb[0].mxu0
        %v1664 = vadd.f32 %v1576, %v1663
        %v1665 = vpop.f32.mrb[0].mxu0
        %v1666 = vadd.f32 %v1576, %v1665
        %1667 = vmatprep.mubr.f32.mxu0 %v1592
        %1668 = vmatmul.mubr.f32.gmra.mrb[0].mxu0 %v1566
        %v1669 = vpop.f32.mrb[0].mxu0
        %v1670 = vadd.f32 %v1581, %v1669
        %v1671 = vpop.f32.mrb[0].mxu0
        %v1672 = vadd.f32 %v1581, %v1671
        %1673 = vmatprep.mubr.f32.mxu0 %v1595
        %1674 = vmatmul.mubr.f32.gmra.mrb[0].mxu0 %v1568
        %v1675 = vpop.f32.mrb[0].mxu0
        %v1676 = vadd.f32 %v1586, %v1675
        %v1677 = vpop.f32.mrb[0].mxu0
        %v1678 = vadd.f32 %v1586, %v1677
        %1679 = vdwg.mxu0
        %v1682 = vcombine.low %v1676, %v1678
        %v1684 = vunpack.c.l.s4 1966171168
        %v1685 = vunpack.c.0.s8 %v1684
        %v1686 = vlaneseq
        %v1687 = vshrl.u32 %v1686, 7
        %v1688 = vsub.s32 %v1685, %v1687
        %v1689 = vrot.slane %v1682, %v1688
        %v1691 = vunpack.c.l.s4 1966171168
        %v1692 = vunpack.c.0.s8 %v1691
        %v1693 = vlaneseq
        %v1694 = vshrl.u32 %v1693, 7
        %v1695 = vsub.s32 %v1692, %v1694
        %v1696 = vrot.slane %v1689, %v1695
        %v1698 = vadd.f32 %v522, %v1696
        %s1699 = scalar_lea.vmem %s9, 16
        %v1700 = vld [vmem:[%s1699] sm:$0xff]
        %v1701 = vld [vmem:[%s1699 + $0x8] sm:$0xff]
        %v1703 = vlaneseq
        %v1704 = vshrl.u32 %v1703, 7
        %v1705 = vsub.s32 0, %v1704
        %v1706 = vrot.slane %v1698, %v1705
        %v1707 = vlaneseq
        %v1708 = vshrl.u32 %v1707, 7
        %v1709 = vsub.s32 1, %v1708
        %v1710 = vrot.slane %v1698, %v1709
        %1713 = vrot.lane.b32.xlu0 %v1706, 17
        %v1714 = vpop.permute.xlu0 %1713
        %1715 = vrot.lane.b32.xlu0 %v1710, 17
        %v1716 = vpop.permute.xlu0 %1715
        %v1717 = vsel %vm541, %v1714, %v1716
        %v1718 = vsel %vm541, %v1716, %v1714
        %v1719 = vmul.f32 %v1718, %v552
        %v1720 = vmul.f32 %v1717, %v556
        %1722 = vset.pattern.permute.xlu0 0
        %1723 = vperm.xlu0 %1722, %v1700
        %v1724 = vpop.permute.xlu0 %1723
        %1727 = vset.pattern.permute.xlu0 0
        %1728 = vperm.xlu0 %1727, %v1701
        %v1729 = vpop.permute.xlu0 %1728
        %v1731 = vlaneseq
        %v1732 = vshrl.u32 %v1731, 7
        %v1733 = vsub.s32 0, %v1732
        %v1734 = vrot.slane %v1719, %v1733
        %v1735 = vlaneseq
        %v1736 = vshrl.u32 %v1735, 7
        %v1737 = vsub.s32 0, %v1736
        %v1738 = vrot.slane %v1720, %v1737
        %v1739 = vmul.f32 %v1724, %v1734
        %v1740 = vmul.f32 %v1724, %v1738
        %v1741 = vmul.f32 %v1729, %v1734
        %v1742 = vmul.f32 %v1729, %v1738
        %1743 = vrot.lane.b32.xlu0 %v1706, 16
        %v1744 = vpop.permute.xlu0 %1743
        %1745 = vrot.lane.b32.xlu0 %v1710, 16
        %v1746 = vpop.permute.xlu0 %1745
        %v1747 = vsel %vm577, %v1744, %v1746
        %v1748 = vsel %vm577, %v1746, %v1744
        %v1749 = vmul.f32 %v1748, %v588
        %v1750 = vmul.f32 %v1747, %v592
        %1751 = vset.pattern.permute.xlu0 1
        %1752 = vperm.xlu0 %1751, %v1700
        %v1753 = vpop.permute.xlu0 %1752
        %1755 = vset.pattern.permute.xlu0 1
        %1756 = vperm.xlu0 %1755, %v1701
        %v1757 = vpop.permute.xlu0 %1756
        %v1759 = vlaneseq
        %v1760 = vshrl.u32 %v1759, 7
        %v1761 = vsub.s32 0, %v1760
        %v1762 = vrot.slane %v1749, %v1761
        %v1763 = vlaneseq
        %v1764 = vshrl.u32 %v1763, 7
        %v1765 = vsub.s32 0, %v1764
        %v1766 = vrot.slane %v1750, %v1765
        %v1767 = vmul.f32 %v1753, %v1762
        %v1768 = vmul.f32 %v1753, %v1766
        %v1769 = vmul.f32 %v1757, %v1762
        %v1770 = vmul.f32 %v1757, %v1766
        %v1771 = vadd.f32 %v1739, %v1767
        %v1772 = vadd.f32 %v1740, %v1768
        %v1773 = vadd.f32 %v1741, %v1769
        %v1774 = vadd.f32 %v1742, %v1770
        %1775 = vrot.lane.b32.xlu0 %v1706, 15
        %v1776 = vpop.permute.xlu0 %1775
        %1777 = vrot.lane.b32.xlu0 %v1710, 15
        %v1778 = vpop.permute.xlu0 %1777
        %v1779 = vsel %vm613, %v1776, %v1778
        %v1780 = vsel %vm613, %v1778, %v1776
        %v1781 = vmul.f32 %v1780, %v624
        %v1782 = vmul.f32 %v1779, %v628
        %1783 = vset.pattern.permute.xlu0 2
        %1784 = vperm.xlu0 %1783, %v1700
        %v1785 = vpop.permute.xlu0 %1784
        %1787 = vset.pattern.permute.xlu0 2
        %1788 = vperm.xlu0 %1787, %v1701
        %v1789 = vpop.permute.xlu0 %1788
        %v1791 = vlaneseq
        %v1792 = vshrl.u32 %v1791, 7
        %v1793 = vsub.s32 0, %v1792
        %v1794 = vrot.slane %v1781, %v1793
        %v1795 = vlaneseq
        %v1796 = vshrl.u32 %v1795, 7
        %v1797 = vsub.s32 0, %v1796
        %v1798 = vrot.slane %v1782, %v1797
        %v1799 = vmul.f32 %v1785, %v1794
        %v1800 = vmul.f32 %v1785, %v1798
        %v1801 = vmul.f32 %v1789, %v1794
        %v1802 = vmul.f32 %v1789, %v1798
        %v1803 = vadd.f32 %v1771, %v1799
        %v1804 = vadd.f32 %v1772, %v1800
        %v1805 = vadd.f32 %v1773, %v1801
        %v1806 = vadd.f32 %v1774, %v1802
        %1807 = vrot.lane.b32.xlu0 %v1706, 1
        %v1808 = vpop.permute.xlu0 %1807
        %1809 = vrot.lane.b32.xlu0 %v1710, 1
        %v1810 = vpop.permute.xlu0 %1809
        %v1811 = vsel %vm649, %v1808, %v1810
        %v1812 = vsel %vm649, %v1810, %v1808
        %v1813 = vmul.f32 %v1812, %v660
        %v1814 = vmul.f32 %v1811, %v664
        %1815 = vset.pattern.permute.xlu0 3
        %1816 = vperm.xlu0 %1815, %v1700
        %v1817 = vpop.permute.xlu0 %1816
        %1819 = vset.pattern.permute.xlu0 3
        %1820 = vperm.xlu0 %1819, %v1701
        %v1821 = vpop.permute.xlu0 %1820
        %v1823 = vlaneseq
        %v1824 = vshrl.u32 %v1823, 7
        %v1825 = vsub.s32 0, %v1824
        %v1826 = vrot.slane %v1813, %v1825
        %v1827 = vlaneseq
        %v1828 = vshrl.u32 %v1827, 7
        %v1829 = vsub.s32 0, %v1828
        %v1830 = vrot.slane %v1814, %v1829
        %v1831 = vmul.f32 %v1817, %v1826
        %v1832 = vmul.f32 %v1817, %v1830
        %v1833 = vmul.f32 %v1821, %v1826
        %v1834 = vmul.f32 %v1821, %v1830
        %v1835 = vadd.f32 %v1803, %v1831
        %v1836 = vadd.f32 %v1804, %v1832
        %v1837 = vadd.f32 %v1805, %v1833
        %v1838 = vadd.f32 %v1806, %v1834
        %1839 = vset.pattern.permute.xlu0 4
        %1840 = vperm.xlu0 %1839, %v1700
        %v1841 = vpop.permute.xlu0 %1840
        %1843 = vset.pattern.permute.xlu0 4
        %1844 = vperm.xlu0 %1843, %v1701
        %v1845 = vpop.permute.xlu0 %1844
        %v1847 = vmul.f32 %v1841, %v1706
        %v1848 = vmul.f32 %v1841, %v1710
        %v1849 = vmul.f32 %v1845, %v1706
        %v1850 = vmul.f32 %v1845, %v1710
        %v1851 = vadd.f32 %v1835, %v1847
        %v1852 = vadd.f32 %v1836, %v1848
        %v1853 = vadd.f32 %v1837, %v1849
        %v1854 = vadd.f32 %v1838, %v1850
        %1855 = vrot.lane.b32.xlu0 %v1706, 127
        %v1856 = vpop.permute.xlu0 %1855
        %1857 = vrot.lane.b32.xlu0 %v1710, 127
        %v1858 = vpop.permute.xlu0 %1857
        %v1859 = vsel %vm685, %v1856, %v1858
        %v1860 = vsel %vm685, %v1858, %v1856
        %v1861 = vmul.f32 %v1859, %v696
        %v1862 = vmul.f32 %v1860, %v700
        %1863 = vset.pattern.permute.xlu0 5
        %1864 = vperm.xlu0 %1863, %v1700
        %v1865 = vpop.permute.xlu0 %1864
        %1867 = vset.pattern.permute.xlu0 5
        %1868 = vperm.xlu0 %1867, %v1701
        %v1869 = vpop.permute.xlu0 %1868
        %v1871 = vlaneseq
        %v1872 = vshrl.u32 %v1871, 7
        %v1873 = vsub.s32 0, %v1872
        %v1874 = vrot.slane %v1861, %v1873
        %v1875 = vlaneseq
        %v1876 = vshrl.u32 %v1875, 7
        %v1877 = vsub.s32 0, %v1876
        %v1878 = vrot.slane %v1862, %v1877
        %v1879 = vmul.f32 %v1865, %v1874
        %v1880 = vmul.f32 %v1865, %v1878
        %v1881 = vmul.f32 %v1869, %v1874
        %v1882 = vmul.f32 %v1869, %v1878
        %v1883 = vadd.f32 %v1851, %v1879
        %v1884 = vadd.f32 %v1852, %v1880
        %v1885 = vadd.f32 %v1853, %v1881
        %v1886 = vadd.f32 %v1854, %v1882
        %1887 = vrot.lane.b32.xlu0 %v1706, 113
        %v1888 = vpop.permute.xlu0 %1887
        %1889 = vrot.lane.b32.xlu0 %v1710, 113
        %v1890 = vpop.permute.xlu0 %1889
        %v1891 = vsel %vm721, %v1888, %v1890
        %v1892 = vsel %vm721, %v1890, %v1888
        %v1893 = vmul.f32 %v1891, %v732
        %v1894 = vmul.f32 %v1892, %v736
        %1895 = vset.pattern.permute.xlu0 6
        %1896 = vperm.xlu0 %1895, %v1700
        %v1897 = vpop.permute.xlu0 %1896
        %1899 = vset.pattern.permute.xlu0 6
        %1900 = vperm.xlu0 %1899, %v1701
        %v1901 = vpop.permute.xlu0 %1900
        %v1903 = vlaneseq
        %v1904 = vshrl.u32 %v1903, 7
        %v1905 = vsub.s32 0, %v1904
        %v1906 = vrot.slane %v1893, %v1905
        %v1907 = vlaneseq
        %v1908 = vshrl.u32 %v1907, 7
        %v1909 = vsub.s32 0, %v1908
        %v1910 = vrot.slane %v1894, %v1909
        %v1911 = vmul.f32 %v1897, %v1906
        %v1912 = vmul.f32 %v1897, %v1910
        %v1913 = vmul.f32 %v1901, %v1906
        %v1914 = vmul.f32 %v1901, %v1910
        %v1915 = vadd.f32 %v1883, %v1911
        %v1916 = vadd.f32 %v1884, %v1912
        %v1917 = vadd.f32 %v1885, %v1913
        %v1918 = vadd.f32 %v1886, %v1914
        %1919 = vrot.lane.b32.xlu0 %v1706, 112
        %v1920 = vpop.permute.xlu0 %1919
        %1921 = vrot.lane.b32.xlu0 %v1710, 112
        %v1922 = vpop.permute.xlu0 %1921
        %v1923 = vsel %vm757, %v1920, %v1922
        %v1924 = vsel %vm757, %v1922, %v1920
        %v1925 = vmul.f32 %v1923, %v768
        %v1926 = vmul.f32 %v1924, %v772
        %1927 = vset.pattern.permute.xlu0 7
        %1928 = vperm.xlu0 %1927, %v1700
        %v1929 = vpop.permute.xlu0 %1928
        %1931 = vset.pattern.permute.xlu0 7
        %1932 = vperm.xlu0 %1931, %v1701
        %v1933 = vpop.permute.xlu0 %1932
        %v1935 = vlaneseq
        %v1936 = vshrl.u32 %v1935, 7
        %v1937 = vsub.s32 0, %v1936
        %v1938 = vrot.slane %v1925, %v1937
        %v1939 = vlaneseq
        %v1940 = vshrl.u32 %v1939, 7
        %v1941 = vsub.s32 0, %v1940
        %v1942 = vrot.slane %v1926, %v1941
        %v1943 = vmul.f32 %v1929, %v1938
        %v1944 = vmul.f32 %v1929, %v1942
        %v1945 = vmul.f32 %v1933, %v1938
        %v1946 = vmul.f32 %v1933, %v1942
        %v1947 = vadd.f32 %v1915, %v1943
        %v1948 = vadd.f32 %v1916, %v1944
        %v1949 = vadd.f32 %v1917, %v1945
        %v1950 = vadd.f32 %v1918, %v1946
        %1951 = vrot.lane.b32.xlu0 %v1706, 111
        %v1952 = vpop.permute.xlu0 %1951
        %1953 = vrot.lane.b32.xlu0 %v1710, 111
        %v1954 = vpop.permute.xlu0 %1953
        %v1955 = vsel %vm793, %v1952, %v1954
        %v1956 = vsel %vm793, %v1954, %v1952
        %v1957 = vmul.f32 %v1955, %v804
        %v1958 = vmul.f32 %v1956, %v808
        %1959 = vset.pattern.permute.xlu0 8
        %1960 = vperm.xlu0 %1959, %v1700
        %v1961 = vpop.permute.xlu0 %1960
        %1963 = vset.pattern.permute.xlu0 8
        %1964 = vperm.xlu0 %1963, %v1701
        %v1965 = vpop.permute.xlu0 %1964
        %v1967 = vlaneseq
        %v1968 = vshrl.u32 %v1967, 7
        %v1969 = vsub.s32 0, %v1968
        %v1970 = vrot.slane %v1957, %v1969
        %v1971 = vlaneseq
        %v1972 = vshrl.u32 %v1971, 7
        %v1973 = vsub.s32 0, %v1972
        %v1974 = vrot.slane %v1958, %v1973
        %v1975 = vmul.f32 %v1961, %v1970
        %v1976 = vmul.f32 %v1961, %v1974
        %v1977 = vmul.f32 %v1965, %v1970
        %v1978 = vmul.f32 %v1965, %v1974
        %v1979 = vadd.f32 %v1947, %v1975
        %v1980 = vadd.f32 %v1948, %v1976
        %v1981 = vadd.f32 %v1949, %v1977
        %v1982 = vadd.f32 %v1950, %v1978
        %v1983 = vadd.f32 %v1664, %v1979
        %v1984 = vadd.f32 %v1666, %v1980
        %v1985 = vadd.f32 %v1670, %v1981
        %v1986 = vadd.f32 %v1672, %v1982
        %v1987 = vmax.f32 %v1983, 0.0
        %v1988 = vmax.f32 %v1984, 0.0
        %v1989 = vmax.f32 %v1985, 0.0
        %v1990 = vmax.f32 %v1986, 0.0
        %v1991 = vadd.f32 %v1432, %v1987
        %v1992 = vadd.f32 %v1433, %v1988
        %v1993 = vadd.f32 %v1434, %v1989
        %v1994 = vadd.f32 %v1435, %v1990
        %1995 = vrot.lane.b32.xlu0 %v1991, 17
        %v1996 = vpop.permute.xlu0 %1995
        %1997 = vrot.lane.b32.xlu0 %v1993, 17
        %v1998 = vpop.permute.xlu0 %1997
        %1999 = vrot.lane.b32.xlu0 %v1992, 17
        %v2000 = vpop.permute.xlu0 %1999
        %2001 = vrot.lane.b32.xlu0 %v1994, 17
        %v2002 = vpop.permute.xlu0 %2001
        %v2003 = vsel %vm541, %v1996, %v2000
        %v2004 = vsel %vm541, %v1998, %v2002
        %v2005 = vsel %vm541, %v2000, %v1996
        %v2006 = vsel %vm541, %v2002, %v1998
        %v2007 = vmul.f32 %v2005, %v552
        %v2008 = vmul.f32 %v2003, %v556
        %v2009 = vmul.f32 %v2006, %v552
        %v2010 = vmul.f32 %v2004, %v556
        %2011 = vrot.lane.b32.xlu0 %v1991, 16
        %v2012 = vpop.permute.xlu0 %2011
        %2013 = vrot.lane.b32.xlu0 %v1993, 16
        %v2014 = vpop.permute.xlu0 %2013
        %2015 = vrot.lane.b32.xlu0 %v1992, 16
        %v2016 = vpop.permute.xlu0 %2015
        %2017 = vrot.lane.b32.xlu0 %v1994, 16
        %v2018 = vpop.permute.xlu0 %2017
        %v2019 = vsel %vm577, %v2012, %v2016
        %v2020 = vsel %vm577, %v2014, %v2018
        %v2021 = vsel %vm577, %v2016, %v2012
        %v2022 = vsel %vm577, %v2018, %v2014
        %v2023 = vmul.f32 %v2021, %v588
        %v2024 = vmul.f32 %v2019, %v592
        %v2025 = vmul.f32 %v2022, %v588
        %v2026 = vmul.f32 %v2020, %v592
        %2027 = vrot.lane.b32.xlu0 %v1991, 15
        %v2028 = vpop.permute.xlu0 %2027
        %2029 = vrot.lane.b32.xlu0 %v1993, 15
        %v2030 = vpop.permute.xlu0 %2029
        %2031 = vrot.lane.b32.xlu0 %v1992, 15
        %v2032 = vpop.permute.xlu0 %2031
        %2033 = vrot.lane.b32.xlu0 %v1994, 15
        %v2034 = vpop.permute.xlu0 %2033
        %v2035 = vsel %vm613, %v2028, %v2032
        %v2036 = vsel %vm613, %v2030, %v2034
        %v2037 = vsel %vm613, %v2032, %v2028
        %v2038 = vsel %vm613, %v2034, %v2030
        %v2039 = vmul.f32 %v2037, %v624
        %v2040 = vmul.f32 %v2035, %v628
        %v2041 = vmul.f32 %v2038, %v624
        %v2042 = vmul.f32 %v2036, %v628
        %2043 = vrot.lane.b32.xlu0 %v1991, 1
        %v2044 = vpop.permute.xlu0 %2043
        %2045 = vrot.lane.b32.xlu0 %v1993, 1
        %v2046 = vpop.permute.xlu0 %2045
        %2047 = vrot.lane.b32.xlu0 %v1992, 1
        %v2048 = vpop.permute.xlu0 %2047
        %2049 = vrot.lane.b32.xlu0 %v1994, 1
        %v2050 = vpop.permute.xlu0 %2049
        %v2051 = vsel %vm649, %v2044, %v2048
        %v2052 = vsel %vm649, %v2046, %v2050
        %v2053 = vsel %vm649, %v2048, %v2044
        %v2054 = vsel %vm649, %v2050, %v2046
        %v2055 = vmul.f32 %v2053, %v660
        %v2056 = vmul.f32 %v2051, %v664
        %v2057 = vmul.f32 %v2054, %v660
        %v2058 = vmul.f32 %v2052, %v664
        %2059 = vrot.lane.b32.xlu0 %v1991, 127
        %v2060 = vpop.permute.xlu0 %2059
        %2061 = vrot.lane.b32.xlu0 %v1993, 127
        %v2062 = vpop.permute.xlu0 %2061
        %2063 = vrot.lane.b32.xlu0 %v1992, 127
        %v2064 = vpop.permute.xlu0 %2063
        %2065 = vrot.lane.b32.xlu0 %v1994, 127
        %v2066 = vpop.permute.xlu0 %2065
        %v2067 = vsel %vm685, %v2060, %v2064
        %v2068 = vsel %vm685, %v2062, %v2066
        %v2069 = vsel %vm685, %v2064, %v2060
        %v2070 = vsel %vm685, %v2066, %v2062
        %v2071 = vmul.f32 %v2067, %v696
        %v2072 = vmul.f32 %v2069, %v700
        %v2073 = vmul.f32 %v2068, %v696
        %v2074 = vmul.f32 %v2070, %v700
        %2075 = vrot.lane.b32.xlu0 %v1991, 113
        %v2076 = vpop.permute.xlu0 %2075
        %2077 = vrot.lane.b32.xlu0 %v1993, 113
        %v2078 = vpop.permute.xlu0 %2077
        %2079 = vrot.lane.b32.xlu0 %v1992, 113
        %v2080 = vpop.permute.xlu0 %2079
        %2081 = vrot.lane.b32.xlu0 %v1994, 113
        %v2082 = vpop.permute.xlu0 %2081
        %v2083 = vsel %vm721, %v2076, %v2080
        %v2084 = vsel %vm721, %v2078, %v2082
        %v2085 = vsel %vm721, %v2080, %v2076
        %v2086 = vsel %vm721, %v2082, %v2078
        %v2087 = vmul.f32 %v2083, %v732
        %v2088 = vmul.f32 %v2085, %v736
        %v2089 = vmul.f32 %v2084, %v732
        %v2090 = vmul.f32 %v2086, %v736
        %2091 = vrot.lane.b32.xlu0 %v1991, 112
        %v2092 = vpop.permute.xlu0 %2091
        %2093 = vrot.lane.b32.xlu0 %v1993, 112
        %v2094 = vpop.permute.xlu0 %2093
        %2095 = vrot.lane.b32.xlu0 %v1992, 112
        %v2096 = vpop.permute.xlu0 %2095
        %2097 = vrot.lane.b32.xlu0 %v1994, 112
        %v2098 = vpop.permute.xlu0 %2097
        %v2099 = vsel %vm757, %v2092, %v2096
        %v2100 = vsel %vm757, %v2094, %v2098
        %v2101 = vsel %vm757, %v2096, %v2092
        %v2102 = vsel %vm757, %v2098, %v2094
        %v2103 = vmul.f32 %v2099, %v768
        %v2104 = vmul.f32 %v2101, %v772
        %v2105 = vmul.f32 %v2100, %v768
        %v2106 = vmul.f32 %v2102, %v772
        %2107 = vrot.lane.b32.xlu0 %v1991, 111
        %v2108 = vpop.permute.xlu0 %2107
        %2109 = vrot.lane.b32.xlu0 %v1993, 111
        %v2110 = vpop.permute.xlu0 %2109
        %2111 = vrot.lane.b32.xlu0 %v1992, 111
        %v2112 = vpop.permute.xlu0 %2111
        %2113 = vrot.lane.b32.xlu0 %v1994, 111
        %v2114 = vpop.permute.xlu0 %2113
        %v2115 = vsel %vm793, %v2108, %v2112
        %v2116 = vsel %vm793, %v2110, %v2114
        %v2117 = vsel %vm793, %v2112, %v2108
        %v2118 = vsel %vm793, %v2114, %v2110
        %v2119 = vmul.f32 %v2115, %v804
        %v2120 = vmul.f32 %v2117, %v808
        %v2121 = vmul.f32 %v2116, %v804
        %v2122 = vmul.f32 %v2118, %v808
        %s2123 = scalar_lea.vmem %s7, 48
        %v2124 = vld [vmem:[%s2123] sm:$0xff]
        %v2125 = vld [vmem:[%s2123 + $0x8] sm:$0xff]
        %v2126 = vld [vmem:[%s2123 + $0x10] sm:$0xff]
        %v2127 = vld [vmem:[%s2123 + $0x18] sm:$0xff]
        %v2128 = vld [vmem:[%s2123 + $0x20] sm:$0xff]
        %v2129 = vld [vmem:[%s2123 + $0x28] sm:$0xff]
        %s2130 = scalar_lea.vmem %s8, 24
        %v2131 = vld [vmem:[%s2130] sm:$0xff]
        %v2132 = vld [vmem:[%s2130 + $0x8] sm:$0xff]
        %v2133 = vld [vmem:[%s2130 + $0x10] sm:$0xff]
        %2135 = vset.pattern.permute.xlu0 0
        %2136 = vperm.xlu0 %2135, %v2131
        %v2137 = vpop.permute.xlu0 %2136
        %2140 = vset.pattern.permute.xlu0 0
        %2141 = vperm.xlu0 %2140, %v2132
        %v2142 = vpop.permute.xlu0 %2141
        %2145 = vset.pattern.permute.xlu0 0
        %2146 = vperm.xlu0 %2145, %v2133
        %v2147 = vpop.permute.xlu0 %2146
        %v2150 = vsel %vm1057, %v2125, 0
        %v2153 = vsel %vm1057, %v2127, 0
        %v2156 = vsel %vm1057, %v2129, 0
        %2158 = vmatprep.subr.mxu0 %v2008
        %2159 = vmatpush1.msra.mxu0 %v2007
        %2160 = vmatprep.subr.mxu0 %v2010
        %2161 = vmatpush1.msra.mxu0 %v2009
        %2162 = vmatprep.subr.mxu0 %v2024
        %2163 = vmatpush1.msra.mxu0 %v2023
        %2164 = vmatprep.subr.mxu0 %v2026
        %2165 = vmatpush1.msra.mxu0 %v2025
        %2166 = vmatprep.subr.mxu0 %v2040
        %2167 = vmatpush1.msra.mxu0 %v2039
        %2168 = vmatprep.subr.mxu0 %v2042
        %2169 = vmatpush1.msra.mxu0 %v2041
        %2170 = vmatprep.subr.mxu0 %v2056
        %2171 = vmatpush1.msra.mxu0 %v2055
        %2172 = vmatprep.subr.mxu0 %v2058
        %2173 = vmatpush1.msra.mxu0 %v2057
        %2174 = vmatprep.subr.mxu0 %v1992
        %2175 = vmatpush1.msra.mxu0 %v1991
        %2176 = vmatprep.subr.mxu0 %v1994
        %2177 = vmatpush1.msra.mxu0 %v1993
        %2178 = vmatprep.subr.mxu0 %v2072
        %2179 = vmatpush1.msra.mxu0 %v2071
        %2180 = vmatprep.subr.mxu0 %v2074
        %2181 = vmatpush1.msra.mxu0 %v2073
        %2182 = vmatprep.subr.mxu0 %v2088
        %2183 = vmatpush1.msra.mxu0 %v2087
        %2184 = vmatprep.subr.mxu0 %v2090
        %2185 = vmatpush1.msra.mxu0 %v2089
        %2186 = vmatprep.subr.mxu0 %v2104
        %2187 = vmatpush1.msra.mxu0 %v2103
        %2188 = vmatprep.subr.mxu0 %v2106
        %2189 = vmatpush1.msra.mxu0 %v2105
        %2190 = vmatprep.subr.mxu0 %v2120
        %2191 = vmatpush1.msra.mxu0 %v2119
        %2192 = vmatprep.subr.mxu0 %v2122
        %2193 = vmatpush1.msra.mxu0 %v2121
        %2194 = vmatprep.subr.mxu0 0.0
        %2195 = vmatpush1.msra.mxu0 0.0
        %2196 = vmatprep.subr.mxu0 0.0
        %2197 = vmatpush1.msra.mxu0 0.0
        %2198 = vmatprep.subr.mxu0 0.0
        %2199 = vmatpush1.msra.mxu0 0.0
        %2200 = vmatprep.subr.mxu0 0.0
        %2201 = vmatpush1.msra.mxu0 0.0
        %2202 = vmatprep.subr.mxu0 0.0
        %2203 = vmatpush1.msra.mxu0 0.0
        %2204 = vmatprep.subr.mxu0 0.0
        %2205 = vmatpush1.msra.mxu0 0.0
        %2206 = vmatprep.subr.mxu0 0.0
        %2207 = vmatpush1.msra.mxu0 0.0
        %2208 = vmatprep.subr.mxu0 0.0
        %2209 = vmatpush1.msra.mxu0 0.0
        %2210 = vmatprep.subr.mxu0 0.0
        %2211 = vmatpush1.msra.mxu0 0.0
        %2212 = vmatprep.subr.mxu0 0.0
        %2213 = vmatpush1.msra.mxu0 0.0
        %2214 = vmatprep.subr.mxu0 0.0
        %2215 = vmatpush1.msra.mxu0 0.0
        %2216 = vmatprep.subr.mxu0 0.0
        %2217 = vmatpush1.msra.mxu0 0.0
        %2218 = vmatprep.subr.mxu0 0.0
        %2219 = vmatpush1.msra.mxu0 0.0
        %2220 = vmatprep.subr.mxu0 0.0
        %2221 = vmatpush1.msra.mxu0 0.0
        %2222 = vmatprep.mubr.f32.mxu0 %v2150
        %2223 = vmatmul.mubr.f32.gmra.mrb[0].mxu0 %v2124
        %v2224 = vpop.f32.mrb[0].mxu0
        %v2225 = vadd.f32 %v2137, %v2224
        %v2226 = vpop.f32.mrb[0].mxu0
        %v2227 = vadd.f32 %v2137, %v2226
        %2228 = vmatprep.mubr.f32.mxu0 %v2153
        %2229 = vmatmul.mubr.f32.gmra.mrb[0].mxu0 %v2126
        %v2230 = vpop.f32.mrb[0].mxu0
        %v2231 = vadd.f32 %v2142, %v2230
        %v2232 = vpop.f32.mrb[0].mxu0
        %v2233 = vadd.f32 %v2142, %v2232
        %2234 = vmatprep.mubr.f32.mxu0 %v2156
        %2235 = vmatmul.mubr.f32.gmra.mrb[0].mxu0 %v2128
        %v2236 = vpop.f32.mrb[0].mxu0
        %v2237 = vadd.f32 %v2147, %v2236
        %v2238 = vpop.f32.mrb[0].mxu0
        %v2239 = vadd.f32 %v2147, %v2238
        %2240 = vdwg.mxu0
        %v2243 = vcombine.low %v2237, %v2239
        %v2245 = vunpack.c.l.s4 1966171168
        %v2246 = vunpack.c.0.s8 %v2245
        %v2247 = vlaneseq
        %v2248 = vshrl.u32 %v2247, 7
        %v2249 = vsub.s32 %v2246, %v2248
        %v2250 = vrot.slane %v2243, %v2249
        %v2252 = vunpack.c.l.s4 1966171168
        %v2253 = vunpack.c.0.s8 %v2252
        %v2254 = vlaneseq
        %v2255 = vshrl.u32 %v2254, 7
        %v2256 = vsub.s32 %v2253, %v2255
        %v2257 = vrot.slane %v2250, %v2256
        %v2259 = vadd.f32 %v1698, %v2257
        %s2260 = scalar_lea.vmem %s9, 32
        %v2261 = vld [vmem:[%s2260] sm:$0xff]
        %v2262 = vld [vmem:[%s2260 + $0x8] sm:$0xff]
        %v2264 = vlaneseq
        %v2265 = vshrl.u32 %v2264, 7
        %v2266 = vsub.s32 0, %v2265
        %v2267 = vrot.slane %v2259, %v2266
        %v2268 = vlaneseq
        %v2269 = vshrl.u32 %v2268, 7
        %v2270 = vsub.s32 1, %v2269
        %v2271 = vrot.slane %v2259, %v2270
        %2274 = vrot.lane.b32.xlu0 %v2267, 17
        %v2275 = vpop.permute.xlu0 %2274
        %2276 = vrot.lane.b32.xlu0 %v2271, 17
        %v2277 = vpop.permute.xlu0 %2276
        %v2278 = vsel %vm541, %v2275, %v2277
        %v2279 = vsel %vm541, %v2277, %v2275
        %v2280 = vmul.f32 %v2279, %v552
        %v2281 = vmul.f32 %v2278, %v556
        %2283 = vset.pattern.permute.xlu0 0
        %2284 = vperm.xlu0 %2283, %v2261
        %v2285 = vpop.permute.xlu0 %2284
        %2288 = vset.pattern.permute.xlu0 0
        %2289 = vperm.xlu0 %2288, %v2262
        %v2290 = vpop.permute.xlu0 %2289
        %v2292 = vlaneseq
        %v2293 = vshrl.u32 %v2292, 7
        %v2294 = vsub.s32 0, %v2293
        %v2295 = vrot.slane %v2280, %v2294
        %v2296 = vlaneseq
        %v2297 = vshrl.u32 %v2296, 7
        %v2298 = vsub.s32 0, %v2297
        %v2299 = vrot.slane %v2281, %v2298
        %v2300 = vmul.f32 %v2285, %v2295
        %v2301 = vmul.f32 %v2285, %v2299
        %v2302 = vmul.f32 %v2290, %v2295
        %v2303 = vmul.f32 %v2290, %v2299
        %2304 = vrot.lane.b32.xlu0 %v2267, 16
        %v2305 = vpop.permute.xlu0 %2304
        %2306 = vrot.lane.b32.xlu0 %v2271, 16
        %v2307 = vpop.permute.xlu0 %2306
        %v2308 = vsel %vm577, %v2305, %v2307
        %v2309 = vsel %vm577, %v2307, %v2305
        %v2310 = vmul.f32 %v2309, %v588
        %v2311 = vmul.f32 %v2308, %v592
        %2312 = vset.pattern.permute.xlu0 1
        %2313 = vperm.xlu0 %2312, %v2261
        %v2314 = vpop.permute.xlu0 %2313
        %2316 = vset.pattern.permute.xlu0 1
        %2317 = vperm.xlu0 %2316, %v2262
        %v2318 = vpop.permute.xlu0 %2317
        %v2320 = vlaneseq
        %v2321 = vshrl.u32 %v2320, 7
        %v2322 = vsub.s32 0, %v2321
        %v2323 = vrot.slane %v2310, %v2322
        %v2324 = vlaneseq
        %v2325 = vshrl.u32 %v2324, 7
        %v2326 = vsub.s32 0, %v2325
        %v2327 = vrot.slane %v2311, %v2326
        %v2328 = vmul.f32 %v2314, %v2323
        %v2329 = vmul.f32 %v2314, %v2327
        %v2330 = vmul.f32 %v2318, %v2323
        %v2331 = vmul.f32 %v2318, %v2327
        %v2332 = vadd.f32 %v2300, %v2328
        %v2333 = vadd.f32 %v2301, %v2329
        %v2334 = vadd.f32 %v2302, %v2330
        %v2335 = vadd.f32 %v2303, %v2331
        %2336 = vrot.lane.b32.xlu0 %v2267, 15
        %v2337 = vpop.permute.xlu0 %2336
        %2338 = vrot.lane.b32.xlu0 %v2271, 15
        %v2339 = vpop.permute.xlu0 %2338
        %v2340 = vsel %vm613, %v2337, %v2339
        %v2341 = vsel %vm613, %v2339, %v2337
        %v2342 = vmul.f32 %v2341, %v624
        %v2343 = vmul.f32 %v2340, %v628
        %2344 = vset.pattern.permute.xlu0 2
        %2345 = vperm.xlu0 %2344, %v2261
        %v2346 = vpop.permute.xlu0 %2345
        %2348 = vset.pattern.permute.xlu0 2
        %2349 = vperm.xlu0 %2348, %v2262
        %v2350 = vpop.permute.xlu0 %2349
        %v2352 = vlaneseq
        %v2353 = vshrl.u32 %v2352, 7
        %v2354 = vsub.s32 0, %v2353
        %v2355 = vrot.slane %v2342, %v2354
        %v2356 = vlaneseq
        %v2357 = vshrl.u32 %v2356, 7
        %v2358 = vsub.s32 0, %v2357
        %v2359 = vrot.slane %v2343, %v2358
        %v2360 = vmul.f32 %v2346, %v2355
        %v2361 = vmul.f32 %v2346, %v2359
        %v2362 = vmul.f32 %v2350, %v2355
        %v2363 = vmul.f32 %v2350, %v2359
        %v2364 = vadd.f32 %v2332, %v2360
        %v2365 = vadd.f32 %v2333, %v2361
        %v2366 = vadd.f32 %v2334, %v2362
        %v2367 = vadd.f32 %v2335, %v2363
        %2368 = vrot.lane.b32.xlu0 %v2267, 1
        %v2369 = vpop.permute.xlu0 %2368
        %2370 = vrot.lane.b32.xlu0 %v2271, 1
        %v2371 = vpop.permute.xlu0 %2370
        %v2372 = vsel %vm649, %v2369, %v2371
        %v2373 = vsel %vm649, %v2371, %v2369
        %v2374 = vmul.f32 %v2373, %v660
        %v2375 = vmul.f32 %v2372, %v664
        %2376 = vset.pattern.permute.xlu0 3
        %2377 = vperm.xlu0 %2376, %v2261
        %v2378 = vpop.permute.xlu0 %2377
        %2380 = vset.pattern.permute.xlu0 3
        %2381 = vperm.xlu0 %2380, %v2262
        %v2382 = vpop.permute.xlu0 %2381
        %v2384 = vlaneseq
        %v2385 = vshrl.u32 %v2384, 7
        %v2386 = vsub.s32 0, %v2385
        %v2387 = vrot.slane %v2374, %v2386
        %v2388 = vlaneseq
        %v2389 = vshrl.u32 %v2388, 7
        %v2390 = vsub.s32 0, %v2389
        %v2391 = vrot.slane %v2375, %v2390
        %v2392 = vmul.f32 %v2378, %v2387
        %v2393 = vmul.f32 %v2378, %v2391
        %v2394 = vmul.f32 %v2382, %v2387
        %v2395 = vmul.f32 %v2382, %v2391
        %v2396 = vadd.f32 %v2364, %v2392
        %v2397 = vadd.f32 %v2365, %v2393
        %v2398 = vadd.f32 %v2366, %v2394
        %v2399 = vadd.f32 %v2367, %v2395
        %2400 = vset.pattern.permute.xlu0 4
        %2401 = vperm.xlu0 %2400, %v2261
        %v2402 = vpop.permute.xlu0 %2401
        %2404 = vset.pattern.permute.xlu0 4
        %2405 = vperm.xlu0 %2404, %v2262
        %v2406 = vpop.permute.xlu0 %2405
        %v2408 = vmul.f32 %v2402, %v2267
        %v2409 = vmul.f32 %v2402, %v2271
        %v2410 = vmul.f32 %v2406, %v2267
        %v2411 = vmul.f32 %v2406, %v2271
        %v2412 = vadd.f32 %v2396, %v2408
        %v2413 = vadd.f32 %v2397, %v2409
        %v2414 = vadd.f32 %v2398, %v2410
        %v2415 = vadd.f32 %v2399, %v2411
        %2416 = vrot.lane.b32.xlu0 %v2267, 127
        %v2417 = vpop.permute.xlu0 %2416
        %2418 = vrot.lane.b32.xlu0 %v2271, 127
        %v2419 = vpop.permute.xlu0 %2418
        %v2420 = vsel %vm685, %v2417, %v2419
        %v2421 = vsel %vm685, %v2419, %v2417
        %v2422 = vmul.f32 %v2420, %v696
        %v2423 = vmul.f32 %v2421, %v700
        %2424 = vset.pattern.permute.xlu0 5
        %2425 = vperm.xlu0 %2424, %v2261
        %v2426 = vpop.permute.xlu0 %2425
        %2428 = vset.pattern.permute.xlu0 5
        %2429 = vperm.xlu0 %2428, %v2262
        %v2430 = vpop.permute.xlu0 %2429
        %v2432 = vlaneseq
        %v2433 = vshrl.u32 %v2432, 7
        %v2434 = vsub.s32 0, %v2433
        %v2435 = vrot.slane %v2422, %v2434
        %v2436 = vlaneseq
        %v2437 = vshrl.u32 %v2436, 7
        %v2438 = vsub.s32 0, %v2437
        %v2439 = vrot.slane %v2423, %v2438
        %v2440 = vmul.f32 %v2426, %v2435
        %v2441 = vmul.f32 %v2426, %v2439
        %v2442 = vmul.f32 %v2430, %v2435
        %v2443 = vmul.f32 %v2430, %v2439
        %v2444 = vadd.f32 %v2412, %v2440
        %v2445 = vadd.f32 %v2413, %v2441
        %v2446 = vadd.f32 %v2414, %v2442
        %v2447 = vadd.f32 %v2415, %v2443
        %2448 = vrot.lane.b32.xlu0 %v2267, 113
        %v2449 = vpop.permute.xlu0 %2448
        %2450 = vrot.lane.b32.xlu0 %v2271, 113
        %v2451 = vpop.permute.xlu0 %2450
        %v2452 = vsel %vm721, %v2449, %v2451
        %v2453 = vsel %vm721, %v2451, %v2449
        %v2454 = vmul.f32 %v2452, %v732
        %v2455 = vmul.f32 %v2453, %v736
        %2456 = vset.pattern.permute.xlu0 6
        %2457 = vperm.xlu0 %2456, %v2261
        %v2458 = vpop.permute.xlu0 %2457
        %2460 = vset.pattern.permute.xlu0 6
        %2461 = vperm.xlu0 %2460, %v2262
        %v2462 = vpop.permute.xlu0 %2461
        %v2464 = vlaneseq
        %v2465 = vshrl.u32 %v2464, 7
        %v2466 = vsub.s32 0, %v2465
        %v2467 = vrot.slane %v2454, %v2466
        %v2468 = vlaneseq
        %v2469 = vshrl.u32 %v2468, 7
        %v2470 = vsub.s32 0, %v2469
        %v2471 = vrot.slane %v2455, %v2470
        %v2472 = vmul.f32 %v2458, %v2467
        %v2473 = vmul.f32 %v2458, %v2471
        %v2474 = vmul.f32 %v2462, %v2467
        %v2475 = vmul.f32 %v2462, %v2471
        %v2476 = vadd.f32 %v2444, %v2472
        %v2477 = vadd.f32 %v2445, %v2473
        %v2478 = vadd.f32 %v2446, %v2474
        %v2479 = vadd.f32 %v2447, %v2475
        %2480 = vrot.lane.b32.xlu0 %v2267, 112
        %v2481 = vpop.permute.xlu0 %2480
        %2482 = vrot.lane.b32.xlu0 %v2271, 112
        %v2483 = vpop.permute.xlu0 %2482
        %v2484 = vsel %vm757, %v2481, %v2483
        %v2485 = vsel %vm757, %v2483, %v2481
        %v2486 = vmul.f32 %v2484, %v768
        %v2487 = vmul.f32 %v2485, %v772
        %2488 = vset.pattern.permute.xlu0 7
        %2489 = vperm.xlu0 %2488, %v2261
        %v2490 = vpop.permute.xlu0 %2489
        %2492 = vset.pattern.permute.xlu0 7
        %2493 = vperm.xlu0 %2492, %v2262
        %v2494 = vpop.permute.xlu0 %2493
        %v2496 = vlaneseq
        %v2497 = vshrl.u32 %v2496, 7
        %v2498 = vsub.s32 0, %v2497
        %v2499 = vrot.slane %v2486, %v2498
        %v2500 = vlaneseq
        %v2501 = vshrl.u32 %v2500, 7
        %v2502 = vsub.s32 0, %v2501
        %v2503 = vrot.slane %v2487, %v2502
        %v2504 = vmul.f32 %v2490, %v2499
        %v2505 = vmul.f32 %v2490, %v2503
        %v2506 = vmul.f32 %v2494, %v2499
        %v2507 = vmul.f32 %v2494, %v2503
        %v2508 = vadd.f32 %v2476, %v2504
        %v2509 = vadd.f32 %v2477, %v2505
        %v2510 = vadd.f32 %v2478, %v2506
        %v2511 = vadd.f32 %v2479, %v2507
        %2512 = vrot.lane.b32.xlu0 %v2267, 111
        %v2513 = vpop.permute.xlu0 %2512
        %2514 = vrot.lane.b32.xlu0 %v2271, 111
        %v2515 = vpop.permute.xlu0 %2514
        %v2516 = vsel %vm793, %v2513, %v2515
        %v2517 = vsel %vm793, %v2515, %v2513
        %v2518 = vmul.f32 %v2516, %v804
        %v2519 = vmul.f32 %v2517, %v808
        %2520 = vset.pattern.permute.xlu0 8
        %2521 = vperm.xlu0 %2520, %v2261
        %v2522 = vpop.permute.xlu0 %2521
        %2524 = vset.pattern.permute.xlu0 8
        %2525 = vperm.xlu0 %2524, %v2262
        %v2526 = vpop.permute.xlu0 %2525
        %v2528 = vlaneseq
        %v2529 = vshrl.u32 %v2528, 7
        %v2530 = vsub.s32 0, %v2529
        %v2531 = vrot.slane %v2518, %v2530
        %v2532 = vlaneseq
        %v2533 = vshrl.u32 %v2532, 7
        %v2534 = vsub.s32 0, %v2533
        %v2535 = vrot.slane %v2519, %v2534
        %v2536 = vmul.f32 %v2522, %v2531
        %v2537 = vmul.f32 %v2522, %v2535
        %v2538 = vmul.f32 %v2526, %v2531
        %v2539 = vmul.f32 %v2526, %v2535
        %v2540 = vadd.f32 %v2508, %v2536
        %v2541 = vadd.f32 %v2509, %v2537
        %v2542 = vadd.f32 %v2510, %v2538
        %v2543 = vadd.f32 %v2511, %v2539
        %v2544 = vadd.f32 %v2225, %v2540
        %v2545 = vadd.f32 %v2227, %v2541
        %v2546 = vadd.f32 %v2231, %v2542
        %v2547 = vadd.f32 %v2233, %v2543
        %v2548 = vmax.f32 %v2544, 0.0
        %v2549 = vmax.f32 %v2545, 0.0
        %v2550 = vmax.f32 %v2546, 0.0
        %v2551 = vmax.f32 %v2547, 0.0
        %v2552 = vadd.f32 %v1991, %v2548
        %v2553 = vadd.f32 %v1992, %v2549
        %v2554 = vadd.f32 %v1993, %v2550
        %v2555 = vadd.f32 %v1994, %v2551
        %v2556 = vld [vmem:[%s10] sm:$0xff]
        %v2557 = vld [vmem:[%s10 + $0x8] sm:$0xff]
        %2558 = vrot.lane.b32.xlu0 %v2552, 17
        %v2559 = vpop.permute.xlu0 %2558
        %2560 = vrot.lane.b32.xlu0 %v2554, 17
        %v2561 = vpop.permute.xlu0 %2560
        %2562 = vrot.lane.b32.xlu0 %v2553, 17
        %v2563 = vpop.permute.xlu0 %2562
        %2564 = vrot.lane.b32.xlu0 %v2555, 17
        %v2565 = vpop.permute.xlu0 %2564
        %v2566 = vsel %vm541, %v2559, %v2563
        %v2567 = vsel %vm541, %v2561, %v2565
        %v2568 = vsel %vm541, %v2563, %v2559
        %v2569 = vsel %vm541, %v2565, %v2561
        %v2570 = vmul.f32 %v2568, %v552
        %v2571 = vmul.f32 %v2566, %v556
        %v2572 = vmul.f32 %v2569, %v552
        %v2573 = vmul.f32 %v2567, %v556
        %2574 = vrot.lane.b32.xlu0 %v2552, 16
        %v2575 = vpop.permute.xlu0 %2574
        %2576 = vrot.lane.b32.xlu0 %v2554, 16
        %v2577 = vpop.permute.xlu0 %2576
        %2578 = vrot.lane.b32.xlu0 %v2553, 16
        %v2579 = vpop.permute.xlu0 %2578
        %2580 = vrot.lane.b32.xlu0 %v2555, 16
        %v2581 = vpop.permute.xlu0 %2580
        %v2582 = vsel %vm577, %v2575, %v2579
        %v2583 = vsel %vm577, %v2577, %v2581
        %v2584 = vsel %vm577, %v2579, %v2575
        %v2585 = vsel %vm577, %v2581, %v2577
        %v2586 = vmul.f32 %v2584, %v588
        %v2587 = vmul.f32 %v2582, %v592
        %v2588 = vmul.f32 %v2585, %v588
        %v2589 = vmul.f32 %v2583, %v592
        %2590 = vrot.lane.b32.xlu0 %v2552, 15
        %v2591 = vpop.permute.xlu0 %2590
        %2592 = vrot.lane.b32.xlu0 %v2554, 15
        %v2593 = vpop.permute.xlu0 %2592
        %2594 = vrot.lane.b32.xlu0 %v2553, 15
        %v2595 = vpop.permute.xlu0 %2594
        %2596 = vrot.lane.b32.xlu0 %v2555, 15
        %v2597 = vpop.permute.xlu0 %2596
        %v2598 = vsel %vm613, %v2591, %v2595
        %v2599 = vsel %vm613, %v2593, %v2597
        %v2600 = vsel %vm613, %v2595, %v2591
        %v2601 = vsel %vm613, %v2597, %v2593
        %v2602 = vmul.f32 %v2600, %v624
        %v2603 = vmul.f32 %v2598, %v628
        %v2604 = vmul.f32 %v2601, %v624
        %v2605 = vmul.f32 %v2599, %v628
        %2606 = vrot.lane.b32.xlu0 %v2552, 1
        %v2607 = vpop.permute.xlu0 %2606
        %2608 = vrot.lane.b32.xlu0 %v2554, 1
        %v2609 = vpop.permute.xlu0 %2608
        %2610 = vrot.lane.b32.xlu0 %v2553, 1
        %v2611 = vpop.permute.xlu0 %2610
        %2612 = vrot.lane.b32.xlu0 %v2555, 1
        %v2613 = vpop.permute.xlu0 %2612
        %v2614 = vsel %vm649, %v2607, %v2611
        %v2615 = vsel %vm649, %v2609, %v2613
        %v2616 = vsel %vm649, %v2611, %v2607
        %v2617 = vsel %vm649, %v2613, %v2609
        %v2618 = vmul.f32 %v2616, %v660
        %v2619 = vmul.f32 %v2614, %v664
        %v2620 = vmul.f32 %v2617, %v660
        %v2621 = vmul.f32 %v2615, %v664
        %2622 = vrot.lane.b32.xlu0 %v2552, 127
        %v2623 = vpop.permute.xlu0 %2622
        %2624 = vrot.lane.b32.xlu0 %v2554, 127
        %v2625 = vpop.permute.xlu0 %2624
        %2626 = vrot.lane.b32.xlu0 %v2553, 127
        %v2627 = vpop.permute.xlu0 %2626
        %2628 = vrot.lane.b32.xlu0 %v2555, 127
        %v2629 = vpop.permute.xlu0 %2628
        %v2630 = vsel %vm685, %v2623, %v2627
        %v2631 = vsel %vm685, %v2625, %v2629
        %v2632 = vsel %vm685, %v2627, %v2623
        %v2633 = vsel %vm685, %v2629, %v2625
        %v2634 = vmul.f32 %v2630, %v696
        %v2635 = vmul.f32 %v2632, %v700
        %v2636 = vmul.f32 %v2631, %v696
        %v2637 = vmul.f32 %v2633, %v700
        %2638 = vrot.lane.b32.xlu0 %v2552, 113
        %v2639 = vpop.permute.xlu0 %2638
        %2640 = vrot.lane.b32.xlu0 %v2554, 113
        %v2641 = vpop.permute.xlu0 %2640
        %2642 = vrot.lane.b32.xlu0 %v2553, 113
        %v2643 = vpop.permute.xlu0 %2642
        %2644 = vrot.lane.b32.xlu0 %v2555, 113
        %v2645 = vpop.permute.xlu0 %2644
        %v2646 = vsel %vm721, %v2639, %v2643
        %v2647 = vsel %vm721, %v2641, %v2645
        %v2648 = vsel %vm721, %v2643, %v2639
        %v2649 = vsel %vm721, %v2645, %v2641
        %v2650 = vmul.f32 %v2646, %v732
        %v2651 = vmul.f32 %v2648, %v736
        %v2652 = vmul.f32 %v2647, %v732
        %v2653 = vmul.f32 %v2649, %v736
        %2654 = vrot.lane.b32.xlu0 %v2552, 112
        %v2655 = vpop.permute.xlu0 %2654
        %2656 = vrot.lane.b32.xlu0 %v2554, 112
        %v2657 = vpop.permute.xlu0 %2656
        %2658 = vrot.lane.b32.xlu0 %v2553, 112
        %v2659 = vpop.permute.xlu0 %2658
        %2660 = vrot.lane.b32.xlu0 %v2555, 112
        %v2661 = vpop.permute.xlu0 %2660
        %v2662 = vsel %vm757, %v2655, %v2659
        %v2663 = vsel %vm757, %v2657, %v2661
        %v2664 = vsel %vm757, %v2659, %v2655
        %v2665 = vsel %vm757, %v2661, %v2657
        %v2666 = vmul.f32 %v2662, %v768
        %v2667 = vmul.f32 %v2664, %v772
        %v2668 = vmul.f32 %v2663, %v768
        %v2669 = vmul.f32 %v2665, %v772
        %2670 = vrot.lane.b32.xlu0 %v2552, 111
        %v2671 = vpop.permute.xlu0 %2670
        %2672 = vrot.lane.b32.xlu0 %v2554, 111
        %v2673 = vpop.permute.xlu0 %2672
        %2674 = vrot.lane.b32.xlu0 %v2553, 111
        %v2675 = vpop.permute.xlu0 %2674
        %2676 = vrot.lane.b32.xlu0 %v2555, 111
        %v2677 = vpop.permute.xlu0 %2676
        %v2678 = vsel %vm793, %v2671, %v2675
        %v2679 = vsel %vm793, %v2673, %v2677
        %v2680 = vsel %vm793, %v2675, %v2671
        %v2681 = vsel %vm793, %v2677, %v2673
        %v2682 = vmul.f32 %v2678, %v804
        %v2683 = vmul.f32 %v2680, %v808
        %v2684 = vmul.f32 %v2679, %v804
        %v2685 = vmul.f32 %v2681, %v808
        %v2686 = vld [vmem:[%s11] sm:$0xff]
        %2688 = vset.pattern.permute.xlu0 0
        %2689 = vperm.xlu0 %2688, %v2686
        %v2690 = vpop.permute.xlu0 %2689
        %v2693 = vsel %vm1057, %v2557, 0
        %2695 = vmatprep.subr.mxu0 %v2571
        %2696 = vmatpush1.msra.mxu0 %v2570
        %2697 = vmatprep.subr.mxu0 %v2573
        %2698 = vmatpush1.msra.mxu0 %v2572
        %2699 = vmatprep.subr.mxu0 %v2587
        %2700 = vmatpush1.msra.mxu0 %v2586
        %2701 = vmatprep.subr.mxu0 %v2589
        %2702 = vmatpush1.msra.mxu0 %v2588
        %2703 = vmatprep.subr.mxu0 %v2603
        %2704 = vmatpush1.msra.mxu0 %v2602
        %2705 = vmatprep.subr.mxu0 %v2605
        %2706 = vmatpush1.msra.mxu0 %v2604
        %2707 = vmatprep.subr.mxu0 %v2619
        %2708 = vmatpush1.msra.mxu0 %v2618
        %2709 = vmatprep.subr.mxu0 %v2621
        %2710 = vmatpush1.msra.mxu0 %v2620
        %2711 = vmatprep.subr.mxu0 %v2553
        %2712 = vmatpush1.msra.mxu0 %v2552
        %2713 = vmatprep.subr.mxu0 %v2555
        %2714 = vmatpush1.msra.mxu0 %v2554
        %2715 = vmatprep.subr.mxu0 %v2635
        %2716 = vmatpush1.msra.mxu0 %v2634
        %2717 = vmatprep.subr.mxu0 %v2637
        %2718 = vmatpush1.msra.mxu0 %v2636
        %2719 = vmatprep.subr.mxu0 %v2651
        %2720 = vmatpush1.msra.mxu0 %v2650
        %2721 = vmatprep.subr.mxu0 %v2653
        %2722 = vmatpush1.msra.mxu0 %v2652
        %2723 = vmatprep.subr.mxu0 %v2667
        %2724 = vmatpush1.msra.mxu0 %v2666
        %2725 = vmatprep.subr.mxu0 %v2669
        %2726 = vmatpush1.msra.mxu0 %v2668
        %2727 = vmatprep.subr.mxu0 %v2683
        %2728 = vmatpush1.msra.mxu0 %v2682
        %2729 = vmatprep.subr.mxu0 %v2685
        %2730 = vmatpush1.msra.mxu0 %v2684
        %2731 = vmatprep.subr.mxu0 0.0
        %2732 = vmatpush1.msra.mxu0 0.0
        %2733 = vmatprep.subr.mxu0 0.0
        %2734 = vmatpush1.msra.mxu0 0.0
        %2735 = vmatprep.subr.mxu0 0.0
        %2736 = vmatpush1.msra.mxu0 0.0
        %2737 = vmatprep.subr.mxu0 0.0
        %2738 = vmatpush1.msra.mxu0 0.0
        %2739 = vmatprep.subr.mxu0 0.0
        %2740 = vmatpush1.msra.mxu0 0.0
        %2741 = vmatprep.subr.mxu0 0.0
        %2742 = vmatpush1.msra.mxu0 0.0
        %2743 = vmatprep.subr.mxu0 0.0
        %2744 = vmatpush1.msra.mxu0 0.0
        %2745 = vmatprep.subr.mxu0 0.0
        %2746 = vmatpush1.msra.mxu0 0.0
        %2747 = vmatprep.subr.mxu0 0.0
        %2748 = vmatpush1.msra.mxu0 0.0
        %2749 = vmatprep.subr.mxu0 0.0
        %2750 = vmatpush1.msra.mxu0 0.0
        %2751 = vmatprep.subr.mxu0 0.0
        %2752 = vmatpush1.msra.mxu0 0.0
        %2753 = vmatprep.subr.mxu0 0.0
        %2754 = vmatpush1.msra.mxu0 0.0
        %2755 = vmatprep.subr.mxu0 0.0
        %2756 = vmatpush1.msra.mxu0 0.0
        %2757 = vmatprep.subr.mxu0 0.0
        %2758 = vmatpush1.msra.mxu0 0.0
        %2759 = vmatprep.mubr.f32.mxu0 %v2693
        %2760 = vmatmul.mubr.f32.gmra.mrb[0].mxu0 %v2556
        %v2761 = vpop.f32.mrb[0].mxu0
        %v2762 = vadd.f32 %v2690, %v2761
        %v2763 = vpop.f32.mrb[0].mxu0
        %v2764 = vadd.f32 %v2690, %v2763
        %2765 = vdwg.mxu0
        %v2768 = vcombine.low %v2762, %v2764
        %v2770 = vunpack.c.l.s4 1966171168
        %v2771 = vunpack.c.0.s8 %v2770
        %v2772 = vlaneseq
        %v2773 = vshrl.u32 %v2772, 7
        %v2774 = vsub.s32 %v2771, %v2773
        %v2775 = vrot.slane %v2768, %v2774
        %v2777 = vunpack.c.l.s4 1966171168
        %v2778 = vunpack.c.0.s8 %v2777
        %v2779 = vlaneseq
        %v2780 = vshrl.u32 %v2779, 7
        %v2781 = vsub.s32 %v2778, %v2780
        %v2782 = vrot.slane %v2775, %v2781
        %v2784 = vadd.f32 %v2259, %v2782
        %v2785 = vlaneseq
        %vm2786 = vcmp.ge.s32.totalorder %v2785, 0
        %vm2787 = vcmp.lt.s32.totalorder %v2785, 256
        %vm2788 = vmand %vm2786, %vm2787
        %2789 = vst.msk [vmem:[%s488] sm:$0x3] %vm2788, %v2784
        %s2790 = sand.u32 %s301, 1
        %s2791 = scalar_lea.sflag [#allocation4], %s2790
        %s2792 = sand.u32 %s301, 1
        %s2793 = smul.addr %s2792, 2
        %s2794 = scalar_lea.vmem [#allocation10], %s2793
        // Predicated region
        $region85: #{tpu_custom_call.1} parent=67 // pred_check
          %p2795 = pneg %p311
        $region86: #{tpu_custom_call.1} parent=67 // pred_check_branch
          %2797 = sbr.rel (%p2795) target = $region88
        $region87: #{tpu_custom_call.1} parent=67 // pred_region
          %s2799 = ssub.s32 32, 32
          %2800 = vsyncadd %s2791, %s2799
          %s2801 = smul.addr %s31, 2
          %s2802 = smul.addr %s2801, 16
          %s2803 = scalar_lea.hbm %s12, %s2802
          %s2805 = sshll.u32 %s2794, 4
          %s2806 = int_to_ptr.vmem [resolvable:$true] %s2805
          %2808 = dma.vmem_to_hbm [thread:$0]  %s2806, 32, %s2803, %s2791
        $region88: #{tpu_custom_call.1} parent=67 // pred_fallthru
          _
      $region68: #{tpu_custom_call.1} parent=5 // pred_fallthru
        _
      %p2809 = scmp.le.s32.totalorder 2, %s26
      // Predicated region
      $region89: #{tpu_custom_call.1} parent=5 // pred_check
        %p2810 = pneg %p2809
      $region90: #{tpu_custom_call.1} parent=5 // pred_check_branch
        %2812 = sbr.rel (%p2810) target = $region92
      $region91: #{tpu_custom_call.1} parent=5 // pred_region
        %s2813 = ssub.s32 %s26, 2
        // Predicated region
        $region93: #{tpu_custom_call.1} parent=91 // pred_check
          %p2814 = pneg %p317
        $region94: #{tpu_custom_call.1} parent=91 // pred_check_branch
          %2816 = sbr.rel (%p2814) target = $region96
        $region95: #{tpu_custom_call.1} parent=91 // pred_region
          %s2817 = sand.u32 %s302, 1
          %s2818 = scalar_lea.sflag [#allocation4], %s2817
          %s2819 = sand.u32 %s302, 1
          %s2820 = smul.addr %s2819, 2
          %s2821 = scalar_lea.vmem [#allocation10], %s2820
          %2822 = dma.done %s2818, 32
        $region96: #{tpu_custom_call.1} parent=91 // pred_fallthru
          _
      $region92: #{tpu_custom_call.1} parent=5 // pred_fallthru
        _
    $region6: #{tpu_custom_call.1} parent=1 // loop_footer
      %s30 = sadd.s32 1, %s26
    $region7: #{tpu_custom_call.1} parent=1 // loop_footer_branch
      %25 = sbr.rel target = $region3
    $region8: #{tpu_custom_call.1} parent=1 // loop_exit
      _
    %2823 = vsyncpa [#allocation3], 1
    %s2824 = scalar_lea.sflag [#allocation3], 1
    %2825 = vsyncpa %s2824, 1
    %2826 = vsyncpa [#allocation6], 1
    %2827 = vsyncpa [#allocation9], 1
    %2828 = vsyncpa [#allocation4], 1
    %s2829 = scalar_lea.sflag [#allocation4], 1
    %2830 = vsyncpa %s2829, 1

</llo_original>
